<compile_context>
chip_gen: v7x
topology: tpu7x:2x2x1
jax: 0.10.0
libtpu: 0.0.40
codegen_flags: <defaults>
</compile_context>

<pallas_src>
import functools

import jax
import jax.numpy as jnp
from jax import lax
from jax.experimental import pallas as pl
from jax.experimental.pallas import tpu as pltpu


def _conv_kernel(x_ref, w_ref, o_ref, *, size, stride, th):
    """One (batch element, output-row tile) grid step.

    x_ref: (H_pad, W_pad, C_in)      zero-padded NHWC image for this batch elem
    w_ref: (size*size, C_in, C_out)  weights, leading index = kh*size + kw
    o_ref: (C_out, TP)               output tile, TP = th * W_out (lane-dense)
    """
    t = pl.program_id(1)                     # output-row tile index
    c_out, tp = o_ref.shape
    w_out = tp // th
    c_in = x_ref.shape[-1]

    row0 = t * (th * stride)                 # first padded-input row of this tile

    # k*k taps, fully unrolled at trace time.  Each tap is a cheap VMEM load at
    # a shifted (sublane) offset + one MXU matmul; the first tap seeds the
    # accumulator (saves one full-width VPU add round).
    acc = None
    for kh in range(size):
        for kw in range(size):
            if stride == 1:
                slab = x_ref[pl.ds(row0 + kh, th), pl.ds(kw, w_out), :]
            else:
                # TODO(synk): strided ref loads (stride > 1) are the least-
                # exercised lowering path; only hit when stride > 1.
                slab = x_ref[pl.ds(row0 + kh, th, stride=stride),
                             pl.ds(kw, w_out, stride=stride), :]
            # (th, w_out, c_in) -> (th*w_out, c_in): merges the two sublane-side
            # dims, lane dim (c_in) untouched -> free, no relayout.
            a = slab.reshape(th * w_out, c_in)
            part = jnp.dot(a, w_ref[kh * size + kw],
                           preferred_element_type=jnp.float32)
            acc = part if acc is None else acc + part

    # Single transpose at the end (XLU) so the HBM store is [C_out, TP] with
    # the lane dim = TP >= 128 (dense, unmasked vst).
    o_ref[...] = jnp.transpose(acc).astype(o_ref.dtype)


def _pick_row_tile(h_out, w_out, max_rows=2048):
    """Output rows per grid step.  TP = th*w_out must be a multiple of 128
    (dense lane stores) unless the tile covers the whole output (th == h_out)."""
    if h_out * w_out <= max_rows:
        return h_out
    for th in range(h_out, 0, -1):
        if h_out % th == 0 and th * w_out <= max_rows and (th * w_out) % 128 == 0:
            return th
    return h_out


def conv_forward(x, weights, size=3, stride=1):
    """Forward pass of the PyTorch `Conv` module.

    x:        [B, C_in, H, W]   (NCHW, float32)
    weights:  [C_in*size*size, C_out]   (F.unfold feature order: c, kh, kw)
    returns:  [B, C_out, H_out, W_out]
    """
    b, c_in, h, w = x.shape
    padding = (size - 1) // 2
    c_out = weights.shape[1]
    h_out = (h - size + 2 * padding) // stride + 1
    w_out = (w - size + 2 * padding) // stride + 1
    h_pad, w_pad = h + 2 * padding, w + 2 * padding

    # NCHW -> NHWC + spatial zero-pad (XLA fuses these into a single copy pass;
    # this is ~1x input bytes vs the ~9x of a materialized unfold).
    x_pad = jnp.pad(jnp.transpose(x, (0, 2, 3, 1)),
                    ((0, 0), (padding, padding), (padding, padding), (0, 0)))

    # weights [C_in*k*k, C_out] with unfold order (c, kh, kw) ->
    # [k*k, C_in, C_out] indexed by kh*size + kw.
    w_k = weights.reshape(c_in, size, size, c_out).transpose(1, 2, 0, 3)
    w_k = w_k.reshape(size * size, c_in, c_out)

    th = _pick_row_tile(h_out, w_out)
    n_row_tiles = h_out // th
    assert th * n_row_tiles == h_out
    tp = th * w_out
    p = h_out * w_out

    kernel = functools.partial(_conv_kernel, size=size, stride=stride, th=th)

    flops = 2 * b * p * (c_in * size * size) * c_out
    bytes_accessed = 4 * (int(x_pad.size) + int(w_k.size) + b * c_out * p)

    out = pl.pallas_call(
        kernel,
        out_shape=jax.ShapeDtypeStruct((b, c_out, p), jnp.float32),
        grid_spec=pltpu.PrefetchScalarGridSpec(
            num_scalar_prefetch=0,
            grid=(b, n_row_tiles),
            in_specs=[
                # Whole padded image per batch element (handles the halo);
                # constant across row tiles -> DMA'd once per batch element,
                # no re-DMA between t steps.
                pl.BlockSpec((None, h_pad, w_pad, c_in), lambda i, t: (i, 0, 0, 0)),
                # Weights stay resident across the whole grid.
                pl.BlockSpec((size * size, c_in, c_out), lambda i, t: (0, 0, 0)),
            ],
            out_specs=pl.BlockSpec((None, c_out, tp), lambda i, t: (i, 0, t)),
        ),
        compiler_params=pltpu.CompilerParams(
            dimension_semantics=("parallel", "parallel"),
        ),
        cost_estimate=pl.CostEstimate(
            flops=flops, transcendentals=0, bytes_accessed=bytes_accessed),
    )(x_pad, w_k)                               # [B, C_out, P]

    # Free (contiguous) reshape -- no transpose pass needed.
    return out.reshape(b, c_out, h_out, w_out)


if __name__ == "__main__":
    key = jax.random.PRNGKey(0)
    k_x, k_w = jax.random.split(key)

    # Small shapes: batch=2, ch_in=4, ch_out=4, spatial=16, kernel=3, stride=1
    B, C_in, C_out, H, W, SIZE, STRIDE = 2, 4, 4, 16, 16, 3, 1

    x = jax.random.normal(k_x, (B, C_in, H, W), dtype=jnp.float32)
    weights = jax.random.normal(k_w, (C_in * SIZE * SIZE, C_out), dtype=jnp.float32)

    out = conv_forward(x, weights, size=SIZE, stride=STRIDE)
    out = jax.block_until_ready(out)

    # Independent reference: XLA convolution with the weights reshaped to OIHW
    # (the unfold K-axis ordering is (c, kh, kw)).
    pad = (SIZE - 1) // 2
    w_oihw = weights.reshape(C_in, SIZE, SIZE, C_out).transpose(3, 0, 1, 2)
    ref = lax.conv_general_dilated(
        x, w_oihw, window_strides=(STRIDE, STRIDE),
        padding=[(pad, pad), (pad, pad)],
        dimension_numbers=("NCHW", "OIHW", "NCHW"))

    assert out.shape == (B, C_out, H, W), out.shape
    assert jnp.allclose(out, ref, atol=1e-3, rtol=1e-3), float(jnp.max(jnp.abs(out - ref)))
    print("KERNEL_OK")
</pallas_src>

<mosaic_0001>
module attributes {stable_mosaic.version = 11 : i64} {
  func.func @_conv_kernel(%arg0: i32, %arg1: i32, %arg2: memref<1x18x18x4xf32, #tpu.memory_space<vmem>>, %arg3: memref<9x4x4xf32, #tpu.memory_space<vmem>>, %arg4: memref<1x4x256xf32, #tpu.memory_space<vmem>>) attributes {dimension_semantics = [#tpu.dimension_semantics<parallel>, #tpu.dimension_semantics<parallel>], iteration_bounds = array<i64: 2, 1>, scalar_prefetch = 0 : i64, scratch_operands = 0 : i64, tpu.core_type = #tpu.core_type<tc>, window_params = [{transform_indices = @transform_0, window_bounds = array<i64: 1, 18, 18, 4>}, {pipeline_mode = #tpu.pipeline_mode<synchronous>, transform_indices = @transform_1, window_bounds = array<i64: 9, 4, 4>}, {transform_indices = @transform_2, window_bounds = array<i64: 1, 4, 256>}]} {
    %c16_i32 = arith.constant 16 : i32
    %0 = arith.muli %arg1, %c16_i32 : i32
    %c0_i32 = arith.constant 0 : i32
    %1 = arith.addi %0, %c0_i32 : i32
    %c0 = arith.constant 0 : index
    %2 = arith.index_cast %1 : i32 to index
    %c0_0 = arith.constant 0 : index
    %c0_1 = arith.constant 0 : index
    %3 = vector.load %arg2[%c0, %2, %c0_0, %c0_1] : memref<1x18x18x4xf32, #tpu.memory_space<vmem>>, vector<1x16x16x4xf32>
    %4 = vector.shape_cast %3 : vector<1x16x16x4xf32> to vector<16x16x4xf32>
    %5 = vector.shape_cast %4 : vector<16x16x4xf32> to vector<256x4xf32>
    %c0_2 = arith.constant 0 : index
    %c0_3 = arith.constant 0 : index
    %c0_4 = arith.constant 0 : index
    %6 = vector.load %arg3[%c0_2, %c0_3, %c0_4] : memref<9x4x4xf32, #tpu.memory_space<vmem>>, vector<1x4x4xf32>
    %7 = vector.shape_cast %6 : vector<1x4x4xf32> to vector<4x4xf32>
    %cst = arith.constant dense<0.000000e+00> : vector<256x4xf32>
    %8 = tpu.matmul %5, %7, %cst {dimension_numbers = #tpu.dot_dimension_numbers<[1], [0], [0], [1], [0, 0, 1, 1], [], []>} : vector<256x4xf32>, vector<4x4xf32>, vector<256x4xf32> -> vector<256x4xf32>
    %c0_i32_5 = arith.constant 0 : i32
    %9 = arith.addi %0, %c0_i32_5 : i32
    %c0_6 = arith.constant 0 : index
    %10 = arith.index_cast %9 : i32 to index
    %c1 = arith.constant 1 : index
    %c0_7 = arith.constant 0 : index
    %11 = vector.load %arg2[%c0_6, %10, %c1, %c0_7] : memref<1x18x18x4xf32, #tpu.memory_space<vmem>>, vector<1x16x16x4xf32>
    %12 = vector.shape_cast %11 : vector<1x16x16x4xf32> to vector<16x16x4xf32>
    %13 = vector.shape_cast %12 : vector<16x16x4xf32> to vector<256x4xf32>
    %c1_8 = arith.constant 1 : index
    %c0_9 = arith.constant 0 : index
    %c0_10 = arith.constant 0 : index
    %14 = vector.load %arg3[%c1_8, %c0_9, %c0_10] : memref<9x4x4xf32, #tpu.memory_space<vmem>>, vector<1x4x4xf32>
    %15 = vector.shape_cast %14 : vector<1x4x4xf32> to vector<4x4xf32>
    %cst_11 = arith.constant dense<0.000000e+00> : vector<256x4xf32>
    %16 = tpu.matmul %13, %15, %cst_11 {dimension_numbers = #tpu.dot_dimension_numbers<[1], [0], [0], [1], [0, 0, 1, 1], [], []>} : vector<256x4xf32>, vector<4x4xf32>, vector<256x4xf32> -> vector<256x4xf32>
    %17 = arith.addf %8, %16 : vector<256x4xf32>
    %c0_i32_12 = arith.constant 0 : i32
    %18 = arith.addi %0, %c0_i32_12 : i32
    %c0_13 = arith.constant 0 : index
    %19 = arith.index_cast %18 : i32 to index
    %c2 = arith.constant 2 : index
    %c0_14 = arith.constant 0 : index
    %20 = vector.load %arg2[%c0_13, %19, %c2, %c0_14] : memref<1x18x18x4xf32, #tpu.memory_space<vmem>>, vector<1x16x16x4xf32>
    %21 = vector.shape_cast %20 : vector<1x16x16x4xf32> to vector<16x16x4xf32>
    %22 = vector.shape_cast %21 : vector<16x16x4xf32> to vector<256x4xf32>
    %c2_15 = arith.constant 2 : index
    %c0_16 = arith.constant 0 : index
    %c0_17 = arith.constant 0 : index
    %23 = vector.load %arg3[%c2_15, %c0_16, %c0_17] : memref<9x4x4xf32, #tpu.memory_space<vmem>>, vector<1x4x4xf32>
    %24 = vector.shape_cast %23 : vector<1x4x4xf32> to vector<4x4xf32>
    %cst_18 = arith.constant dense<0.000000e+00> : vector<256x4xf32>
    %25 = tpu.matmul %22, %24, %cst_18 {dimension_numbers = #tpu.dot_dimension_numbers<[1], [0], [0], [1], [0, 0, 1, 1], [], []>} : vector<256x4xf32>, vector<4x4xf32>, vector<256x4xf32> -> vector<256x4xf32>
    %26 = arith.addf %17, %25 : vector<256x4xf32>
    %c1_i32 = arith.constant 1 : i32
    %27 = arith.addi %0, %c1_i32 : i32
    %c0_19 = arith.constant 0 : index
    %28 = arith.index_cast %27 : i32 to index
    %c0_20 = arith.constant 0 : index
    %c0_21 = arith.constant 0 : index
    %29 = vector.load %arg2[%c0_19, %28, %c0_20, %c0_21] : memref<1x18x18x4xf32, #tpu.memory_space<vmem>>, vector<1x16x16x4xf32>
    %30 = vector.shape_cast %29 : vector<1x16x16x4xf32> to vector<16x16x4xf32>
    %31 = vector.shape_cast %30 : vector<16x16x4xf32> to vector<256x4xf32>
    %c3 = arith.constant 3 : index
    %c0_22 = arith.constant 0 : index
    %c0_23 = arith.constant 0 : index
    %32 = vector.load %arg3[%c3, %c0_22, %c0_23] : memref<9x4x4xf32, #tpu.memory_space<vmem>>, vector<1x4x4xf32>
    %33 = vector.shape_cast %32 : vector<1x4x4xf32> to vector<4x4xf32>
    %cst_24 = arith.constant dense<0.000000e+00> : vector<256x4xf32>
    %34 = tpu.matmul %31, %33, %cst_24 {dimension_numbers = #tpu.dot_dimension_numbers<[1], [0], [0], [1], [0, 0, 1, 1], [], []>} : vector<256x4xf32>, vector<4x4xf32>, vector<256x4xf32> -> vector<256x4xf32>
    %35 = arith.addf %26, %34 : vector<256x4xf32>
    %c1_i32_25 = arith.constant 1 : i32
    %36 = arith.addi %0, %c1_i32_25 : i32
    %c0_26 = arith.constant 0 : index
    %37 = arith.index_cast %36 : i32 to index
    %c1_27 = arith.constant 1 : index
    %c0_28 = arith.constant 0 : index
    %38 = vector.load %arg2[%c0_26, %37, %c1_27, %c0_28] : memref<1x18x18x4xf32, #tpu.memory_space<vmem>>, vector<1x16x16x4xf32>
    %39 = vector.shape_cast %38 : vector<1x16x16x4xf32> to vector<16x16x4xf32>
    %40 = vector.shape_cast %39 : vector<16x16x4xf32> to vector<256x4xf32>
    %c4 = arith.constant 4 : index
    %c0_29 = arith.constant 0 : index
    %c0_30 = arith.constant 0 : index
    %41 = vector.load %arg3[%c4, %c0_29, %c0_30] : memref<9x4x4xf32, #tpu.memory_space<vmem>>, vector<1x4x4xf32>
    %42 = vector.shape_cast %41 : vector<1x4x4xf32> to vector<4x4xf32>
    %cst_31 = arith.constant dense<0.000000e+00> : vector<256x4xf32>
    %43 = tpu.matmul %40, %42, %cst_31 {dimension_numbers = #tpu.dot_dimension_numbers<[1], [0], [0], [1], [0, 0, 1, 1], [], []>} : vector<256x4xf32>, vector<4x4xf32>, vector<256x4xf32> -> vector<256x4xf32>
    %44 = arith.addf %35, %43 : vector<256x4xf32>
    %c1_i32_32 = arith.constant 1 : i32
    %45 = arith.addi %0, %c1_i32_32 : i32
    %c0_33 = arith.constant 0 : index
    %46 = arith.index_cast %45 : i32 to index
    %c2_34 = arith.constant 2 : index
    %c0_35 = arith.constant 0 : index
    %47 = vector.load %arg2[%c0_33, %46, %c2_34, %c0_35] : memref<1x18x18x4xf32, #tpu.memory_space<vmem>>, vector<1x16x16x4xf32>
    %48 = vector.shape_cast %47 : vector<1x16x16x4xf32> to vector<16x16x4xf32>
    %49 = vector.shape_cast %48 : vector<16x16x4xf32> to vector<256x4xf32>
    %c5 = arith.constant 5 : index
    %c0_36 = arith.constant 0 : index
    %c0_37 = arith.constant 0 : index
    %50 = vector.load %arg3[%c5, %c0_36, %c0_37] : memref<9x4x4xf32, #tpu.memory_space<vmem>>, vector<1x4x4xf32>
    %51 = vector.shape_cast %50 : vector<1x4x4xf32> to vector<4x4xf32>
    %cst_38 = arith.constant dense<0.000000e+00> : vector<256x4xf32>
    %52 = tpu.matmul %49, %51, %cst_38 {dimension_numbers = #tpu.dot_dimension_numbers<[1], [0], [0], [1], [0, 0, 1, 1], [], []>} : vector<256x4xf32>, vector<4x4xf32>, vector<256x4xf32> -> vector<256x4xf32>
    %53 = arith.addf %44, %52 : vector<256x4xf32>
    %c2_i32 = arith.constant 2 : i32
    %54 = arith.addi %0, %c2_i32 : i32
    %c0_39 = arith.constant 0 : index
    %55 = arith.index_cast %54 : i32 to index
    %c0_40 = arith.constant 0 : index
    %c0_41 = arith.constant 0 : index
    %56 = vector.load %arg2[%c0_39, %55, %c0_40, %c0_41] : memref<1x18x18x4xf32, #tpu.memory_space<vmem>>, vector<1x16x16x4xf32>
    %57 = vector.shape_cast %56 : vector<1x16x16x4xf32> to vector<16x16x4xf32>
    %58 = vector.shape_cast %57 : vector<16x16x4xf32> to vector<256x4xf32>
    %c6 = arith.constant 6 : index
    %c0_42 = arith.constant 0 : index
    %c0_43 = arith.constant 0 : index
    %59 = vector.load %arg3[%c6, %c0_42, %c0_43] : memref<9x4x4xf32, #tpu.memory_space<vmem>>, vector<1x4x4xf32>
    %60 = vector.shape_cast %59 : vector<1x4x4xf32> to vector<4x4xf32>
    %cst_44 = arith.constant dense<0.000000e+00> : vector<256x4xf32>
    %61 = tpu.matmul %58, %60, %cst_44 {dimension_numbers = #tpu.dot_dimension_numbers<[1], [0], [0], [1], [0, 0, 1, 1], [], []>} : vector<256x4xf32>, vector<4x4xf32>, vector<256x4xf32> -> vector<256x4xf32>
    %62 = arith.addf %53, %61 : vector<256x4xf32>
    %c2_i32_45 = arith.constant 2 : i32
    %63 = arith.addi %0, %c2_i32_45 : i32
    %c0_46 = arith.constant 0 : index
    %64 = arith.index_cast %63 : i32 to index
    %c1_47 = arith.constant 1 : index
    %c0_48 = arith.constant 0 : index
    %65 = vector.load %arg2[%c0_46, %64, %c1_47, %c0_48] : memref<1x18x18x4xf32, #tpu.memory_space<vmem>>, vector<1x16x16x4xf32>
    %66 = vector.shape_cast %65 : vector<1x16x16x4xf32> to vector<16x16x4xf32>
    %67 = vector.shape_cast %66 : vector<16x16x4xf32> to vector<256x4xf32>
    %c7 = arith.constant 7 : index
    %c0_49 = arith.constant 0 : index
    %c0_50 = arith.constant 0 : index
    %68 = vector.load %arg3[%c7, %c0_49, %c0_50] : memref<9x4x4xf32, #tpu.memory_space<vmem>>, vector<1x4x4xf32>
    %69 = vector.shape_cast %68 : vector<1x4x4xf32> to vector<4x4xf32>
    %cst_51 = arith.constant dense<0.000000e+00> : vector<256x4xf32>
    %70 = tpu.matmul %67, %69, %cst_51 {dimension_numbers = #tpu.dot_dimension_numbers<[1], [0], [0], [1], [0, 0, 1, 1], [], []>} : vector<256x4xf32>, vector<4x4xf32>, vector<256x4xf32> -> vector<256x4xf32>
    %71 = arith.addf %62, %70 : vector<256x4xf32>
    %c2_i32_52 = arith.constant 2 : i32
    %72 = arith.addi %0, %c2_i32_52 : i32
    %c0_53 = arith.constant 0 : index
    %73 = arith.index_cast %72 : i32 to index
    %c2_54 = arith.constant 2 : index
    %c0_55 = arith.constant 0 : index
    %74 = vector.load %arg2[%c0_53, %73, %c2_54, %c0_55] : memref<1x18x18x4xf32, #tpu.memory_space<vmem>>, vector<1x16x16x4xf32>
    %75 = vector.shape_cast %74 : vector<1x16x16x4xf32> to vector<16x16x4xf32>
    %76 = vector.shape_cast %75 : vector<16x16x4xf32> to vector<256x4xf32>
    %c8 = arith.constant 8 : index
    %c0_56 = arith.constant 0 : index
    %c0_57 = arith.constant 0 : index
    %77 = vector.load %arg3[%c8, %c0_56, %c0_57] : memref<9x4x4xf32, #tpu.memory_space<vmem>>, vector<1x4x4xf32>
    %78 = vector.shape_cast %77 : vector<1x4x4xf32> to vector<4x4xf32>
    %cst_58 = arith.constant dense<0.000000e+00> : vector<256x4xf32>
    %79 = tpu.matmul %76, %78, %cst_58 {dimension_numbers = #tpu.dot_dimension_numbers<[1], [0], [0], [1], [0, 0, 1, 1], [], []>} : vector<256x4xf32>, vector<4x4xf32>, vector<256x4xf32> -> vector<256x4xf32>
    %80 = arith.addf %71, %79 : vector<256x4xf32>
    %81 = tpu.transpose %80, [1, 0] : vector<256x4xf32> -> vector<4x256xf32>
    %c0_59 = arith.constant 0 : index
    %c0_60 = arith.constant 0 : index
    %c0_61 = arith.constant 0 : index
    %82 = vector.load %arg4[%c0_59, %c0_60, %c0_61] : memref<1x4x256xf32, #tpu.memory_space<vmem>>, vector<1x4x256xf32>
    %83 = vector.shape_cast %82 : vector<1x4x256xf32> to vector<4x256xf32>
    %84 = vector.shape_cast %81 : vector<4x256xf32> to vector<1x4x256xf32>
    tpu.vector_store %arg4[%c0_59, %c0_60, %c0_61], %84 {strides = array<i32>} : memref<1x4x256xf32, #tpu.memory_space<vmem>>, vector<1x4x256xf32>,
    return
  }
  func.func @transform_0(%arg0: i32, %arg1: i32) -> (i32, i32, i32, i32) {
    %c0_i32 = arith.constant 0 : i32
    %c0_i32_0 = arith.constant 0 : i32
    %c0_i32_1 = arith.constant 0 : i32
    %c0_i32_2 = arith.constant 0 : i32
    return %arg0, %c0_i32, %c0_i32_0, %c0_i32_1 : i32, i32, i32, i32
  }
  func.func @transform_1(%arg0: i32, %arg1: i32) -> (i32, i32, i32) {
    %c0_i32 = arith.constant 0 : i32
    %c0_i32_0 = arith.constant 0 : i32
    %c0_i32_1 = arith.constant 0 : i32
    %c0_i32_2 = arith.constant 0 : i32
    return %c0_i32, %c0_i32_0, %c0_i32_1 : i32, i32, i32
  }
  func.func @transform_2(%arg0: i32, %arg1: i32) -> (i32, i32, i32) {
    %c0_i32 = arith.constant 0 : i32
    %c0_i32_0 = arith.constant 0 : i32
    return %arg0, %c0_i32, %arg1 : i32, i32, i32
  }
}

</mosaic_0001>

<llo_original>
// kernel: tpu_custom_call.1
$region0: #{tpu_custom_call.1}
  #allocation0 [shape = 'u32[]', space=smem, size = 0x4, offset = 0x4, fixed_abs, tag = 'smem constant byte address 0x4 - core index']
  #allocation1 [shape = 'u32[144,128]{1,0:T(1,128)}', space=vmem, size = 0x12000, scoped, tag = 'internal scratch']
  %s0 = inlined_call_operand.vmem [shape: f32[2,18,18,4], index: 0, kind: input, shape index: {}]
  %s1 = inlined_call_operand.vmem [shape: f32[9,4,4], index: 1, kind: input, shape index: {}]
  %s2 = inlined_call_operand.hbm [shape: f32[2,4,256], index: 2, kind: output, shape index: {}]
  %s3 = sld [smem:[#allocation0]]
  $region41: #{tpu_custom_call.1} parent=0
    _
  %s5 = ssub.s32 1, %s3
  %s6 = scalar_select 0, %s5, %s3
  $region1: #{tpu_custom_call.1} parent=0
    #allocation2 [shape = 'u8[8192]{0}', space=vmem, size = 0x2000, scoped, tag = 'output window, operand 0']
    #allocation3 [shape = 's32[2]{0}', space=sflag, size = 0x8, scoped, tag = 'scoped memory for tpu_custom_call.1']
    %7 = vsyncpa [#allocation3], 0
    %s8 = scalar_lea.sflag [#allocation3], 1
    %9 = vsyncpa %s8, 0
    loop: start=0, step=1, limit=4
    $region2: #{tpu_custom_call.1} parent=1 // loop_pre_header
      _
    $region3: #{tpu_custom_call.1} parent=1 // loop_header
      %s11 = sphi 0, %s15
      %p12 = scmp.ge.s32.totalorder %s11, 4
      %s18 = sphi 0, %s30
      %s19 = sphi 0, %s26
      %s20 = sphi 0, %s18
      %s21 = sphi 0, %s19
      %s22 = sphi 0, %s20
      %s23 = sphi 0, %s21
      %s33 = sphi 0, %s35
      %s36 = sphi 0, %s33
      %s37 = sphi 0, %s36
      %s53 = sphi 0, %s37
      %s57 = sphi 0, %s57
      %s59 = sphi 0, %s57
      %s60 = sphi 0, %s59
      %s74 = sphi 0, %s60
      %s82 = sphi 0, %s84
      %s85 = sphi 0, %s82
      %s86 = sphi 0, %s85
      %s102 = sphi 0, %s86
    $region4: #{tpu_custom_call.1} parent=1 // loop_header_branch
      %14 = sbr.rel (%p12) target = $region8
    $region5: #{tpu_custom_call.1} parent=1 // loop_body
      %s16 = ssub.s32 %s11, 1
      %s17 = ssub.s32 %s11, 2
      %s24 = sadd.s32 1, %s19
      %p25 = scmp.ge.s32.totalorder %s24, 1
      %s26 = scalar_select %p25, 0, %s24
      %s27 = sadd.s32 1, %s18
      %s28 = scalar_select %p25, %s27, %s18
      %p29 = scmp.ge.s32.totalorder %s28, 2
      %s30 = scalar_select %p29, 0, %s28
      %s31 = ssub.s32 %s18, %s30
      %p32 = scmp.eq.s32.totalorder %s31, 0
      %s34 = sadd.s32 %s33, 1
      %s35 = scalar_select %p32, %s33, %s34
      %p38 = pneg %p32
      %p39 = scmp.eq.s32.totalorder %s11, 1
      %p40 = por %p38, %p39
      %p41 = scmp.ne.s32.totalorder %s33, %s36
      %p42 = scmp.eq.s32.totalorder %s11, 0
      %p43 = por %p41, %p42
      %p44 = scmp.ne.s32.totalorder %s33, %s36
      %p45 = scmp.eq.s32.totalorder %s16, 1
      %p46 = por %p44, %p45
      %p47 = scmp.ne.s32.totalorder %s36, %s37
      %p48 = scmp.eq.s32.totalorder %s16, 0
      %p49 = por %p47, %p48
      %p50 = scmp.ne.s32.totalorder %s36, %s37
      %p51 = scmp.eq.s32.totalorder %s17, 1
      %p52 = por %p50, %p51
      %p54 = scmp.ne.s32.totalorder %s37, %s53
      %p55 = scmp.eq.s32.totalorder %s17, 0
      %p56 = por %p54, %p55
      %s58 = sadd.s32 %s57, 1
      %p61 = scmp.eq.s32.totalorder %s11, 1
      %p62 = scmp.ne.s32.totalorder %s57, %s59
      %p63 = scmp.eq.s32.totalorder %s11, 0
      %p64 = por %p62, %p63
      %p65 = scmp.ne.s32.totalorder %s57, %s59
      %p66 = scmp.eq.s32.totalorder %s16, 1
      %p67 = por %p65, %p66
      %p68 = scmp.ne.s32.totalorder %s59, %s60
      %p69 = scmp.eq.s32.totalorder %s16, 0
      %p70 = por %p68, %p69
      %p71 = scmp.ne.s32.totalorder %s59, %s60
      %p72 = scmp.eq.s32.totalorder %s17, 1
      %p73 = por %p71, %p72
      %p75 = scmp.ne.s32.totalorder %s60, %s74
      %p76 = scmp.eq.s32.totalorder %s17, 0
      %p77 = por %p75, %p76
      %s78 = ssub.s32 %s18, %s30
      %s79 = ssub.s32 %s19, %s26
      %s80 = sor.u32 %s78, %s79
      %p81 = scmp.eq.s32.totalorder %s80, 0
      %s83 = sadd.s32 %s82, 1
      %s84 = scalar_select %p81, %s82, %s83
      %p87 = pneg %p81
      %p88 = scmp.eq.s32.totalorder %s11, 1
      %p89 = por %p87, %p88
      %p90 = scmp.ne.s32.totalorder %s82, %s85
      %p91 = scmp.eq.s32.totalorder %s11, 0
      %p92 = por %p90, %p91
      %p93 = scmp.ne.s32.totalorder %s82, %s85
      %p94 = scmp.eq.s32.totalorder %s16, 1
      %p95 = por %p93, %p94
      %p96 = scmp.ne.s32.totalorder %s85, %s86
      %p97 = scmp.eq.s32.totalorder %s16, 0
      %p98 = por %p96, %p97
      %p99 = scmp.ne.s32.totalorder %s85, %s86
      %p100 = scmp.eq.s32.totalorder %s17, 1
      %p101 = por %p99, %p100
      %p103 = scmp.ne.s32.totalorder %s86, %s102
      %p104 = scmp.eq.s32.totalorder %s17, 0
      %p105 = por %p103, %p104
      %p106 = scmp.le.s32.totalorder 1, %s11
      %p107 = scmp.lt.s32.totalorder %s11, 3
      %p108 = pnand %p106, %p107
      %p109 = pneg %p108
      // Predicated region
      $region9: #{tpu_custom_call.1} parent=5 // pred_check
        _
      $region10: #{tpu_custom_call.1} parent=5 // pred_check_branch
        %111 = sbr.rel (%p108) target = $region12
      $region11: #{tpu_custom_call.1} parent=5 // pred_region
        %s112 = ssub.s32 %s11, 1
        // Predicated region
        $region13: #{tpu_custom_call.1} parent=11 // pred_check
          %p113 = pneg %p70
        $region14: #{tpu_custom_call.1} parent=11 // pred_check_branch
          %115 = sbr.rel (%p113) target = $region16
        $region15: #{tpu_custom_call.1} parent=11 // pred_region
          _
        $region16: #{tpu_custom_call.1} parent=11 // pred_fallthru
          _
      $region12: #{tpu_custom_call.1} parent=5 // pred_fallthru
        _
      %p116 = scmp.lt.s32.totalorder %s11, 2
      // Predicated region
      $region17: #{tpu_custom_call.1} parent=5 // pred_check
        %p117 = pneg %p116
      $region18: #{tpu_custom_call.1} parent=5 // pred_check_branch
        %119 = sbr.rel (%p117) target = $region20
      $region19: #{tpu_custom_call.1} parent=5 // pred_region
        // Predicated region
        $region21: #{tpu_custom_call.1} parent=19 // pred_check
          %p120 = pneg %p43
        $region22: #{tpu_custom_call.1} parent=19 // pred_check_branch
          %122 = sbr.rel (%p120) target = $region24
        $region23: #{tpu_custom_call.1} parent=19 // pred_region
          %p123 = scmp.lt.s32.totalorder %s18, 1
          %s124 = scalar_select %p123, %s18, 1
          %s125 = smul.addr %s124, 54
          %s126 = smul.addr %s125, 8
          %s127 = scalar_lea.vmem %s0, %s126
        $region24: #{tpu_custom_call.1} parent=19 // pred_fallthru
          _
      $region20: #{tpu_custom_call.1} parent=5 // pred_fallthru
        _
      %p128 = scmp.le.s32.totalorder 1, %s11
      %p129 = scmp.lt.s32.totalorder %s11, 3
      %p130 = pnand %p128, %p129
      %p131 = pneg %p130
      // Predicated region
      $region25: #{tpu_custom_call.1} parent=5 // pred_check
        _
      $region26: #{tpu_custom_call.1} parent=5 // pred_check_branch
        %133 = sbr.rel (%p130) target = $region28
      $region27: #{tpu_custom_call.1} parent=5 // pred_region
        %s134 = ssub.s32 %s11, 1
        %p135 = scmp.lt.s32.totalorder %s20, 1
        %s136 = scalar_select %p135, %s20, 1
        %s137 = smul.addr %s136, 54
        %s138 = smul.addr %s137, 8
        %s139 = scalar_lea.vmem %s0, %s138
        %p140 = pneg %p49
        %p141 = pneg %p46
        %p142 = pneg %p70
        %p143 = pneg %p67
        %p144 = pneg %p98
        %p145 = pneg %p95
        %s146 = sand.u32 %s85, 1
        %s147 = scalar_lea.sflag [#allocation3], %s146
        %s148 = sand.u32 %s85, 1
        %s149 = smul.addr %s148, 8
        %s150 = scalar_lea.vmem [#allocation2], %s149
        %p151 = scmp.lt.s32.totalorder %s20, 1
        %s152 = scalar_select %p151, %s20, 1
        %s153 = smul.addr %s152, 54
        %s154 = smul.addr %s153, 8
        %s155 = scalar_lea.vmem %s0, %s154
        %s156 = smul.u32 2, %s21
        %s157 = smul.u32 %s21, 16
        %s158 = smul.u32 %s157, 24
        %s159 = scalar_lea.vmem %s155, %s158
        %v160 = vld [vmem:[%s159] sm:$0xff]
        %v161 = vld [vmem:[%s159 + $0x8] sm:$0xff]
        %v162 = vld [vmem:[%s159 + $0x18] sm:$0xff]
        %v163 = vld [vmem:[%s159 + $0x20] sm:$0xff]
        %v164 = vld [vmem:[%s159 + $0x30] sm:$0xff]
        %v165 = vld [vmem:[%s159 + $0x38] sm:$0xff]
        %v166 = vld [vmem:[%s159 + $0x48] sm:$0xff]
        %v167 = vld [vmem:[%s159 + $0x50] sm:$0xff]
        %v168 = vld [vmem:[%s159 + $0x60] sm:$0xff]
        %v169 = vld [vmem:[%s159 + $0x68] sm:$0xff]
        %v170 = vld [vmem:[%s159 + $0x78] sm:$0xff]
        %v171 = vld [vmem:[%s159 + $0x80] sm:$0xff]
        %v172 = vld [vmem:[%s159 + $0x90] sm:$0xff]
        %v173 = vld [vmem:[%s159 + $0x98] sm:$0xff]
        %v174 = vld [vmem:[%s159 + $0xa8] sm:$0xff]
        %v175 = vld [vmem:[%s159 + $0xb0] sm:$0xff]
        %v176 = vld [vmem:[%s159 + $0xc0] sm:$0xff]
        %v177 = vld [vmem:[%s159 + $0xc8] sm:$0xff]
        %v178 = vld [vmem:[%s159 + $0xd8] sm:$0xff]
        %v179 = vld [vmem:[%s159 + $0xe0] sm:$0xff]
        %v180 = vld [vmem:[%s159 + $0xf0] sm:$0xff]
        %v181 = vld [vmem:[%s159 + $0xf8] sm:$0xff]
        %v182 = vld [vmem:[%s159 + $0x108] sm:$0xff]
        %v183 = vld [vmem:[%s159 + $0x110] sm:$0xff]
        %v184 = vld [vmem:[%s159 + $0x120] sm:$0xff]
        %v185 = vld [vmem:[%s159 + $0x128] sm:$0xff]
        %v186 = vld [vmem:[%s159 + $0x138] sm:$0xff]
        %v187 = vld [vmem:[%s159 + $0x140] sm:$0xff]
        %v188 = vld [vmem:[%s159 + $0x150] sm:$0xff]
        %v189 = vld [vmem:[%s159 + $0x158] sm:$0xff]
        %v190 = vld [vmem:[%s159 + $0x168] sm:$0xff]
        %v191 = vld [vmem:[%s159 + $0x170] sm:$0xff]
        %v192 = vld [vmem:[%s1] sm:$0xf]
        %v193 = vld [vmem:[%s159 + $0x1] sm:$0xff]
        %v194 = vld [vmem:[%s159 + $0x9] sm:$0xff]
        %v195 = vld [vmem:[%s159 + $0x19] sm:$0xff]
        %v196 = vld [vmem:[%s159 + $0x21] sm:$0xff]
        %v197 = vld [vmem:[%s159 + $0x31] sm:$0xff]
        %v198 = vld [vmem:[%s159 + $0x39] sm:$0xff]
        %v199 = vld [vmem:[%s159 + $0x49] sm:$0xff]
        %v200 = vld [vmem:[%s159 + $0x51] sm:$0xff]
        %v201 = vld [vmem:[%s159 + $0x61] sm:$0xff]
        %v202 = vld [vmem:[%s159 + $0x69] sm:$0xff]
        %v203 = vld [vmem:[%s159 + $0x79] sm:$0xff]
        %v204 = vld [vmem:[%s159 + $0x81] sm:$0xff]
        %v205 = vld [vmem:[%s159 + $0x91] sm:$0xff]
        %v206 = vld [vmem:[%s159 + $0x99] sm:$0xff]
        %v207 = vld [vmem:[%s159 + $0xa9] sm:$0xff]
        %v208 = vld [vmem:[%s159 + $0xb1] sm:$0xff]
        %v209 = vld [vmem:[%s159 + $0xc1] sm:$0xff]
        %v210 = vld [vmem:[%s159 + $0xc9] sm:$0xff]
        %v211 = vld [vmem:[%s159 + $0xd9] sm:$0xff]
        %v212 = vld [vmem:[%s159 + $0xe1] sm:$0xff]
        %v213 = vld [vmem:[%s159 + $0xf1] sm:$0xff]
        %v214 = vld [vmem:[%s159 + $0xf9] sm:$0xff]
        %v215 = vld [vmem:[%s159 + $0x109] sm:$0xff]
        %v216 = vld [vmem:[%s159 + $0x111] sm:$0xff]
        %v217 = vld [vmem:[%s159 + $0x121] sm:$0xff]
        %v218 = vld [vmem:[%s159 + $0x129] sm:$0xff]
        %v219 = vld [vmem:[%s159 + $0x139] sm:$0xff]
        %v220 = vld [vmem:[%s159 + $0x141] sm:$0xff]
        %v221 = vld [vmem:[%s159 + $0x151] sm:$0xff]
        %v222 = vld [vmem:[%s159 + $0x159] sm:$0xff]
        %v223 = vld [vmem:[%s159 + $0x169] sm:$0xff]
        %v224 = vld [vmem:[%s159 + $0x171] sm:$0xff]
        %s225 = scalar_lea.vmem %s1, 4
        %v226 = vld [vmem:[%s225] sm:$0xf]
        %vm227 = vcmask 31744
        %v229 = vsel %vm227, %v193, 0
        %v232 = vsel %vm227, %v194, 0
        %v235 = vsel %vm227, %v195, 0
        %v238 = vsel %vm227, %v196, 0
        %v241 = vsel %vm227, %v197, 0
        %v244 = vsel %vm227, %v198, 0
        %v247 = vsel %vm227, %v199, 0
        %v250 = vsel %vm227, %v200, 0
        %v253 = vsel %vm227, %v201, 0
        %v256 = vsel %vm227, %v202, 0
        %v259 = vsel %vm227, %v203, 0
        %v262 = vsel %vm227, %v204, 0
        %v265 = vsel %vm227, %v205, 0
        %v268 = vsel %vm227, %v206, 0
        %v271 = vsel %vm227, %v207, 0
        %v274 = vsel %vm227, %v208, 0
        %v277 = vsel %vm227, %v209, 0
        %v280 = vsel %vm227, %v210, 0
        %v283 = vsel %vm227, %v211, 0
        %v286 = vsel %vm227, %v212, 0
        %v289 = vsel %vm227, %v213, 0
        %v292 = vsel %vm227, %v214, 0
        %v295 = vsel %vm227, %v215, 0
        %v298 = vsel %vm227, %v216, 0
        %v301 = vsel %vm227, %v217, 0
        %v304 = vsel %vm227, %v218, 0
        %v307 = vsel %vm227, %v219, 0
        %v310 = vsel %vm227, %v220, 0
        %v313 = vsel %vm227, %v221, 0
        %v316 = vsel %vm227, %v222, 0
        %v319 = vsel %vm227, %v223, 0
        %v322 = vsel %vm227, %v224, 0
        %vm324 = vcmask 1043456
        %v326 = vsel %vm324, %v226, 0
        %328 = vmatprep.subr.mxu0 0.0
        %329 = vmatpush1.msra.mxu0 %v326
        %330 = vmatprep.subr.mxu0 0.0
        %331 = vmatpush1.msra.mxu0 0.0
        %332 = vmatprep.subr.mxu0 0.0
        %333 = vmatpush1.msra.mxu0 0.0
        %334 = vmatprep.subr.mxu0 0.0
        %335 = vmatpush1.msra.mxu0 0.0
        %336 = vmatprep.subr.mxu0 0.0
        %337 = vmatpush1.msra.mxu0 0.0
        %338 = vmatprep.subr.mxu0 0.0
        %339 = vmatpush1.msra.mxu0 0.0
        %340 = vmatprep.subr.mxu0 0.0
        %341 = vmatpush1.msra.mxu0 0.0
        %342 = vmatprep.subr.mxu0 0.0
        %343 = vmatpush1.msra.mxu0 0.0
        %344 = vmatprep.subr.mxu0 0.0
        %345 = vmatpush1.msra.mxu0 0.0
        %346 = vmatprep.subr.mxu0 0.0
        %347 = vmatpush1.msra.mxu0 0.0
        %348 = vmatprep.subr.mxu0 0.0
        %349 = vmatpush1.msra.mxu0 0.0
        %350 = vmatprep.subr.mxu0 0.0
        %351 = vmatpush1.msra.mxu0 0.0
        %352 = vmatprep.subr.mxu0 0.0
        %353 = vmatpush1.msra.mxu0 0.0
        %354 = vmatprep.subr.mxu0 0.0
        %355 = vmatpush1.msra.mxu0 0.0
        %356 = vmatprep.subr.mxu0 0.0
        %357 = vmatpush1.msra.mxu0 0.0
        %358 = vmatprep.subr.mxu0 0.0
        %359 = vmatpush1.msra.mxu0 0.0
        %360 = vmatprep.subr.mxu0 0.0
        %361 = vmatpush1.msra.mxu0 0.0
        %362 = vmatprep.subr.mxu0 0.0
        %363 = vmatpush1.msra.mxu0 0.0
        %364 = vmatprep.subr.mxu0 0.0
        %365 = vmatpush1.msra.mxu0 0.0
        %366 = vmatprep.subr.mxu0 0.0
        %367 = vmatpush1.msra.mxu0 0.0
        %368 = vmatprep.subr.mxu0 0.0
        %369 = vmatpush1.msra.mxu0 0.0
        %370 = vmatprep.subr.mxu0 0.0
        %371 = vmatpush1.msra.mxu0 0.0
        %372 = vmatprep.subr.mxu0 0.0
        %373 = vmatpush1.msra.mxu0 0.0
        %374 = vmatprep.subr.mxu0 0.0
        %375 = vmatpush1.msra.mxu0 0.0
        %376 = vmatprep.subr.mxu0 0.0
        %377 = vmatpush1.msra.mxu0 0.0
        %378 = vmatprep.subr.mxu0 0.0
        %379 = vmatpush1.msra.mxu0 0.0
        %380 = vmatprep.subr.mxu0 0.0
        %381 = vmatpush1.msra.mxu0 0.0
        %382 = vmatprep.subr.mxu0 0.0
        %383 = vmatpush1.msra.mxu0 0.0
        %384 = vmatprep.subr.mxu0 0.0
        %385 = vmatpush1.msra.mxu0 0.0
        %386 = vmatprep.subr.mxu0 0.0
        %387 = vmatpush1.msra.mxu0 0.0
        %388 = vmatprep.subr.mxu0 0.0
        %389 = vmatpush1.msra.mxu0 0.0
        %390 = vmatprep.subr.mxu0 0.0
        %391 = vmatpush1.msra.mxu0 0.0
        %392 = vmatprep.mubr.f32.mxu0 0.0
        %393 = vmatmul.mubr.f32.gmra.mrb[0].mxu0 %v229
        %v394 = vpop.f32.mrb[0].mxu0
        %v395 = vadd.f32 0.0, %v394
        %v396 = vpop.f32.mrb[0].mxu0
        %397 = vmatprep.mubr.f32.mxu0 0.0
        %398 = vmatmul.mubr.f32.gmra.mrb[0].mxu0 %v232
        %v399 = vpop.f32.mrb[0].mxu0
        %v400 = vadd.f32 0.0, %v399
        %v401 = vpop.f32.mrb[0].mxu0
        %402 = vmatprep.mubr.f32.mxu0 0.0
        %403 = vmatmul.mubr.f32.gmra.mrb[0].mxu0 %v235
        %v404 = vpop.f32.mrb[0].mxu0
        %v405 = vadd.f32 0.0, %v404
        %v406 = vpop.f32.mrb[0].mxu0
        %407 = vmatprep.mubr.f32.mxu0 0.0
        %408 = vmatmul.mubr.f32.gmra.mrb[0].mxu0 %v238
        %v409 = vpop.f32.mrb[0].mxu0
        %v410 = vadd.f32 0.0, %v409
        %v411 = vpop.f32.mrb[0].mxu0
        %412 = vmatprep.mubr.f32.mxu0 0.0
        %413 = vmatmul.mubr.f32.gmra.mrb[0].mxu0 %v241
        %v414 = vpop.f32.mrb[0].mxu0
        %v415 = vadd.f32 0.0, %v414
        %v416 = vpop.f32.mrb[0].mxu0
        %417 = vmatprep.mubr.f32.mxu0 0.0
        %418 = vmatmul.mubr.f32.gmra.mrb[0].mxu0 %v244
        %v419 = vpop.f32.mrb[0].mxu0
        %v420 = vadd.f32 0.0, %v419
        %v421 = vpop.f32.mrb[0].mxu0
        %422 = vmatprep.mubr.f32.mxu0 0.0
        %423 = vmatmul.mubr.f32.gmra.mrb[0].mxu0 %v247
        %v424 = vpop.f32.mrb[0].mxu0
        %v425 = vadd.f32 0.0, %v424
        %v426 = vpop.f32.mrb[0].mxu0
        %427 = vmatprep.mubr.f32.mxu0 0.0
        %428 = vmatmul.mubr.f32.gmra.mrb[0].mxu0 %v250
        %v429 = vpop.f32.mrb[0].mxu0
        %v430 = vadd.f32 0.0, %v429
        %v431 = vpop.f32.mrb[0].mxu0
        %432 = vmatprep.mubr.f32.mxu0 0.0
        %433 = vmatmul.mubr.f32.gmra.mrb[0].mxu0 %v253
        %v434 = vpop.f32.mrb[0].mxu0
        %v435 = vadd.f32 0.0, %v434
        %v436 = vpop.f32.mrb[0].mxu0
        %437 = vmatprep.mubr.f32.mxu0 0.0
        %438 = vmatmul.mubr.f32.gmra.mrb[0].mxu0 %v256
        %v439 = vpop.f32.mrb[0].mxu0
        %v440 = vadd.f32 0.0, %v439
        %v441 = vpop.f32.mrb[0].mxu0
        %442 = vmatprep.mubr.f32.mxu0 0.0
        %443 = vmatmul.mubr.f32.gmra.mrb[0].mxu0 %v259
        %v444 = vpop.f32.mrb[0].mxu0
        %v445 = vadd.f32 0.0, %v444
        %v446 = vpop.f32.mrb[0].mxu0
        %447 = vmatprep.mubr.f32.mxu0 0.0
        %448 = vmatmul.mubr.f32.gmra.mrb[0].mxu0 %v262
        %v449 = vpop.f32.mrb[0].mxu0
        %v450 = vadd.f32 0.0, %v449
        %v451 = vpop.f32.mrb[0].mxu0
        %452 = vmatprep.mubr.f32.mxu0 0.0
        %453 = vmatmul.mubr.f32.gmra.mrb[0].mxu0 %v265
        %v454 = vpop.f32.mrb[0].mxu0
        %v455 = vadd.f32 0.0, %v454
        %v456 = vpop.f32.mrb[0].mxu0
        %457 = vmatprep.mubr.f32.mxu0 0.0
        %458 = vmatmul.mubr.f32.gmra.mrb[0].mxu0 %v268
        %v459 = vpop.f32.mrb[0].mxu0
        %v460 = vadd.f32 0.0, %v459
        %v461 = vpop.f32.mrb[0].mxu0
        %462 = vmatprep.mubr.f32.mxu0 0.0
        %463 = vmatmul.mubr.f32.gmra.mrb[0].mxu0 %v271
        %v464 = vpop.f32.mrb[0].mxu0
        %v465 = vadd.f32 0.0, %v464
        %v466 = vpop.f32.mrb[0].mxu0
        %467 = vmatprep.mubr.f32.mxu0 0.0
        %468 = vmatmul.mubr.f32.gmra.mrb[0].mxu0 %v274
        %v469 = vpop.f32.mrb[0].mxu0
        %v470 = vadd.f32 0.0, %v469
        %v471 = vpop.f32.mrb[0].mxu0
        %472 = vmatprep.mubr.f32.mxu0 0.0
        %473 = vmatmul.mubr.f32.gmra.mrb[0].mxu0 %v277
        %v474 = vpop.f32.mrb[0].mxu0
        %v475 = vadd.f32 0.0, %v474
        %v476 = vpop.f32.mrb[0].mxu0
        %477 = vmatprep.mubr.f32.mxu0 0.0
        %478 = vmatmul.mubr.f32.gmra.mrb[0].mxu0 %v280
        %v479 = vpop.f32.mrb[0].mxu0
        %v480 = vadd.f32 0.0, %v479
        %v481 = vpop.f32.mrb[0].mxu0
        %482 = vmatprep.mubr.f32.mxu0 0.0
        %483 = vmatmul.mubr.f32.gmra.mrb[0].mxu0 %v283
        %v484 = vpop.f32.mrb[0].mxu0
        %v485 = vadd.f32 0.0, %v484
        %v486 = vpop.f32.mrb[0].mxu0
        %487 = vmatprep.mubr.f32.mxu0 0.0
        %488 = vmatmul.mubr.f32.gmra.mrb[0].mxu0 %v286
        %v489 = vpop.f32.mrb[0].mxu0
        %v490 = vadd.f32 0.0, %v489
        %v491 = vpop.f32.mrb[0].mxu0
        %492 = vmatprep.mubr.f32.mxu0 0.0
        %493 = vmatmul.mubr.f32.gmra.mrb[0].mxu0 %v289
        %v494 = vpop.f32.mrb[0].mxu0
        %v495 = vadd.f32 0.0, %v494
        %v496 = vpop.f32.mrb[0].mxu0
        %497 = vmatprep.mubr.f32.mxu0 0.0
        %498 = vmatmul.mubr.f32.gmra.mrb[0].mxu0 %v292
        %v499 = vpop.f32.mrb[0].mxu0
        %v500 = vadd.f32 0.0, %v499
        %v501 = vpop.f32.mrb[0].mxu0
        %502 = vmatprep.mubr.f32.mxu0 0.0
        %503 = vmatmul.mubr.f32.gmra.mrb[0].mxu0 %v295
        %v504 = vpop.f32.mrb[0].mxu0
        %v505 = vadd.f32 0.0, %v504
        %v506 = vpop.f32.mrb[0].mxu0
        %507 = vmatprep.mubr.f32.mxu0 0.0
        %508 = vmatmul.mubr.f32.gmra.mrb[0].mxu0 %v298
        %v509 = vpop.f32.mrb[0].mxu0
        %v510 = vadd.f32 0.0, %v509
        %v511 = vpop.f32.mrb[0].mxu0
        %512 = vmatprep.mubr.f32.mxu0 0.0
        %513 = vmatmul.mubr.f32.gmra.mrb[0].mxu0 %v301
        %v514 = vpop.f32.mrb[0].mxu0
        %v515 = vadd.f32 0.0, %v514
        %v516 = vpop.f32.mrb[0].mxu0
        %517 = vmatprep.mubr.f32.mxu0 0.0
        %518 = vmatmul.mubr.f32.gmra.mrb[0].mxu0 %v304
        %v519 = vpop.f32.mrb[0].mxu0
        %v520 = vadd.f32 0.0, %v519
        %v521 = vpop.f32.mrb[0].mxu0
        %522 = vmatprep.mubr.f32.mxu0 0.0
        %523 = vmatmul.mubr.f32.gmra.mrb[0].mxu0 %v307
        %v524 = vpop.f32.mrb[0].mxu0
        %v525 = vadd.f32 0.0, %v524
        %v526 = vpop.f32.mrb[0].mxu0
        %527 = vmatprep.mubr.f32.mxu0 0.0
        %528 = vmatmul.mubr.f32.gmra.mrb[0].mxu0 %v310
        %v529 = vpop.f32.mrb[0].mxu0
        %v530 = vadd.f32 0.0, %v529
        %v531 = vpop.f32.mrb[0].mxu0
        %532 = vmatprep.mubr.f32.mxu0 0.0
        %533 = vmatmul.mubr.f32.gmra.mrb[0].mxu0 %v313
        %v534 = vpop.f32.mrb[0].mxu0
        %v535 = vadd.f32 0.0, %v534
        %v536 = vpop.f32.mrb[0].mxu0
        %537 = vmatprep.mubr.f32.mxu0 0.0
        %538 = vmatmul.mubr.f32.gmra.mrb[0].mxu0 %v316
        %v539 = vpop.f32.mrb[0].mxu0
        %v540 = vadd.f32 0.0, %v539
        %v541 = vpop.f32.mrb[0].mxu0
        %542 = vmatprep.mubr.f32.mxu0 0.0
        %543 = vmatmul.mubr.f32.gmra.mrb[0].mxu0 %v319
        %v544 = vpop.f32.mrb[0].mxu0
        %v545 = vadd.f32 0.0, %v544
        %v546 = vpop.f32.mrb[0].mxu0
        %547 = vmatprep.mubr.f32.mxu0 0.0
        %548 = vmatmul.mubr.f32.gmra.mrb[0].mxu0 %v322
        %v549 = vpop.f32.mrb[0].mxu0
        %v550 = vadd.f32 0.0, %v549
        %v551 = vpop.f32.mrb[0].mxu0
        %552 = vdwg.mxu0
        %v554 = vsel %vm227, %v160, 0
        %v557 = vsel %vm227, %v161, 0
        %v560 = vsel %vm227, %v162, 0
        %v563 = vsel %vm227, %v163, 0
        %v566 = vsel %vm227, %v164, 0
        %v569 = vsel %vm227, %v165, 0
        %v572 = vsel %vm227, %v166, 0
        %v575 = vsel %vm227, %v167, 0
        %v578 = vsel %vm227, %v168, 0
        %v581 = vsel %vm227, %v169, 0
        %v584 = vsel %vm227, %v170, 0
        %v587 = vsel %vm227, %v171, 0
        %v590 = vsel %vm227, %v172, 0
        %v593 = vsel %vm227, %v173, 0
        %v596 = vsel %vm227, %v174, 0
        %v599 = vsel %vm227, %v175, 0
        %v602 = vsel %vm227, %v176, 0
        %v605 = vsel %vm227, %v177, 0
        %v608 = vsel %vm227, %v178, 0
        %v611 = vsel %vm227, %v179, 0
        %v614 = vsel %vm227, %v180, 0
        %v617 = vsel %vm227, %v181, 0
        %v620 = vsel %vm227, %v182, 0
        %v623 = vsel %vm227, %v183, 0
        %v626 = vsel %vm227, %v184, 0
        %v629 = vsel %vm227, %v185, 0
        %v632 = vsel %vm227, %v186, 0
        %v635 = vsel %vm227, %v187, 0
        %v638 = vsel %vm227, %v188, 0
        %v641 = vsel %vm227, %v189, 0
        %v644 = vsel %vm227, %v190, 0
        %v647 = vsel %vm227, %v191, 0
        %v650 = vsel %vm324, %v192, 0
        %652 = vmatprep.subr.mxu0 0.0
        %653 = vmatpush1.msra.mxu0 %v650
        %654 = vmatprep.subr.mxu0 0.0
        %655 = vmatpush1.msra.mxu0 0.0
        %656 = vmatprep.subr.mxu0 0.0
        %657 = vmatpush1.msra.mxu0 0.0
        %658 = vmatprep.subr.mxu0 0.0
        %659 = vmatpush1.msra.mxu0 0.0
        %660 = vmatprep.subr.mxu0 0.0
        %661 = vmatpush1.msra.mxu0 0.0
        %662 = vmatprep.subr.mxu0 0.0
        %663 = vmatpush1.msra.mxu0 0.0
        %664 = vmatprep.subr.mxu0 0.0
        %665 = vmatpush1.msra.mxu0 0.0
        %666 = vmatprep.subr.mxu0 0.0
        %667 = vmatpush1.msra.mxu0 0.0
        %668 = vmatprep.subr.mxu0 0.0
        %669 = vmatpush1.msra.mxu0 0.0
        %670 = vmatprep.subr.mxu0 0.0
        %671 = vmatpush1.msra.mxu0 0.0
        %672 = vmatprep.subr.mxu0 0.0
        %673 = vmatpush1.msra.mxu0 0.0
        %674 = vmatprep.subr.mxu0 0.0
        %675 = vmatpush1.msra.mxu0 0.0
        %676 = vmatprep.subr.mxu0 0.0
        %677 = vmatpush1.msra.mxu0 0.0
        %678 = vmatprep.subr.mxu0 0.0
        %679 = vmatpush1.msra.mxu0 0.0
        %680 = vmatprep.subr.mxu0 0.0
        %681 = vmatpush1.msra.mxu0 0.0
        %682 = vmatprep.subr.mxu0 0.0
        %683 = vmatpush1.msra.mxu0 0.0
        %684 = vmatprep.subr.mxu0 0.0
        %685 = vmatpush1.msra.mxu0 0.0
        %686 = vmatprep.subr.mxu0 0.0
        %687 = vmatpush1.msra.mxu0 0.0
        %688 = vmatprep.subr.mxu0 0.0
        %689 = vmatpush1.msra.mxu0 0.0
        %690 = vmatprep.subr.mxu0 0.0
        %691 = vmatpush1.msra.mxu0 0.0
        %692 = vmatprep.subr.mxu0 0.0
        %693 = vmatpush1.msra.mxu0 0.0
        %694 = vmatprep.subr.mxu0 0.0
        %695 = vmatpush1.msra.mxu0 0.0
        %696 = vmatprep.subr.mxu0 0.0
        %697 = vmatpush1.msra.mxu0 0.0
        %698 = vmatprep.subr.mxu0 0.0
        %699 = vmatpush1.msra.mxu0 0.0
        %700 = vmatprep.subr.mxu0 0.0
        %701 = vmatpush1.msra.mxu0 0.0
        %702 = vmatprep.subr.mxu0 0.0
        %703 = vmatpush1.msra.mxu0 0.0
        %704 = vmatprep.subr.mxu0 0.0
        %705 = vmatpush1.msra.mxu0 0.0
        %706 = vmatprep.subr.mxu0 0.0
        %707 = vmatpush1.msra.mxu0 0.0
        %708 = vmatprep.subr.mxu0 0.0
        %709 = vmatpush1.msra.mxu0 0.0
        %710 = vmatprep.subr.mxu0 0.0
        %711 = vmatpush1.msra.mxu0 0.0
        %712 = vmatprep.subr.mxu0 0.0
        %713 = vmatpush1.msra.mxu0 0.0
        %714 = vmatprep.subr.mxu0 0.0
        %715 = vmatpush1.msra.mxu0 0.0
        %716 = vmatprep.mubr.f32.mxu0 0.0
        %717 = vmatmul.mubr.f32.gmra.mrb[0].mxu0 %v554
        %v718 = vpop.f32.mrb[0].mxu0
        %v719 = vadd.f32 %v395, %v718
        %v720 = vpop.f32.mrb[0].mxu0
        %721 = vmatprep.mubr.f32.mxu0 0.0
        %722 = vmatmul.mubr.f32.gmra.mrb[0].mxu0 %v557
        %v723 = vpop.f32.mrb[0].mxu0
        %v724 = vadd.f32 %v400, %v723
        %v725 = vpop.f32.mrb[0].mxu0
        %726 = vmatprep.mubr.f32.mxu0 0.0
        %727 = vmatmul.mubr.f32.gmra.mrb[0].mxu0 %v560
        %v728 = vpop.f32.mrb[0].mxu0
        %v729 = vadd.f32 %v405, %v728
        %v730 = vpop.f32.mrb[0].mxu0
        %731 = vmatprep.mubr.f32.mxu0 0.0
        %732 = vmatmul.mubr.f32.gmra.mrb[0].mxu0 %v563
        %v733 = vpop.f32.mrb[0].mxu0
        %v734 = vadd.f32 %v410, %v733
        %v735 = vpop.f32.mrb[0].mxu0
        %736 = vmatprep.mubr.f32.mxu0 0.0
        %737 = vmatmul.mubr.f32.gmra.mrb[0].mxu0 %v566
        %v738 = vpop.f32.mrb[0].mxu0
        %v739 = vadd.f32 %v415, %v738
        %v740 = vpop.f32.mrb[0].mxu0
        %741 = vmatprep.mubr.f32.mxu0 0.0
        %742 = vmatmul.mubr.f32.gmra.mrb[0].mxu0 %v569
        %v743 = vpop.f32.mrb[0].mxu0
        %v744 = vadd.f32 %v420, %v743
        %v745 = vpop.f32.mrb[0].mxu0
        %746 = vmatprep.mubr.f32.mxu0 0.0
        %747 = vmatmul.mubr.f32.gmra.mrb[0].mxu0 %v572
        %v748 = vpop.f32.mrb[0].mxu0
        %v749 = vadd.f32 %v425, %v748
        %v750 = vpop.f32.mrb[0].mxu0
        %751 = vmatprep.mubr.f32.mxu0 0.0
        %752 = vmatmul.mubr.f32.gmra.mrb[0].mxu0 %v575
        %v753 = vpop.f32.mrb[0].mxu0
        %v754 = vadd.f32 %v430, %v753
        %v755 = vpop.f32.mrb[0].mxu0
        %756 = vmatprep.mubr.f32.mxu0 0.0
        %757 = vmatmul.mubr.f32.gmra.mrb[0].mxu0 %v578
        %v758 = vpop.f32.mrb[0].mxu0
        %v759 = vadd.f32 %v435, %v758
        %v760 = vpop.f32.mrb[0].mxu0
        %761 = vmatprep.mubr.f32.mxu0 0.0
        %762 = vmatmul.mubr.f32.gmra.mrb[0].mxu0 %v581
        %v763 = vpop.f32.mrb[0].mxu0
        %v764 = vadd.f32 %v440, %v763
        %v765 = vpop.f32.mrb[0].mxu0
        %766 = vmatprep.mubr.f32.mxu0 0.0
        %767 = vmatmul.mubr.f32.gmra.mrb[0].mxu0 %v584
        %v768 = vpop.f32.mrb[0].mxu0
        %v769 = vadd.f32 %v445, %v768
        %v770 = vpop.f32.mrb[0].mxu0
        %771 = vmatprep.mubr.f32.mxu0 0.0
        %772 = vmatmul.mubr.f32.gmra.mrb[0].mxu0 %v587
        %v773 = vpop.f32.mrb[0].mxu0
        %v774 = vadd.f32 %v450, %v773
        %v775 = vpop.f32.mrb[0].mxu0
        %776 = vmatprep.mubr.f32.mxu0 0.0
        %777 = vmatmul.mubr.f32.gmra.mrb[0].mxu0 %v590
        %v778 = vpop.f32.mrb[0].mxu0
        %v779 = vadd.f32 %v455, %v778
        %v780 = vpop.f32.mrb[0].mxu0
        %781 = vmatprep.mubr.f32.mxu0 0.0
        %782 = vmatmul.mubr.f32.gmra.mrb[0].mxu0 %v593
        %v783 = vpop.f32.mrb[0].mxu0
        %v784 = vadd.f32 %v460, %v783
        %v785 = vpop.f32.mrb[0].mxu0
        %786 = vmatprep.mubr.f32.mxu0 0.0
        %787 = vmatmul.mubr.f32.gmra.mrb[0].mxu0 %v596
        %v788 = vpop.f32.mrb[0].mxu0
        %v789 = vadd.f32 %v465, %v788
        %v790 = vpop.f32.mrb[0].mxu0
        %791 = vmatprep.mubr.f32.mxu0 0.0
        %792 = vmatmul.mubr.f32.gmra.mrb[0].mxu0 %v599
        %v793 = vpop.f32.mrb[0].mxu0
        %v794 = vadd.f32 %v470, %v793
        %v795 = vpop.f32.mrb[0].mxu0
        %796 = vmatprep.mubr.f32.mxu0 0.0
        %797 = vmatmul.mubr.f32.gmra.mrb[0].mxu0 %v602
        %v798 = vpop.f32.mrb[0].mxu0
        %v799 = vadd.f32 %v475, %v798
        %v800 = vpop.f32.mrb[0].mxu0
        %801 = vmatprep.mubr.f32.mxu0 0.0
        %802 = vmatmul.mubr.f32.gmra.mrb[0].mxu0 %v605
        %v803 = vpop.f32.mrb[0].mxu0
        %v804 = vadd.f32 %v480, %v803
        %v805 = vpop.f32.mrb[0].mxu0
        %806 = vmatprep.mubr.f32.mxu0 0.0
        %807 = vmatmul.mubr.f32.gmra.mrb[0].mxu0 %v608
        %v808 = vpop.f32.mrb[0].mxu0
        %v809 = vadd.f32 %v485, %v808
        %v810 = vpop.f32.mrb[0].mxu0
        %811 = vmatprep.mubr.f32.mxu0 0.0
        %812 = vmatmul.mubr.f32.gmra.mrb[0].mxu0 %v611
        %v813 = vpop.f32.mrb[0].mxu0
        %v814 = vadd.f32 %v490, %v813
        %v815 = vpop.f32.mrb[0].mxu0
        %816 = vmatprep.mubr.f32.mxu0 0.0
        %817 = vmatmul.mubr.f32.gmra.mrb[0].mxu0 %v614
        %v818 = vpop.f32.mrb[0].mxu0
        %v819 = vadd.f32 %v495, %v818
        %v820 = vpop.f32.mrb[0].mxu0
        %821 = vmatprep.mubr.f32.mxu0 0.0
        %822 = vmatmul.mubr.f32.gmra.mrb[0].mxu0 %v617
        %v823 = vpop.f32.mrb[0].mxu0
        %v824 = vadd.f32 %v500, %v823
        %v825 = vpop.f32.mrb[0].mxu0
        %826 = vmatprep.mubr.f32.mxu0 0.0
        %827 = vmatmul.mubr.f32.gmra.mrb[0].mxu0 %v620
        %v828 = vpop.f32.mrb[0].mxu0
        %v829 = vadd.f32 %v505, %v828
        %v830 = vpop.f32.mrb[0].mxu0
        %831 = vmatprep.mubr.f32.mxu0 0.0
        %832 = vmatmul.mubr.f32.gmra.mrb[0].mxu0 %v623
        %v833 = vpop.f32.mrb[0].mxu0
        %v834 = vadd.f32 %v510, %v833
        %v835 = vpop.f32.mrb[0].mxu0
        %836 = vmatprep.mubr.f32.mxu0 0.0
        %837 = vmatmul.mubr.f32.gmra.mrb[0].mxu0 %v626
        %v838 = vpop.f32.mrb[0].mxu0
        %v839 = vadd.f32 %v515, %v838
        %v840 = vpop.f32.mrb[0].mxu0
        %841 = vmatprep.mubr.f32.mxu0 0.0
        %842 = vmatmul.mubr.f32.gmra.mrb[0].mxu0 %v629
        %v843 = vpop.f32.mrb[0].mxu0
        %v844 = vadd.f32 %v520, %v843
        %v845 = vpop.f32.mrb[0].mxu0
        %846 = vmatprep.mubr.f32.mxu0 0.0
        %847 = vmatmul.mubr.f32.gmra.mrb[0].mxu0 %v632
        %v848 = vpop.f32.mrb[0].mxu0
        %v849 = vadd.f32 %v525, %v848
        %v850 = vpop.f32.mrb[0].mxu0
        %851 = vmatprep.mubr.f32.mxu0 0.0
        %852 = vmatmul.mubr.f32.gmra.mrb[0].mxu0 %v635
        %v853 = vpop.f32.mrb[0].mxu0
        %v854 = vadd.f32 %v530, %v853
        %v855 = vpop.f32.mrb[0].mxu0
        %856 = vmatprep.mubr.f32.mxu0 0.0
        %857 = vmatmul.mubr.f32.gmra.mrb[0].mxu0 %v638
        %v858 = vpop.f32.mrb[0].mxu0
        %v859 = vadd.f32 %v535, %v858
        %v860 = vpop.f32.mrb[0].mxu0
        %861 = vmatprep.mubr.f32.mxu0 0.0
        %862 = vmatmul.mubr.f32.gmra.mrb[0].mxu0 %v641
        %v863 = vpop.f32.mrb[0].mxu0
        %v864 = vadd.f32 %v540, %v863
        %v865 = vpop.f32.mrb[0].mxu0
        %866 = vmatprep.mubr.f32.mxu0 0.0
        %867 = vmatmul.mubr.f32.gmra.mrb[0].mxu0 %v644
        %v868 = vpop.f32.mrb[0].mxu0
        %v869 = vadd.f32 %v545, %v868
        %v870 = vpop.f32.mrb[0].mxu0
        %871 = vmatprep.mubr.f32.mxu0 0.0
        %872 = vmatmul.mubr.f32.gmra.mrb[0].mxu0 %v647
        %v873 = vpop.f32.mrb[0].mxu0
        %v874 = vadd.f32 %v550, %v873
        %v875 = vpop.f32.mrb[0].mxu0
        %876 = vdwg.mxu0
        %v877 = vld [vmem:[%s159 + $0x2] sm:$0xff]
        %v878 = vld [vmem:[%s159 + $0xa] sm:$0xff]
        %v879 = vld [vmem:[%s159 + $0x1a] sm:$0xff]
        %v880 = vld [vmem:[%s159 + $0x22] sm:$0xff]
        %v881 = vld [vmem:[%s159 + $0x32] sm:$0xff]
        %v882 = vld [vmem:[%s159 + $0x3a] sm:$0xff]
        %v883 = vld [vmem:[%s159 + $0x4a] sm:$0xff]
        %v884 = vld [vmem:[%s159 + $0x52] sm:$0xff]
        %v885 = vld [vmem:[%s159 + $0x62] sm:$0xff]
        %v886 = vld [vmem:[%s159 + $0x6a] sm:$0xff]
        %v887 = vld [vmem:[%s159 + $0x7a] sm:$0xff]
        %v888 = vld [vmem:[%s159 + $0x82] sm:$0xff]
        %v889 = vld [vmem:[%s159 + $0x92] sm:$0xff]
        %v890 = vld [vmem:[%s159 + $0x9a] sm:$0xff]
        %v891 = vld [vmem:[%s159 + $0xaa] sm:$0xff]
        %v892 = vld [vmem:[%s159 + $0xb2] sm:$0xff]
        %v893 = vld [vmem:[%s159 + $0xc2] sm:$0xff]
        %v894 = vld [vmem:[%s159 + $0xca] sm:$0xff]
        %v895 = vld [vmem:[%s159 + $0xda] sm:$0xff]
        %v896 = vld [vmem:[%s159 + $0xe2] sm:$0xff]
        %v897 = vld [vmem:[%s159 + $0xf2] sm:$0xff]
        %v898 = vld [vmem:[%s159 + $0xfa] sm:$0xff]
        %v899 = vld [vmem:[%s159 + $0x10a] sm:$0xff]
        %v900 = vld [vmem:[%s159 + $0x112] sm:$0xff]
        %v901 = vld [vmem:[%s159 + $0x122] sm:$0xff]
        %v902 = vld [vmem:[%s159 + $0x12a] sm:$0xff]
        %v903 = vld [vmem:[%s159 + $0x13a] sm:$0xff]
        %v904 = vld [vmem:[%s159 + $0x142] sm:$0xff]
        %v905 = vld [vmem:[%s159 + $0x152] sm:$0xff]
        %v906 = vld [vmem:[%s159 + $0x15a] sm:$0xff]
        %v907 = vld [vmem:[%s159 + $0x16a] sm:$0xff]
        %v908 = vld [vmem:[%s159 + $0x172] sm:$0xff]
        %s909 = scalar_lea.vmem %s1, 8
        %v910 = vld [vmem:[%s909] sm:$0xf]
        %v912 = vsel %vm227, %v877, 0
        %v915 = vsel %vm227, %v878, 0
        %v918 = vsel %vm227, %v879, 0
        %v921 = vsel %vm227, %v880, 0
        %v924 = vsel %vm227, %v881, 0
        %v927 = vsel %vm227, %v882, 0
        %v930 = vsel %vm227, %v883, 0
        %v933 = vsel %vm227, %v884, 0
        %v936 = vsel %vm227, %v885, 0
        %v939 = vsel %vm227, %v886, 0
        %v942 = vsel %vm227, %v887, 0
        %v945 = vsel %vm227, %v888, 0
        %v948 = vsel %vm227, %v889, 0
        %v951 = vsel %vm227, %v890, 0
        %v954 = vsel %vm227, %v891, 0
        %v957 = vsel %vm227, %v892, 0
        %v960 = vsel %vm227, %v893, 0
        %v963 = vsel %vm227, %v894, 0
        %v966 = vsel %vm227, %v895, 0
        %v969 = vsel %vm227, %v896, 0
        %v972 = vsel %vm227, %v897, 0
        %v975 = vsel %vm227, %v898, 0
        %v978 = vsel %vm227, %v899, 0
        %v981 = vsel %vm227, %v900, 0
        %v984 = vsel %vm227, %v901, 0
        %v987 = vsel %vm227, %v902, 0
        %v990 = vsel %vm227, %v903, 0
        %v993 = vsel %vm227, %v904, 0
        %v996 = vsel %vm227, %v905, 0
        %v999 = vsel %vm227, %v906, 0
        %v1002 = vsel %vm227, %v907, 0
        %v1005 = vsel %vm227, %v908, 0
        %v1008 = vsel %vm324, %v910, 0
        %1010 = vmatprep.subr.mxu0 0.0
        %1011 = vmatpush1.msra.mxu0 %v1008
        %1012 = vmatprep.subr.mxu0 0.0
        %1013 = vmatpush1.msra.mxu0 0.0
        %1014 = vmatprep.subr.mxu0 0.0
        %1015 = vmatpush1.msra.mxu0 0.0
        %1016 = vmatprep.subr.mxu0 0.0
        %1017 = vmatpush1.msra.mxu0 0.0
        %1018 = vmatprep.subr.mxu0 0.0
        %1019 = vmatpush1.msra.mxu0 0.0
        %1020 = vmatprep.subr.mxu0 0.0
        %1021 = vmatpush1.msra.mxu0 0.0
        %1022 = vmatprep.subr.mxu0 0.0
        %1023 = vmatpush1.msra.mxu0 0.0
        %1024 = vmatprep.subr.mxu0 0.0
        %1025 = vmatpush1.msra.mxu0 0.0
        %1026 = vmatprep.subr.mxu0 0.0
        %1027 = vmatpush1.msra.mxu0 0.0
        %1028 = vmatprep.subr.mxu0 0.0
        %1029 = vmatpush1.msra.mxu0 0.0
        %1030 = vmatprep.subr.mxu0 0.0
        %1031 = vmatpush1.msra.mxu0 0.0
        %1032 = vmatprep.subr.mxu0 0.0
        %1033 = vmatpush1.msra.mxu0 0.0
        %1034 = vmatprep.subr.mxu0 0.0
        %1035 = vmatpush1.msra.mxu0 0.0
        %1036 = vmatprep.subr.mxu0 0.0
        %1037 = vmatpush1.msra.mxu0 0.0
        %1038 = vmatprep.subr.mxu0 0.0
        %1039 = vmatpush1.msra.mxu0 0.0
        %1040 = vmatprep.subr.mxu0 0.0
        %1041 = vmatpush1.msra.mxu0 0.0
        %1042 = vmatprep.subr.mxu0 0.0
        %1043 = vmatpush1.msra.mxu0 0.0
        %1044 = vmatprep.subr.mxu0 0.0
        %1045 = vmatpush1.msra.mxu0 0.0
        %1046 = vmatprep.subr.mxu0 0.0
        %1047 = vmatpush1.msra.mxu0 0.0
        %1048 = vmatprep.subr.mxu0 0.0
        %1049 = vmatpush1.msra.mxu0 0.0
        %1050 = vmatprep.subr.mxu0 0.0
        %1051 = vmatpush1.msra.mxu0 0.0
        %1052 = vmatprep.subr.mxu0 0.0
        %1053 = vmatpush1.msra.mxu0 0.0
        %1054 = vmatprep.subr.mxu0 0.0
        %1055 = vmatpush1.msra.mxu0 0.0
        %1056 = vmatprep.subr.mxu0 0.0
        %1057 = vmatpush1.msra.mxu0 0.0
        %1058 = vmatprep.subr.mxu0 0.0
        %1059 = vmatpush1.msra.mxu0 0.0
        %1060 = vmatprep.subr.mxu0 0.0
        %1061 = vmatpush1.msra.mxu0 0.0
        %1062 = vmatprep.subr.mxu0 0.0
        %1063 = vmatpush1.msra.mxu0 0.0
        %1064 = vmatprep.subr.mxu0 0.0
        %1065 = vmatpush1.msra.mxu0 0.0
        %1066 = vmatprep.subr.mxu0 0.0
        %1067 = vmatpush1.msra.mxu0 0.0
        %1068 = vmatprep.subr.mxu0 0.0
        %1069 = vmatpush1.msra.mxu0 0.0
        %1070 = vmatprep.subr.mxu0 0.0
        %1071 = vmatpush1.msra.mxu0 0.0
        %1072 = vmatprep.subr.mxu0 0.0
        %1073 = vmatpush1.msra.mxu0 0.0
        %1074 = vmatprep.mubr.f32.mxu0 0.0
        %1075 = vmatmul.mubr.f32.gmra.mrb[0].mxu0 %v912
        %v1076 = vpop.f32.mrb[0].mxu0
        %v1077 = vadd.f32 0.0, %v1076
        %v1078 = vpop.f32.mrb[0].mxu0
        %1079 = vmatprep.mubr.f32.mxu0 0.0
        %1080 = vmatmul.mubr.f32.gmra.mrb[0].mxu0 %v915
        %v1081 = vpop.f32.mrb[0].mxu0
        %v1082 = vadd.f32 0.0, %v1081
        %v1083 = vpop.f32.mrb[0].mxu0
        %1084 = vmatprep.mubr.f32.mxu0 0.0
        %1085 = vmatmul.mubr.f32.gmra.mrb[0].mxu0 %v918
        %v1086 = vpop.f32.mrb[0].mxu0
        %v1087 = vadd.f32 0.0, %v1086
        %v1088 = vpop.f32.mrb[0].mxu0
        %1089 = vmatprep.mubr.f32.mxu0 0.0
        %1090 = vmatmul.mubr.f32.gmra.mrb[0].mxu0 %v921
        %v1091 = vpop.f32.mrb[0].mxu0
        %v1092 = vadd.f32 0.0, %v1091
        %v1093 = vpop.f32.mrb[0].mxu0
        %1094 = vmatprep.mubr.f32.mxu0 0.0
        %1095 = vmatmul.mubr.f32.gmra.mrb[0].mxu0 %v924
        %v1096 = vpop.f32.mrb[0].mxu0
        %v1097 = vadd.f32 0.0, %v1096
        %v1098 = vpop.f32.mrb[0].mxu0
        %1099 = vmatprep.mubr.f32.mxu0 0.0
        %1100 = vmatmul.mubr.f32.gmra.mrb[0].mxu0 %v927
        %v1101 = vpop.f32.mrb[0].mxu0
        %v1102 = vadd.f32 0.0, %v1101
        %v1103 = vpop.f32.mrb[0].mxu0
        %1104 = vmatprep.mubr.f32.mxu0 0.0
        %1105 = vmatmul.mubr.f32.gmra.mrb[0].mxu0 %v930
        %v1106 = vpop.f32.mrb[0].mxu0
        %v1107 = vadd.f32 0.0, %v1106
        %v1108 = vpop.f32.mrb[0].mxu0
        %1109 = vmatprep.mubr.f32.mxu0 0.0
        %1110 = vmatmul.mubr.f32.gmra.mrb[0].mxu0 %v933
        %v1111 = vpop.f32.mrb[0].mxu0
        %v1112 = vadd.f32 0.0, %v1111
        %v1113 = vpop.f32.mrb[0].mxu0
        %1114 = vmatprep.mubr.f32.mxu0 0.0
        %1115 = vmatmul.mubr.f32.gmra.mrb[0].mxu0 %v936
        %v1116 = vpop.f32.mrb[0].mxu0
        %v1117 = vadd.f32 0.0, %v1116
        %v1118 = vpop.f32.mrb[0].mxu0
        %1119 = vmatprep.mubr.f32.mxu0 0.0
        %1120 = vmatmul.mubr.f32.gmra.mrb[0].mxu0 %v939
        %v1121 = vpop.f32.mrb[0].mxu0
        %v1122 = vadd.f32 0.0, %v1121
        %v1123 = vpop.f32.mrb[0].mxu0
        %1124 = vmatprep.mubr.f32.mxu0 0.0
        %1125 = vmatmul.mubr.f32.gmra.mrb[0].mxu0 %v942
        %v1126 = vpop.f32.mrb[0].mxu0
        %v1127 = vadd.f32 0.0, %v1126
        %v1128 = vpop.f32.mrb[0].mxu0
        %1129 = vmatprep.mubr.f32.mxu0 0.0
        %1130 = vmatmul.mubr.f32.gmra.mrb[0].mxu0 %v945
        %v1131 = vpop.f32.mrb[0].mxu0
        %v1132 = vadd.f32 0.0, %v1131
        %v1133 = vpop.f32.mrb[0].mxu0
        %1134 = vmatprep.mubr.f32.mxu0 0.0
        %1135 = vmatmul.mubr.f32.gmra.mrb[0].mxu0 %v948
        %v1136 = vpop.f32.mrb[0].mxu0
        %v1137 = vadd.f32 0.0, %v1136
        %v1138 = vpop.f32.mrb[0].mxu0
        %1139 = vmatprep.mubr.f32.mxu0 0.0
        %1140 = vmatmul.mubr.f32.gmra.mrb[0].mxu0 %v951
        %v1141 = vpop.f32.mrb[0].mxu0
        %v1142 = vadd.f32 0.0, %v1141
        %v1143 = vpop.f32.mrb[0].mxu0
        %1144 = vmatprep.mubr.f32.mxu0 0.0
        %1145 = vmatmul.mubr.f32.gmra.mrb[0].mxu0 %v954
        %v1146 = vpop.f32.mrb[0].mxu0
        %v1147 = vadd.f32 0.0, %v1146
        %v1148 = vpop.f32.mrb[0].mxu0
        %1149 = vmatprep.mubr.f32.mxu0 0.0
        %1150 = vmatmul.mubr.f32.gmra.mrb[0].mxu0 %v957
        %v1151 = vpop.f32.mrb[0].mxu0
        %v1152 = vadd.f32 0.0, %v1151
        %v1153 = vpop.f32.mrb[0].mxu0
        %1154 = vmatprep.mubr.f32.mxu0 0.0
        %1155 = vmatmul.mubr.f32.gmra.mrb[0].mxu0 %v960
        %v1156 = vpop.f32.mrb[0].mxu0
        %v1157 = vadd.f32 0.0, %v1156
        %v1158 = vpop.f32.mrb[0].mxu0
        %1159 = vmatprep.mubr.f32.mxu0 0.0
        %1160 = vmatmul.mubr.f32.gmra.mrb[0].mxu0 %v963
        %v1161 = vpop.f32.mrb[0].mxu0
        %v1162 = vadd.f32 0.0, %v1161
        %v1163 = vpop.f32.mrb[0].mxu0
        %1164 = vmatprep.mubr.f32.mxu0 0.0
        %1165 = vmatmul.mubr.f32.gmra.mrb[0].mxu0 %v966
        %v1166 = vpop.f32.mrb[0].mxu0
        %v1167 = vadd.f32 0.0, %v1166
        %v1168 = vpop.f32.mrb[0].mxu0
        %1169 = vmatprep.mubr.f32.mxu0 0.0
        %1170 = vmatmul.mubr.f32.gmra.mrb[0].mxu0 %v969
        %v1171 = vpop.f32.mrb[0].mxu0
        %v1172 = vadd.f32 0.0, %v1171
        %v1173 = vpop.f32.mrb[0].mxu0
        %1174 = vmatprep.mubr.f32.mxu0 0.0
        %1175 = vmatmul.mubr.f32.gmra.mrb[0].mxu0 %v972
        %v1176 = vpop.f32.mrb[0].mxu0
        %v1177 = vadd.f32 0.0, %v1176
        %v1178 = vpop.f32.mrb[0].mxu0
        %1179 = vmatprep.mubr.f32.mxu0 0.0
        %1180 = vmatmul.mubr.f32.gmra.mrb[0].mxu0 %v975
        %v1181 = vpop.f32.mrb[0].mxu0
        %v1182 = vadd.f32 0.0, %v1181
        %v1183 = vpop.f32.mrb[0].mxu0
        %1184 = vmatprep.mubr.f32.mxu0 0.0
        %1185 = vmatmul.mubr.f32.gmra.mrb[0].mxu0 %v978
        %v1186 = vpop.f32.mrb[0].mxu0
        %v1187 = vadd.f32 0.0, %v1186
        %v1188 = vpop.f32.mrb[0].mxu0
        %1189 = vmatprep.mubr.f32.mxu0 0.0
        %1190 = vmatmul.mubr.f32.gmra.mrb[0].mxu0 %v981
        %v1191 = vpop.f32.mrb[0].mxu0
        %v1192 = vadd.f32 0.0, %v1191
        %v1193 = vpop.f32.mrb[0].mxu0
        %1194 = vmatprep.mubr.f32.mxu0 0.0
        %1195 = vmatmul.mubr.f32.gmra.mrb[0].mxu0 %v984
        %v1196 = vpop.f32.mrb[0].mxu0
        %v1197 = vadd.f32 0.0, %v1196
        %v1198 = vpop.f32.mrb[0].mxu0
        %1199 = vmatprep.mubr.f32.mxu0 0.0
        %1200 = vmatmul.mubr.f32.gmra.mrb[0].mxu0 %v987
        %v1201 = vpop.f32.mrb[0].mxu0
        %v1202 = vadd.f32 0.0, %v1201
        %v1203 = vpop.f32.mrb[0].mxu0
        %1204 = vmatprep.mubr.f32.mxu0 0.0
        %1205 = vmatmul.mubr.f32.gmra.mrb[0].mxu0 %v990
        %v1206 = vpop.f32.mrb[0].mxu0
        %v1207 = vadd.f32 0.0, %v1206
        %v1208 = vpop.f32.mrb[0].mxu0
        %1209 = vmatprep.mubr.f32.mxu0 0.0
        %1210 = vmatmul.mubr.f32.gmra.mrb[0].mxu0 %v993
        %v1211 = vpop.f32.mrb[0].mxu0
        %v1212 = vadd.f32 0.0, %v1211
        %v1213 = vpop.f32.mrb[0].mxu0
        %1214 = vmatprep.mubr.f32.mxu0 0.0
        %1215 = vmatmul.mubr.f32.gmra.mrb[0].mxu0 %v996
        %v1216 = vpop.f32.mrb[0].mxu0
        %v1217 = vadd.f32 0.0, %v1216
        %v1218 = vpop.f32.mrb[0].mxu0
        %1219 = vmatprep.mubr.f32.mxu0 0.0
        %1220 = vmatmul.mubr.f32.gmra.mrb[0].mxu0 %v999
        %v1221 = vpop.f32.mrb[0].mxu0
        %v1222 = vadd.f32 0.0, %v1221
        %v1223 = vpop.f32.mrb[0].mxu0
        %1224 = vmatprep.mubr.f32.mxu0 0.0
        %1225 = vmatmul.mubr.f32.gmra.mrb[0].mxu0 %v1002
        %v1226 = vpop.f32.mrb[0].mxu0
        %v1227 = vadd.f32 0.0, %v1226
        %v1228 = vpop.f32.mrb[0].mxu0
        %1229 = vmatprep.mubr.f32.mxu0 0.0
        %1230 = vmatmul.mubr.f32.gmra.mrb[0].mxu0 %v1005
        %v1231 = vpop.f32.mrb[0].mxu0
        %v1232 = vadd.f32 0.0, %v1231
        %v1233 = vpop.f32.mrb[0].mxu0
        %1234 = vdwg.mxu0
        %v1235 = vadd.f32 %v719, %v1077
        %v1236 = vadd.f32 %v724, %v1082
        %v1237 = vadd.f32 %v729, %v1087
        %v1238 = vadd.f32 %v734, %v1092
        %v1239 = vadd.f32 %v739, %v1097
        %v1240 = vadd.f32 %v744, %v1102
        %v1241 = vadd.f32 %v749, %v1107
        %v1242 = vadd.f32 %v754, %v1112
        %v1243 = vadd.f32 %v759, %v1117
        %v1244 = vadd.f32 %v764, %v1122
        %v1245 = vadd.f32 %v769, %v1127
        %v1246 = vadd.f32 %v774, %v1132
        %v1247 = vadd.f32 %v779, %v1137
        %v1248 = vadd.f32 %v784, %v1142
        %v1249 = vadd.f32 %v789, %v1147
        %v1250 = vadd.f32 %v794, %v1152
        %v1251 = vadd.f32 %v799, %v1157
        %v1252 = vadd.f32 %v804, %v1162
        %v1253 = vadd.f32 %v809, %v1167
        %v1254 = vadd.f32 %v814, %v1172
        %v1255 = vadd.f32 %v819, %v1177
        %v1256 = vadd.f32 %v824, %v1182
        %v1257 = vadd.f32 %v829, %v1187
        %v1258 = vadd.f32 %v834, %v1192
        %v1259 = vadd.f32 %v839, %v1197
        %v1260 = vadd.f32 %v844, %v1202
        %v1261 = vadd.f32 %v849, %v1207
        %v1262 = vadd.f32 %v854, %v1212
        %v1263 = vadd.f32 %v859, %v1217
        %v1264 = vadd.f32 %v864, %v1222
        %v1265 = vadd.f32 %v869, %v1227
        %v1266 = vadd.f32 %v874, %v1232
        %s1267 = sadd.s32 %s157, 1
        %s1268 = smul.u32 %s1267, 24
        %s1269 = scalar_lea.vmem %s155, %s1268
        %v1270 = vld [vmem:[%s1269] sm:$0xff]
        %v1271 = vld [vmem:[%s1269 + $0x8] sm:$0xff]
        %v1272 = vld [vmem:[%s1269 + $0x18] sm:$0xff]
        %v1273 = vld [vmem:[%s1269 + $0x20] sm:$0xff]
        %v1274 = vld [vmem:[%s1269 + $0x30] sm:$0xff]
        %v1275 = vld [vmem:[%s1269 + $0x38] sm:$0xff]
        %v1276 = vld [vmem:[%s1269 + $0x48] sm:$0xff]
        %v1277 = vld [vmem:[%s1269 + $0x50] sm:$0xff]
        %v1278 = vld [vmem:[%s1269 + $0x60] sm:$0xff]
        %v1279 = vld [vmem:[%s1269 + $0x68] sm:$0xff]
        %v1280 = vld [vmem:[%s1269 + $0x78] sm:$0xff]
        %v1281 = vld [vmem:[%s1269 + $0x80] sm:$0xff]
        %v1282 = vld [vmem:[%s1269 + $0x90] sm:$0xff]
        %v1283 = vld [vmem:[%s1269 + $0x98] sm:$0xff]
        %v1284 = vld [vmem:[%s1269 + $0xa8] sm:$0xff]
        %v1285 = vld [vmem:[%s1269 + $0xb0] sm:$0xff]
        %v1286 = vld [vmem:[%s1269 + $0xc0] sm:$0xff]
        %v1287 = vld [vmem:[%s1269 + $0xc8] sm:$0xff]
        %v1288 = vld [vmem:[%s1269 + $0xd8] sm:$0xff]
        %v1289 = vld [vmem:[%s1269 + $0xe0] sm:$0xff]
        %v1290 = vld [vmem:[%s1269 + $0xf0] sm:$0xff]
        %v1291 = vld [vmem:[%s1269 + $0xf8] sm:$0xff]
        %v1292 = vld [vmem:[%s1269 + $0x108] sm:$0xff]
        %v1293 = vld [vmem:[%s1269 + $0x110] sm:$0xff]
        %v1294 = vld [vmem:[%s1269 + $0x120] sm:$0xff]
        %v1295 = vld [vmem:[%s1269 + $0x128] sm:$0xff]
        %v1296 = vld [vmem:[%s1269 + $0x138] sm:$0xff]
        %v1297 = vld [vmem:[%s1269 + $0x140] sm:$0xff]
        %v1298 = vld [vmem:[%s1269 + $0x150] sm:$0xff]
        %v1299 = vld [vmem:[%s1269 + $0x158] sm:$0xff]
        %v1300 = vld [vmem:[%s1269 + $0x168] sm:$0xff]
        %v1301 = vld [vmem:[%s1269 + $0x170] sm:$0xff]
        %s1302 = scalar_lea.vmem %s1, 12
        %v1303 = vld [vmem:[%s1302] sm:$0xf]
        %v1305 = vsel %vm227, %v1270, 0
        %v1308 = vsel %vm227, %v1271, 0
        %v1311 = vsel %vm227, %v1272, 0
        %v1314 = vsel %vm227, %v1273, 0
        %v1317 = vsel %vm227, %v1274, 0
        %v1320 = vsel %vm227, %v1275, 0
        %v1323 = vsel %vm227, %v1276, 0
        %v1326 = vsel %vm227, %v1277, 0
        %v1329 = vsel %vm227, %v1278, 0
        %v1332 = vsel %vm227, %v1279, 0
        %v1335 = vsel %vm227, %v1280, 0
        %v1338 = vsel %vm227, %v1281, 0
        %v1341 = vsel %vm227, %v1282, 0
        %v1344 = vsel %vm227, %v1283, 0
        %v1347 = vsel %vm227, %v1284, 0
        %v1350 = vsel %vm227, %v1285, 0
        %v1353 = vsel %vm227, %v1286, 0
        %v1356 = vsel %vm227, %v1287, 0
        %v1359 = vsel %vm227, %v1288, 0
        %v1362 = vsel %vm227, %v1289, 0
        %v1365 = vsel %vm227, %v1290, 0
        %v1368 = vsel %vm227, %v1291, 0
        %v1371 = vsel %vm227, %v1292, 0
        %v1374 = vsel %vm227, %v1293, 0
        %v1377 = vsel %vm227, %v1294, 0
        %v1380 = vsel %vm227, %v1295, 0
        %v1383 = vsel %vm227, %v1296, 0
        %v1386 = vsel %vm227, %v1297, 0
        %v1389 = vsel %vm227, %v1298, 0
        %v1392 = vsel %vm227, %v1299, 0
        %v1395 = vsel %vm227, %v1300, 0
        %v1398 = vsel %vm227, %v1301, 0
        %v1401 = vsel %vm324, %v1303, 0
        %1403 = vmatprep.subr.mxu0 0.0
        %1404 = vmatpush1.msra.mxu0 %v1401
        %1405 = vmatprep.subr.mxu0 0.0
        %1406 = vmatpush1.msra.mxu0 0.0
        %1407 = vmatprep.subr.mxu0 0.0
        %1408 = vmatpush1.msra.mxu0 0.0
        %1409 = vmatprep.subr.mxu0 0.0
        %1410 = vmatpush1.msra.mxu0 0.0
        %1411 = vmatprep.subr.mxu0 0.0
        %1412 = vmatpush1.msra.mxu0 0.0
        %1413 = vmatprep.subr.mxu0 0.0
        %1414 = vmatpush1.msra.mxu0 0.0
        %1415 = vmatprep.subr.mxu0 0.0
        %1416 = vmatpush1.msra.mxu0 0.0
        %1417 = vmatprep.subr.mxu0 0.0
        %1418 = vmatpush1.msra.mxu0 0.0
        %1419 = vmatprep.subr.mxu0 0.0
        %1420 = vmatpush1.msra.mxu0 0.0
        %1421 = vmatprep.subr.mxu0 0.0
        %1422 = vmatpush1.msra.mxu0 0.0
        %1423 = vmatprep.subr.mxu0 0.0
        %1424 = vmatpush1.msra.mxu0 0.0
        %1425 = vmatprep.subr.mxu0 0.0
        %1426 = vmatpush1.msra.mxu0 0.0
        %1427 = vmatprep.subr.mxu0 0.0
        %1428 = vmatpush1.msra.mxu0 0.0
        %1429 = vmatprep.subr.mxu0 0.0
        %1430 = vmatpush1.msra.mxu0 0.0
        %1431 = vmatprep.subr.mxu0 0.0
        %1432 = vmatpush1.msra.mxu0 0.0
        %1433 = vmatprep.subr.mxu0 0.0
        %1434 = vmatpush1.msra.mxu0 0.0
        %1435 = vmatprep.subr.mxu0 0.0
        %1436 = vmatpush1.msra.mxu0 0.0
        %1437 = vmatprep.subr.mxu0 0.0
        %1438 = vmatpush1.msra.mxu0 0.0
        %1439 = vmatprep.subr.mxu0 0.0
        %1440 = vmatpush1.msra.mxu0 0.0
        %1441 = vmatprep.subr.mxu0 0.0
        %1442 = vmatpush1.msra.mxu0 0.0
        %1443 = vmatprep.subr.mxu0 0.0
        %1444 = vmatpush1.msra.mxu0 0.0
        %1445 = vmatprep.subr.mxu0 0.0
        %1446 = vmatpush1.msra.mxu0 0.0
        %1447 = vmatprep.subr.mxu0 0.0
        %1448 = vmatpush1.msra.mxu0 0.0
        %1449 = vmatprep.subr.mxu0 0.0
        %1450 = vmatpush1.msra.mxu0 0.0
        %1451 = vmatprep.subr.mxu0 0.0
        %1452 = vmatpush1.msra.mxu0 0.0
        %1453 = vmatprep.subr.mxu0 0.0
        %1454 = vmatpush1.msra.mxu0 0.0
        %1455 = vmatprep.subr.mxu0 0.0
        %1456 = vmatpush1.msra.mxu0 0.0
        %1457 = vmatprep.subr.mxu0 0.0
        %1458 = vmatpush1.msra.mxu0 0.0
        %1459 = vmatprep.subr.mxu0 0.0
        %1460 = vmatpush1.msra.mxu0 0.0
        %1461 = vmatprep.subr.mxu0 0.0
        %1462 = vmatpush1.msra.mxu0 0.0
        %1463 = vmatprep.subr.mxu0 0.0
        %1464 = vmatpush1.msra.mxu0 0.0
        %1465 = vmatprep.subr.mxu0 0.0
        %1466 = vmatpush1.msra.mxu0 0.0
        %1467 = vmatprep.mubr.f32.mxu0 0.0
        %1468 = vmatmul.mubr.f32.gmra.mrb[0].mxu0 %v1305
        %v1469 = vpop.f32.mrb[0].mxu0
        %v1470 = vadd.f32 0.0, %v1469
        %v1471 = vpop.f32.mrb[0].mxu0
        %1472 = vmatprep.mubr.f32.mxu0 0.0
        %1473 = vmatmul.mubr.f32.gmra.mrb[0].mxu0 %v1308
        %v1474 = vpop.f32.mrb[0].mxu0
        %v1475 = vadd.f32 0.0, %v1474
        %v1476 = vpop.f32.mrb[0].mxu0
        %1477 = vmatprep.mubr.f32.mxu0 0.0
        %1478 = vmatmul.mubr.f32.gmra.mrb[0].mxu0 %v1311
        %v1479 = vpop.f32.mrb[0].mxu0
        %v1480 = vadd.f32 0.0, %v1479
        %v1481 = vpop.f32.mrb[0].mxu0
        %1482 = vmatprep.mubr.f32.mxu0 0.0
        %1483 = vmatmul.mubr.f32.gmra.mrb[0].mxu0 %v1314
        %v1484 = vpop.f32.mrb[0].mxu0
        %v1485 = vadd.f32 0.0, %v1484
        %v1486 = vpop.f32.mrb[0].mxu0
        %1487 = vmatprep.mubr.f32.mxu0 0.0
        %1488 = vmatmul.mubr.f32.gmra.mrb[0].mxu0 %v1317
        %v1489 = vpop.f32.mrb[0].mxu0
        %v1490 = vadd.f32 0.0, %v1489
        %v1491 = vpop.f32.mrb[0].mxu0
        %1492 = vmatprep.mubr.f32.mxu0 0.0
        %1493 = vmatmul.mubr.f32.gmra.mrb[0].mxu0 %v1320
        %v1494 = vpop.f32.mrb[0].mxu0
        %v1495 = vadd.f32 0.0, %v1494
        %v1496 = vpop.f32.mrb[0].mxu0
        %1497 = vmatprep.mubr.f32.mxu0 0.0
        %1498 = vmatmul.mubr.f32.gmra.mrb[0].mxu0 %v1323
        %v1499 = vpop.f32.mrb[0].mxu0
        %v1500 = vadd.f32 0.0, %v1499
        %v1501 = vpop.f32.mrb[0].mxu0
        %1502 = vmatprep.mubr.f32.mxu0 0.0
        %1503 = vmatmul.mubr.f32.gmra.mrb[0].mxu0 %v1326
        %v1504 = vpop.f32.mrb[0].mxu0
        %v1505 = vadd.f32 0.0, %v1504
        %v1506 = vpop.f32.mrb[0].mxu0
        %1507 = vmatprep.mubr.f32.mxu0 0.0
        %1508 = vmatmul.mubr.f32.gmra.mrb[0].mxu0 %v1329
        %v1509 = vpop.f32.mrb[0].mxu0
        %v1510 = vadd.f32 0.0, %v1509
        %v1511 = vpop.f32.mrb[0].mxu0
        %1512 = vmatprep.mubr.f32.mxu0 0.0
        %1513 = vmatmul.mubr.f32.gmra.mrb[0].mxu0 %v1332
        %v1514 = vpop.f32.mrb[0].mxu0
        %v1515 = vadd.f32 0.0, %v1514
        %v1516 = vpop.f32.mrb[0].mxu0
        %1517 = vmatprep.mubr.f32.mxu0 0.0
        %1518 = vmatmul.mubr.f32.gmra.mrb[0].mxu0 %v1335
        %v1519 = vpop.f32.mrb[0].mxu0
        %v1520 = vadd.f32 0.0, %v1519
        %v1521 = vpop.f32.mrb[0].mxu0
        %1522 = vmatprep.mubr.f32.mxu0 0.0
        %1523 = vmatmul.mubr.f32.gmra.mrb[0].mxu0 %v1338
        %v1524 = vpop.f32.mrb[0].mxu0
        %v1525 = vadd.f32 0.0, %v1524
        %v1526 = vpop.f32.mrb[0].mxu0
        %1527 = vmatprep.mubr.f32.mxu0 0.0
        %1528 = vmatmul.mubr.f32.gmra.mrb[0].mxu0 %v1341
        %v1529 = vpop.f32.mrb[0].mxu0
        %v1530 = vadd.f32 0.0, %v1529
        %v1531 = vpop.f32.mrb[0].mxu0
        %1532 = vmatprep.mubr.f32.mxu0 0.0
        %1533 = vmatmul.mubr.f32.gmra.mrb[0].mxu0 %v1344
        %v1534 = vpop.f32.mrb[0].mxu0
        %v1535 = vadd.f32 0.0, %v1534
        %v1536 = vpop.f32.mrb[0].mxu0
        %1537 = vmatprep.mubr.f32.mxu0 0.0
        %1538 = vmatmul.mubr.f32.gmra.mrb[0].mxu0 %v1347
        %v1539 = vpop.f32.mrb[0].mxu0
        %v1540 = vadd.f32 0.0, %v1539
        %v1541 = vpop.f32.mrb[0].mxu0
        %1542 = vmatprep.mubr.f32.mxu0 0.0
        %1543 = vmatmul.mubr.f32.gmra.mrb[0].mxu0 %v1350
        %v1544 = vpop.f32.mrb[0].mxu0
        %v1545 = vadd.f32 0.0, %v1544
        %v1546 = vpop.f32.mrb[0].mxu0
        %1547 = vmatprep.mubr.f32.mxu0 0.0
        %1548 = vmatmul.mubr.f32.gmra.mrb[0].mxu0 %v1353
        %v1549 = vpop.f32.mrb[0].mxu0
        %v1550 = vadd.f32 0.0, %v1549
        %v1551 = vpop.f32.mrb[0].mxu0
        %1552 = vmatprep.mubr.f32.mxu0 0.0
        %1553 = vmatmul.mubr.f32.gmra.mrb[0].mxu0 %v1356
        %v1554 = vpop.f32.mrb[0].mxu0
        %v1555 = vadd.f32 0.0, %v1554
        %v1556 = vpop.f32.mrb[0].mxu0
        %1557 = vmatprep.mubr.f32.mxu0 0.0
        %1558 = vmatmul.mubr.f32.gmra.mrb[0].mxu0 %v1359
        %v1559 = vpop.f32.mrb[0].mxu0
        %v1560 = vadd.f32 0.0, %v1559
        %v1561 = vpop.f32.mrb[0].mxu0
        %1562 = vmatprep.mubr.f32.mxu0 0.0
        %1563 = vmatmul.mubr.f32.gmra.mrb[0].mxu0 %v1362
        %v1564 = vpop.f32.mrb[0].mxu0
        %v1565 = vadd.f32 0.0, %v1564
        %v1566 = vpop.f32.mrb[0].mxu0
        %1567 = vmatprep.mubr.f32.mxu0 0.0
        %1568 = vmatmul.mubr.f32.gmra.mrb[0].mxu0 %v1365
        %v1569 = vpop.f32.mrb[0].mxu0
        %v1570 = vadd.f32 0.0, %v1569
        %v1571 = vpop.f32.mrb[0].mxu0
        %1572 = vmatprep.mubr.f32.mxu0 0.0
        %1573 = vmatmul.mubr.f32.gmra.mrb[0].mxu0 %v1368
        %v1574 = vpop.f32.mrb[0].mxu0
        %v1575 = vadd.f32 0.0, %v1574
        %v1576 = vpop.f32.mrb[0].mxu0
        %1577 = vmatprep.mubr.f32.mxu0 0.0
        %1578 = vmatmul.mubr.f32.gmra.mrb[0].mxu0 %v1371
        %v1579 = vpop.f32.mrb[0].mxu0
        %v1580 = vadd.f32 0.0, %v1579
        %v1581 = vpop.f32.mrb[0].mxu0
        %1582 = vmatprep.mubr.f32.mxu0 0.0
        %1583 = vmatmul.mubr.f32.gmra.mrb[0].mxu0 %v1374
        %v1584 = vpop.f32.mrb[0].mxu0
        %v1585 = vadd.f32 0.0, %v1584
        %v1586 = vpop.f32.mrb[0].mxu0
        %1587 = vmatprep.mubr.f32.mxu0 0.0
        %1588 = vmatmul.mubr.f32.gmra.mrb[0].mxu0 %v1377
        %v1589 = vpop.f32.mrb[0].mxu0
        %v1590 = vadd.f32 0.0, %v1589
        %v1591 = vpop.f32.mrb[0].mxu0
        %1592 = vmatprep.mubr.f32.mxu0 0.0
        %1593 = vmatmul.mubr.f32.gmra.mrb[0].mxu0 %v1380
        %v1594 = vpop.f32.mrb[0].mxu0
        %v1595 = vadd.f32 0.0, %v1594
        %v1596 = vpop.f32.mrb[0].mxu0
        %1597 = vmatprep.mubr.f32.mxu0 0.0
        %1598 = vmatmul.mubr.f32.gmra.mrb[0].mxu0 %v1383
        %v1599 = vpop.f32.mrb[0].mxu0
        %v1600 = vadd.f32 0.0, %v1599
        %v1601 = vpop.f32.mrb[0].mxu0
        %1602 = vmatprep.mubr.f32.mxu0 0.0
        %1603 = vmatmul.mubr.f32.gmra.mrb[0].mxu0 %v1386
        %v1604 = vpop.f32.mrb[0].mxu0
        %v1605 = vadd.f32 0.0, %v1604
        %v1606 = vpop.f32.mrb[0].mxu0
        %1607 = vmatprep.mubr.f32.mxu0 0.0
        %1608 = vmatmul.mubr.f32.gmra.mrb[0].mxu0 %v1389
        %v1609 = vpop.f32.mrb[0].mxu0
        %v1610 = vadd.f32 0.0, %v1609
        %v1611 = vpop.f32.mrb[0].mxu0
        %1612 = vmatprep.mubr.f32.mxu0 0.0
        %1613 = vmatmul.mubr.f32.gmra.mrb[0].mxu0 %v1392
        %v1614 = vpop.f32.mrb[0].mxu0
        %v1615 = vadd.f32 0.0, %v1614
        %v1616 = vpop.f32.mrb[0].mxu0
        %1617 = vmatprep.mubr.f32.mxu0 0.0
        %1618 = vmatmul.mubr.f32.gmra.mrb[0].mxu0 %v1395
        %v1619 = vpop.f32.mrb[0].mxu0
        %v1620 = vadd.f32 0.0, %v1619
        %v1621 = vpop.f32.mrb[0].mxu0
        %1622 = vmatprep.mubr.f32.mxu0 0.0
        %1623 = vmatmul.mubr.f32.gmra.mrb[0].mxu0 %v1398
        %v1624 = vpop.f32.mrb[0].mxu0
        %v1625 = vadd.f32 0.0, %v1624
        %v1626 = vpop.f32.mrb[0].mxu0
        %1627 = vdwg.mxu0
        %v1628 = vadd.f32 %v1235, %v1470
        %v1629 = vadd.f32 %v1236, %v1475
        %v1630 = vadd.f32 %v1237, %v1480
        %v1631 = vadd.f32 %v1238, %v1485
        %v1632 = vadd.f32 %v1239, %v1490
        %v1633 = vadd.f32 %v1240, %v1495
        %v1634 = vadd.f32 %v1241, %v1500
        %v1635 = vadd.f32 %v1242, %v1505
        %v1636 = vadd.f32 %v1243, %v1510
        %v1637 = vadd.f32 %v1244, %v1515
        %v1638 = vadd.f32 %v1245, %v1520
        %v1639 = vadd.f32 %v1246, %v1525
        %v1640 = vadd.f32 %v1247, %v1530
        %v1641 = vadd.f32 %v1248, %v1535
        %v1642 = vadd.f32 %v1249, %v1540
        %v1643 = vadd.f32 %v1250, %v1545
        %v1644 = vadd.f32 %v1251, %v1550
        %v1645 = vadd.f32 %v1252, %v1555
        %v1646 = vadd.f32 %v1253, %v1560
        %v1647 = vadd.f32 %v1254, %v1565
        %v1648 = vadd.f32 %v1255, %v1570
        %v1649 = vadd.f32 %v1256, %v1575
        %v1650 = vadd.f32 %v1257, %v1580
        %v1651 = vadd.f32 %v1258, %v1585
        %v1652 = vadd.f32 %v1259, %v1590
        %v1653 = vadd.f32 %v1260, %v1595
        %v1654 = vadd.f32 %v1261, %v1600
        %v1655 = vadd.f32 %v1262, %v1605
        %v1656 = vadd.f32 %v1263, %v1610
        %v1657 = vadd.f32 %v1264, %v1615
        %v1658 = vadd.f32 %v1265, %v1620
        %v1659 = vadd.f32 %v1266, %v1625
        %v1660 = vld [vmem:[%s1269 + $0x1] sm:$0xff]
        %v1661 = vld [vmem:[%s1269 + $0x9] sm:$0xff]
        %v1662 = vld [vmem:[%s1269 + $0x19] sm:$0xff]
        %v1663 = vld [vmem:[%s1269 + $0x21] sm:$0xff]
        %v1664 = vld [vmem:[%s1269 + $0x31] sm:$0xff]
        %v1665 = vld [vmem:[%s1269 + $0x39] sm:$0xff]
        %v1666 = vld [vmem:[%s1269 + $0x49] sm:$0xff]
        %v1667 = vld [vmem:[%s1269 + $0x51] sm:$0xff]
        %v1668 = vld [vmem:[%s1269 + $0x61] sm:$0xff]
        %v1669 = vld [vmem:[%s1269 + $0x69] sm:$0xff]
        %v1670 = vld [vmem:[%s1269 + $0x79] sm:$0xff]
        %v1671 = vld [vmem:[%s1269 + $0x81] sm:$0xff]
        %v1672 = vld [vmem:[%s1269 + $0x91] sm:$0xff]
        %v1673 = vld [vmem:[%s1269 + $0x99] sm:$0xff]
        %v1674 = vld [vmem:[%s1269 + $0xa9] sm:$0xff]
        %v1675 = vld [vmem:[%s1269 + $0xb1] sm:$0xff]
        %v1676 = vld [vmem:[%s1269 + $0xc1] sm:$0xff]
        %v1677 = vld [vmem:[%s1269 + $0xc9] sm:$0xff]
        %v1678 = vld [vmem:[%s1269 + $0xd9] sm:$0xff]
        %v1679 = vld [vmem:[%s1269 + $0xe1] sm:$0xff]
        %v1680 = vld [vmem:[%s1269 + $0xf1] sm:$0xff]
        %v1681 = vld [vmem:[%s1269 + $0xf9] sm:$0xff]
        %v1682 = vld [vmem:[%s1269 + $0x109] sm:$0xff]
        %v1683 = vld [vmem:[%s1269 + $0x111] sm:$0xff]
        %v1684 = vld [vmem:[%s1269 + $0x121] sm:$0xff]
        %v1685 = vld [vmem:[%s1269 + $0x129] sm:$0xff]
        %v1686 = vld [vmem:[%s1269 + $0x139] sm:$0xff]
        %v1687 = vld [vmem:[%s1269 + $0x141] sm:$0xff]
        %v1688 = vld [vmem:[%s1269 + $0x151] sm:$0xff]
        %v1689 = vld [vmem:[%s1269 + $0x159] sm:$0xff]
        %v1690 = vld [vmem:[%s1269 + $0x169] sm:$0xff]
        %v1691 = vld [vmem:[%s1269 + $0x171] sm:$0xff]
        %s1692 = scalar_lea.vmem %s1, 16
        %v1693 = vld [vmem:[%s1692] sm:$0xf]
        %v1695 = vsel %vm227, %v1660, 0
        %v1698 = vsel %vm227, %v1661, 0
        %v1701 = vsel %vm227, %v1662, 0
        %v1704 = vsel %vm227, %v1663, 0
        %v1707 = vsel %vm227, %v1664, 0
        %v1710 = vsel %vm227, %v1665, 0
        %v1713 = vsel %vm227, %v1666, 0
        %v1716 = vsel %vm227, %v1667, 0
        %v1719 = vsel %vm227, %v1668, 0
        %v1722 = vsel %vm227, %v1669, 0
        %v1725 = vsel %vm227, %v1670, 0
        %v1728 = vsel %vm227, %v1671, 0
        %v1731 = vsel %vm227, %v1672, 0
        %v1734 = vsel %vm227, %v1673, 0
        %v1737 = vsel %vm227, %v1674, 0
        %v1740 = vsel %vm227, %v1675, 0
        %v1743 = vsel %vm227, %v1676, 0
        %v1746 = vsel %vm227, %v1677, 0
        %v1749 = vsel %vm227, %v1678, 0
        %v1752 = vsel %vm227, %v1679, 0
        %v1755 = vsel %vm227, %v1680, 0
        %v1758 = vsel %vm227, %v1681, 0
        %v1761 = vsel %vm227, %v1682, 0
        %v1764 = vsel %vm227, %v1683, 0
        %v1767 = vsel %vm227, %v1684, 0
        %v1770 = vsel %vm227, %v1685, 0
        %v1773 = vsel %vm227, %v1686, 0
        %v1776 = vsel %vm227, %v1687, 0
        %v1779 = vsel %vm227, %v1688, 0
        %v1782 = vsel %vm227, %v1689, 0
        %v1785 = vsel %vm227, %v1690, 0
        %v1788 = vsel %vm227, %v1691, 0
        %v1791 = vsel %vm324, %v1693, 0
        %1793 = vmatprep.subr.mxu0 0.0
        %1794 = vmatpush1.msra.mxu0 %v1791
        %1795 = vmatprep.subr.mxu0 0.0
        %1796 = vmatpush1.msra.mxu0 0.0
        %1797 = vmatprep.subr.mxu0 0.0
        %1798 = vmatpush1.msra.mxu0 0.0
        %1799 = vmatprep.subr.mxu0 0.0
        %1800 = vmatpush1.msra.mxu0 0.0
        %1801 = vmatprep.subr.mxu0 0.0
        %1802 = vmatpush1.msra.mxu0 0.0
        %1803 = vmatprep.subr.mxu0 0.0
        %1804 = vmatpush1.msra.mxu0 0.0
        %1805 = vmatprep.subr.mxu0 0.0
        %1806 = vmatpush1.msra.mxu0 0.0
        %1807 = vmatprep.subr.mxu0 0.0
        %1808 = vmatpush1.msra.mxu0 0.0
        %1809 = vmatprep.subr.mxu0 0.0
        %1810 = vmatpush1.msra.mxu0 0.0
        %1811 = vmatprep.subr.mxu0 0.0
        %1812 = vmatpush1.msra.mxu0 0.0
        %1813 = vmatprep.subr.mxu0 0.0
        %1814 = vmatpush1.msra.mxu0 0.0
        %1815 = vmatprep.subr.mxu0 0.0
        %1816 = vmatpush1.msra.mxu0 0.0
        %1817 = vmatprep.subr.mxu0 0.0
        %1818 = vmatpush1.msra.mxu0 0.0
        %1819 = vmatprep.subr.mxu0 0.0
        %1820 = vmatpush1.msra.mxu0 0.0
        %1821 = vmatprep.subr.mxu0 0.0
        %1822 = vmatpush1.msra.mxu0 0.0
        %1823 = vmatprep.subr.mxu0 0.0
        %1824 = vmatpush1.msra.mxu0 0.0
        %1825 = vmatprep.subr.mxu0 0.0
        %1826 = vmatpush1.msra.mxu0 0.0
        %1827 = vmatprep.subr.mxu0 0.0
        %1828 = vmatpush1.msra.mxu0 0.0
        %1829 = vmatprep.subr.mxu0 0.0
        %1830 = vmatpush1.msra.mxu0 0.0
        %1831 = vmatprep.subr.mxu0 0.0
        %1832 = vmatpush1.msra.mxu0 0.0
        %1833 = vmatprep.subr.mxu0 0.0
        %1834 = vmatpush1.msra.mxu0 0.0
        %1835 = vmatprep.subr.mxu0 0.0
        %1836 = vmatpush1.msra.mxu0 0.0
        %1837 = vmatprep.subr.mxu0 0.0
        %1838 = vmatpush1.msra.mxu0 0.0
        %1839 = vmatprep.subr.mxu0 0.0
        %1840 = vmatpush1.msra.mxu0 0.0
        %1841 = vmatprep.subr.mxu0 0.0
        %1842 = vmatpush1.msra.mxu0 0.0
        %1843 = vmatprep.subr.mxu0 0.0
        %1844 = vmatpush1.msra.mxu0 0.0
        %1845 = vmatprep.subr.mxu0 0.0
        %1846 = vmatpush1.msra.mxu0 0.0
        %1847 = vmatprep.subr.mxu0 0.0
        %1848 = vmatpush1.msra.mxu0 0.0
        %1849 = vmatprep.subr.mxu0 0.0
        %1850 = vmatpush1.msra.mxu0 0.0
        %1851 = vmatprep.subr.mxu0 0.0
        %1852 = vmatpush1.msra.mxu0 0.0
        %1853 = vmatprep.subr.mxu0 0.0
        %1854 = vmatpush1.msra.mxu0 0.0
        %1855 = vmatprep.subr.mxu0 0.0
        %1856 = vmatpush1.msra.mxu0 0.0
        %1857 = vmatprep.mubr.f32.mxu0 0.0
        %1858 = vmatmul.mubr.f32.gmra.mrb[0].mxu0 %v1695
        %v1859 = vpop.f32.mrb[0].mxu0
        %v1860 = vadd.f32 0.0, %v1859
        %v1861 = vpop.f32.mrb[0].mxu0
        %1862 = vmatprep.mubr.f32.mxu0 0.0
        %1863 = vmatmul.mubr.f32.gmra.mrb[0].mxu0 %v1698
        %v1864 = vpop.f32.mrb[0].mxu0
        %v1865 = vadd.f32 0.0, %v1864
        %v1866 = vpop.f32.mrb[0].mxu0
        %1867 = vmatprep.mubr.f32.mxu0 0.0
        %1868 = vmatmul.mubr.f32.gmra.mrb[0].mxu0 %v1701
        %v1869 = vpop.f32.mrb[0].mxu0
        %v1870 = vadd.f32 0.0, %v1869
        %v1871 = vpop.f32.mrb[0].mxu0
        %1872 = vmatprep.mubr.f32.mxu0 0.0
        %1873 = vmatmul.mubr.f32.gmra.mrb[0].mxu0 %v1704
        %v1874 = vpop.f32.mrb[0].mxu0
        %v1875 = vadd.f32 0.0, %v1874
        %v1876 = vpop.f32.mrb[0].mxu0
        %1877 = vmatprep.mubr.f32.mxu0 0.0
        %1878 = vmatmul.mubr.f32.gmra.mrb[0].mxu0 %v1707
        %v1879 = vpop.f32.mrb[0].mxu0
        %v1880 = vadd.f32 0.0, %v1879
        %v1881 = vpop.f32.mrb[0].mxu0
        %1882 = vmatprep.mubr.f32.mxu0 0.0
        %1883 = vmatmul.mubr.f32.gmra.mrb[0].mxu0 %v1710
        %v1884 = vpop.f32.mrb[0].mxu0
        %v1885 = vadd.f32 0.0, %v1884
        %v1886 = vpop.f32.mrb[0].mxu0
        %1887 = vmatprep.mubr.f32.mxu0 0.0
        %1888 = vmatmul.mubr.f32.gmra.mrb[0].mxu0 %v1713
        %v1889 = vpop.f32.mrb[0].mxu0
        %v1890 = vadd.f32 0.0, %v1889
        %v1891 = vpop.f32.mrb[0].mxu0
        %1892 = vmatprep.mubr.f32.mxu0 0.0
        %1893 = vmatmul.mubr.f32.gmra.mrb[0].mxu0 %v1716
        %v1894 = vpop.f32.mrb[0].mxu0
        %v1895 = vadd.f32 0.0, %v1894
        %v1896 = vpop.f32.mrb[0].mxu0
        %1897 = vmatprep.mubr.f32.mxu0 0.0
        %1898 = vmatmul.mubr.f32.gmra.mrb[0].mxu0 %v1719
        %v1899 = vpop.f32.mrb[0].mxu0
        %v1900 = vadd.f32 0.0, %v1899
        %v1901 = vpop.f32.mrb[0].mxu0
        %1902 = vmatprep.mubr.f32.mxu0 0.0
        %1903 = vmatmul.mubr.f32.gmra.mrb[0].mxu0 %v1722
        %v1904 = vpop.f32.mrb[0].mxu0
        %v1905 = vadd.f32 0.0, %v1904
        %v1906 = vpop.f32.mrb[0].mxu0
        %1907 = vmatprep.mubr.f32.mxu0 0.0
        %1908 = vmatmul.mubr.f32.gmra.mrb[0].mxu0 %v1725
        %v1909 = vpop.f32.mrb[0].mxu0
        %v1910 = vadd.f32 0.0, %v1909
        %v1911 = vpop.f32.mrb[0].mxu0
        %1912 = vmatprep.mubr.f32.mxu0 0.0
        %1913 = vmatmul.mubr.f32.gmra.mrb[0].mxu0 %v1728
        %v1914 = vpop.f32.mrb[0].mxu0
        %v1915 = vadd.f32 0.0, %v1914
        %v1916 = vpop.f32.mrb[0].mxu0
        %1917 = vmatprep.mubr.f32.mxu0 0.0
        %1918 = vmatmul.mubr.f32.gmra.mrb[0].mxu0 %v1731
        %v1919 = vpop.f32.mrb[0].mxu0
        %v1920 = vadd.f32 0.0, %v1919
        %v1921 = vpop.f32.mrb[0].mxu0
        %1922 = vmatprep.mubr.f32.mxu0 0.0
        %1923 = vmatmul.mubr.f32.gmra.mrb[0].mxu0 %v1734
        %v1924 = vpop.f32.mrb[0].mxu0
        %v1925 = vadd.f32 0.0, %v1924
        %v1926 = vpop.f32.mrb[0].mxu0
        %1927 = vmatprep.mubr.f32.mxu0 0.0
        %1928 = vmatmul.mubr.f32.gmra.mrb[0].mxu0 %v1737
        %v1929 = vpop.f32.mrb[0].mxu0
        %v1930 = vadd.f32 0.0, %v1929
        %v1931 = vpop.f32.mrb[0].mxu0
        %1932 = vmatprep.mubr.f32.mxu0 0.0
        %1933 = vmatmul.mubr.f32.gmra.mrb[0].mxu0 %v1740
        %v1934 = vpop.f32.mrb[0].mxu0
        %v1935 = vadd.f32 0.0, %v1934
        %v1936 = vpop.f32.mrb[0].mxu0
        %1937 = vmatprep.mubr.f32.mxu0 0.0
        %1938 = vmatmul.mubr.f32.gmra.mrb[0].mxu0 %v1743
        %v1939 = vpop.f32.mrb[0].mxu0
        %v1940 = vadd.f32 0.0, %v1939
        %v1941 = vpop.f32.mrb[0].mxu0
        %1942 = vmatprep.mubr.f32.mxu0 0.0
        %1943 = vmatmul.mubr.f32.gmra.mrb[0].mxu0 %v1746
        %v1944 = vpop.f32.mrb[0].mxu0
        %v1945 = vadd.f32 0.0, %v1944
        %v1946 = vpop.f32.mrb[0].mxu0
        %1947 = vmatprep.mubr.f32.mxu0 0.0
        %1948 = vmatmul.mubr.f32.gmra.mrb[0].mxu0 %v1749
        %v1949 = vpop.f32.mrb[0].mxu0
        %v1950 = vadd.f32 0.0, %v1949
        %v1951 = vpop.f32.mrb[0].mxu0
        %1952 = vmatprep.mubr.f32.mxu0 0.0
        %1953 = vmatmul.mubr.f32.gmra.mrb[0].mxu0 %v1752
        %v1954 = vpop.f32.mrb[0].mxu0
        %v1955 = vadd.f32 0.0, %v1954
        %v1956 = vpop.f32.mrb[0].mxu0
        %1957 = vmatprep.mubr.f32.mxu0 0.0
        %1958 = vmatmul.mubr.f32.gmra.mrb[0].mxu0 %v1755
        %v1959 = vpop.f32.mrb[0].mxu0
        %v1960 = vadd.f32 0.0, %v1959
        %v1961 = vpop.f32.mrb[0].mxu0
        %1962 = vmatprep.mubr.f32.mxu0 0.0
        %1963 = vmatmul.mubr.f32.gmra.mrb[0].mxu0 %v1758
        %v1964 = vpop.f32.mrb[0].mxu0
        %v1965 = vadd.f32 0.0, %v1964
        %v1966 = vpop.f32.mrb[0].mxu0
        %1967 = vmatprep.mubr.f32.mxu0 0.0
        %1968 = vmatmul.mubr.f32.gmra.mrb[0].mxu0 %v1761
        %v1969 = vpop.f32.mrb[0].mxu0
        %v1970 = vadd.f32 0.0, %v1969
        %v1971 = vpop.f32.mrb[0].mxu0
        %1972 = vmatprep.mubr.f32.mxu0 0.0
        %1973 = vmatmul.mubr.f32.gmra.mrb[0].mxu0 %v1764
        %v1974 = vpop.f32.mrb[0].mxu0
        %v1975 = vadd.f32 0.0, %v1974
        %v1976 = vpop.f32.mrb[0].mxu0
        %1977 = vmatprep.mubr.f32.mxu0 0.0
        %1978 = vmatmul.mubr.f32.gmra.mrb[0].mxu0 %v1767
        %v1979 = vpop.f32.mrb[0].mxu0
        %v1980 = vadd.f32 0.0, %v1979
        %v1981 = vpop.f32.mrb[0].mxu0
        %1982 = vmatprep.mubr.f32.mxu0 0.0
        %1983 = vmatmul.mubr.f32.gmra.mrb[0].mxu0 %v1770
        %v1984 = vpop.f32.mrb[0].mxu0
        %v1985 = vadd.f32 0.0, %v1984
        %v1986 = vpop.f32.mrb[0].mxu0
        %1987 = vmatprep.mubr.f32.mxu0 0.0
        %1988 = vmatmul.mubr.f32.gmra.mrb[0].mxu0 %v1773
        %v1989 = vpop.f32.mrb[0].mxu0
        %v1990 = vadd.f32 0.0, %v1989
        %v1991 = vpop.f32.mrb[0].mxu0
        %1992 = vmatprep.mubr.f32.mxu0 0.0
        %1993 = vmatmul.mubr.f32.gmra.mrb[0].mxu0 %v1776
        %v1994 = vpop.f32.mrb[0].mxu0
        %v1995 = vadd.f32 0.0, %v1994
        %v1996 = vpop.f32.mrb[0].mxu0
        %1997 = vmatprep.mubr.f32.mxu0 0.0
        %1998 = vmatmul.mubr.f32.gmra.mrb[0].mxu0 %v1779
        %v1999 = vpop.f32.mrb[0].mxu0
        %v2000 = vadd.f32 0.0, %v1999
        %v2001 = vpop.f32.mrb[0].mxu0
        %2002 = vmatprep.mubr.f32.mxu0 0.0
        %2003 = vmatmul.mubr.f32.gmra.mrb[0].mxu0 %v1782
        %v2004 = vpop.f32.mrb[0].mxu0
        %v2005 = vadd.f32 0.0, %v2004
        %v2006 = vpop.f32.mrb[0].mxu0
        %2007 = vmatprep.mubr.f32.mxu0 0.0
        %2008 = vmatmul.mubr.f32.gmra.mrb[0].mxu0 %v1785
        %v2009 = vpop.f32.mrb[0].mxu0
        %v2010 = vadd.f32 0.0, %v2009
        %v2011 = vpop.f32.mrb[0].mxu0
        %2012 = vmatprep.mubr.f32.mxu0 0.0
        %2013 = vmatmul.mubr.f32.gmra.mrb[0].mxu0 %v1788
        %v2014 = vpop.f32.mrb[0].mxu0
        %v2015 = vadd.f32 0.0, %v2014
        %v2016 = vpop.f32.mrb[0].mxu0
        %2017 = vdwg.mxu0
        %v2018 = vadd.f32 %v1628, %v1860
        %v2019 = vadd.f32 %v1629, %v1865
        %v2020 = vadd.f32 %v1630, %v1870
        %v2021 = vadd.f32 %v1631, %v1875
        %v2022 = vadd.f32 %v1632, %v1880
        %v2023 = vadd.f32 %v1633, %v1885
        %v2024 = vadd.f32 %v1634, %v1890
        %v2025 = vadd.f32 %v1635, %v1895
        %v2026 = vadd.f32 %v1636, %v1900
        %v2027 = vadd.f32 %v1637, %v1905
        %v2028 = vadd.f32 %v1638, %v1910
        %v2029 = vadd.f32 %v1639, %v1915
        %v2030 = vadd.f32 %v1640, %v1920
        %v2031 = vadd.f32 %v1641, %v1925
        %v2032 = vadd.f32 %v1642, %v1930
        %v2033 = vadd.f32 %v1643, %v1935
        %v2034 = vadd.f32 %v1644, %v1940
        %v2035 = vadd.f32 %v1645, %v1945
        %v2036 = vadd.f32 %v1646, %v1950
        %v2037 = vadd.f32 %v1647, %v1955
        %v2038 = vadd.f32 %v1648, %v1960
        %v2039 = vadd.f32 %v1649, %v1965
        %v2040 = vadd.f32 %v1650, %v1970
        %v2041 = vadd.f32 %v1651, %v1975
        %v2042 = vadd.f32 %v1652, %v1980
        %v2043 = vadd.f32 %v1653, %v1985
        %v2044 = vadd.f32 %v1654, %v1990
        %v2045 = vadd.f32 %v1655, %v1995
        %v2046 = vadd.f32 %v1656, %v2000
        %v2047 = vadd.f32 %v1657, %v2005
        %v2048 = vadd.f32 %v1658, %v2010
        %v2049 = vadd.f32 %v1659, %v2015
        %v2050 = vld [vmem:[%s1269 + $0x2] sm:$0xff]
        %v2051 = vld [vmem:[%s1269 + $0xa] sm:$0xff]
        %v2052 = vld [vmem:[%s1269 + $0x1a] sm:$0xff]
        %v2053 = vld [vmem:[%s1269 + $0x22] sm:$0xff]
        %v2054 = vld [vmem:[%s1269 + $0x32] sm:$0xff]
        %v2055 = vld [vmem:[%s1269 + $0x3a] sm:$0xff]
        %v2056 = vld [vmem:[%s1269 + $0x4a] sm:$0xff]
        %v2057 = vld [vmem:[%s1269 + $0x52] sm:$0xff]
        %v2058 = vld [vmem:[%s1269 + $0x62] sm:$0xff]
        %v2059 = vld [vmem:[%s1269 + $0x6a] sm:$0xff]
        %v2060 = vld [vmem:[%s1269 + $0x7a] sm:$0xff]
        %v2061 = vld [vmem:[%s1269 + $0x82] sm:$0xff]
        %v2062 = vld [vmem:[%s1269 + $0x92] sm:$0xff]
        %v2063 = vld [vmem:[%s1269 + $0x9a] sm:$0xff]
        %v2064 = vld [vmem:[%s1269 + $0xaa] sm:$0xff]
        %v2065 = vld [vmem:[%s1269 + $0xb2] sm:$0xff]
        %v2066 = vld [vmem:[%s1269 + $0xc2] sm:$0xff]
        %v2067 = vld [vmem:[%s1269 + $0xca] sm:$0xff]
        %v2068 = vld [vmem:[%s1269 + $0xda] sm:$0xff]
        %v2069 = vld [vmem:[%s1269 + $0xe2] sm:$0xff]
        %v2070 = vld [vmem:[%s1269 + $0xf2] sm:$0xff]
        %v2071 = vld [vmem:[%s1269 + $0xfa] sm:$0xff]
        %v2072 = vld [vmem:[%s1269 + $0x10a] sm:$0xff]
        %v2073 = vld [vmem:[%s1269 + $0x112] sm:$0xff]
        %v2074 = vld [vmem:[%s1269 + $0x122] sm:$0xff]
        %v2075 = vld [vmem:[%s1269 + $0x12a] sm:$0xff]
        %v2076 = vld [vmem:[%s1269 + $0x13a] sm:$0xff]
        %v2077 = vld [vmem:[%s1269 + $0x142] sm:$0xff]
        %v2078 = vld [vmem:[%s1269 + $0x152] sm:$0xff]
        %v2079 = vld [vmem:[%s1269 + $0x15a] sm:$0xff]
        %v2080 = vld [vmem:[%s1269 + $0x16a] sm:$0xff]
        %v2081 = vld [vmem:[%s1269 + $0x172] sm:$0xff]
        %s2082 = scalar_lea.vmem %s1, 20
        %v2083 = vld [vmem:[%s2082] sm:$0xf]
        %v2085 = vsel %vm227, %v2050, 0
        %v2088 = vsel %vm227, %v2051, 0
        %v2091 = vsel %vm227, %v2052, 0
        %v2094 = vsel %vm227, %v2053, 0
        %v2097 = vsel %vm227, %v2054, 0
        %v2100 = vsel %vm227, %v2055, 0
        %v2103 = vsel %vm227, %v2056, 0
        %v2106 = vsel %vm227, %v2057, 0
        %v2109 = vsel %vm227, %v2058, 0
        %v2112 = vsel %vm227, %v2059, 0
        %v2115 = vsel %vm227, %v2060, 0
        %v2118 = vsel %vm227, %v2061, 0
        %v2121 = vsel %vm227, %v2062, 0
        %v2124 = vsel %vm227, %v2063, 0
        %v2127 = vsel %vm227, %v2064, 0
        %v2130 = vsel %vm227, %v2065, 0
        %v2133 = vsel %vm227, %v2066, 0
        %v2136 = vsel %vm227, %v2067, 0
        %v2139 = vsel %vm227, %v2068, 0
        %v2142 = vsel %vm227, %v2069, 0
        %v2145 = vsel %vm227, %v2070, 0
        %v2148 = vsel %vm227, %v2071, 0
        %v2151 = vsel %vm227, %v2072, 0
        %v2154 = vsel %vm227, %v2073, 0
        %v2157 = vsel %vm227, %v2074, 0
        %v2160 = vsel %vm227, %v2075, 0
        %v2163 = vsel %vm227, %v2076, 0
        %v2166 = vsel %vm227, %v2077, 0
        %v2169 = vsel %vm227, %v2078, 0
        %v2172 = vsel %vm227, %v2079, 0
        %v2175 = vsel %vm227, %v2080, 0
        %v2178 = vsel %vm227, %v2081, 0
        %v2181 = vsel %vm324, %v2083, 0
        %2183 = vmatprep.subr.mxu0 0.0
        %2184 = vmatpush1.msra.mxu0 %v2181
        %2185 = vmatprep.subr.mxu0 0.0
        %2186 = vmatpush1.msra.mxu0 0.0
        %2187 = vmatprep.subr.mxu0 0.0
        %2188 = vmatpush1.msra.mxu0 0.0
        %2189 = vmatprep.subr.mxu0 0.0
        %2190 = vmatpush1.msra.mxu0 0.0
        %2191 = vmatprep.subr.mxu0 0.0
        %2192 = vmatpush1.msra.mxu0 0.0
        %2193 = vmatprep.subr.mxu0 0.0
        %2194 = vmatpush1.msra.mxu0 0.0
        %2195 = vmatprep.subr.mxu0 0.0
        %2196 = vmatpush1.msra.mxu0 0.0
        %2197 = vmatprep.subr.mxu0 0.0
        %2198 = vmatpush1.msra.mxu0 0.0
        %2199 = vmatprep.subr.mxu0 0.0
        %2200 = vmatpush1.msra.mxu0 0.0
        %2201 = vmatprep.subr.mxu0 0.0
        %2202 = vmatpush1.msra.mxu0 0.0
        %2203 = vmatprep.subr.mxu0 0.0
        %2204 = vmatpush1.msra.mxu0 0.0
        %2205 = vmatprep.subr.mxu0 0.0
        %2206 = vmatpush1.msra.mxu0 0.0
        %2207 = vmatprep.subr.mxu0 0.0
        %2208 = vmatpush1.msra.mxu0 0.0
        %2209 = vmatprep.subr.mxu0 0.0
        %2210 = vmatpush1.msra.mxu0 0.0
        %2211 = vmatprep.subr.mxu0 0.0
        %2212 = vmatpush1.msra.mxu0 0.0
        %2213 = vmatprep.subr.mxu0 0.0
        %2214 = vmatpush1.msra.mxu0 0.0
        %2215 = vmatprep.subr.mxu0 0.0
        %2216 = vmatpush1.msra.mxu0 0.0
        %2217 = vmatprep.subr.mxu0 0.0
        %2218 = vmatpush1.msra.mxu0 0.0
        %2219 = vmatprep.subr.mxu0 0.0
        %2220 = vmatpush1.msra.mxu0 0.0
        %2221 = vmatprep.subr.mxu0 0.0
        %2222 = vmatpush1.msra.mxu0 0.0
        %2223 = vmatprep.subr.mxu0 0.0
        %2224 = vmatpush1.msra.mxu0 0.0
        %2225 = vmatprep.subr.mxu0 0.0
        %2226 = vmatpush1.msra.mxu0 0.0
        %2227 = vmatprep.subr.mxu0 0.0
        %2228 = vmatpush1.msra.mxu0 0.0
        %2229 = vmatprep.subr.mxu0 0.0
        %2230 = vmatpush1.msra.mxu0 0.0
        %2231 = vmatprep.subr.mxu0 0.0
        %2232 = vmatpush1.msra.mxu0 0.0
        %2233 = vmatprep.subr.mxu0 0.0
        %2234 = vmatpush1.msra.mxu0 0.0
        %2235 = vmatprep.subr.mxu0 0.0
        %2236 = vmatpush1.msra.mxu0 0.0
        %2237 = vmatprep.subr.mxu0 0.0
        %2238 = vmatpush1.msra.mxu0 0.0
        %2239 = vmatprep.subr.mxu0 0.0
        %2240 = vmatpush1.msra.mxu0 0.0
        %2241 = vmatprep.subr.mxu0 0.0
        %2242 = vmatpush1.msra.mxu0 0.0
        %2243 = vmatprep.subr.mxu0 0.0
        %2244 = vmatpush1.msra.mxu0 0.0
        %2245 = vmatprep.subr.mxu0 0.0
        %2246 = vmatpush1.msra.mxu0 0.0
        %2247 = vmatprep.mubr.f32.mxu0 0.0
        %2248 = vmatmul.mubr.f32.gmra.mrb[0].mxu0 %v2085
        %v2249 = vpop.f32.mrb[0].mxu0
        %v2250 = vadd.f32 0.0, %v2249
        %v2251 = vpop.f32.mrb[0].mxu0
        %2252 = vmatprep.mubr.f32.mxu0 0.0
        %2253 = vmatmul.mubr.f32.gmra.mrb[0].mxu0 %v2088
        %v2254 = vpop.f32.mrb[0].mxu0
        %v2255 = vadd.f32 0.0, %v2254
        %v2256 = vpop.f32.mrb[0].mxu0
        %2257 = vmatprep.mubr.f32.mxu0 0.0
        %2258 = vmatmul.mubr.f32.gmra.mrb[0].mxu0 %v2091
        %v2259 = vpop.f32.mrb[0].mxu0
        %v2260 = vadd.f32 0.0, %v2259
        %v2261 = vpop.f32.mrb[0].mxu0
        %2262 = vmatprep.mubr.f32.mxu0 0.0
        %2263 = vmatmul.mubr.f32.gmra.mrb[0].mxu0 %v2094
        %v2264 = vpop.f32.mrb[0].mxu0
        %v2265 = vadd.f32 0.0, %v2264
        %v2266 = vpop.f32.mrb[0].mxu0
        %2267 = vmatprep.mubr.f32.mxu0 0.0
        %2268 = vmatmul.mubr.f32.gmra.mrb[0].mxu0 %v2097
        %v2269 = vpop.f32.mrb[0].mxu0
        %v2270 = vadd.f32 0.0, %v2269
        %v2271 = vpop.f32.mrb[0].mxu0
        %2272 = vmatprep.mubr.f32.mxu0 0.0
        %2273 = vmatmul.mubr.f32.gmra.mrb[0].mxu0 %v2100
        %v2274 = vpop.f32.mrb[0].mxu0
        %v2275 = vadd.f32 0.0, %v2274
        %v2276 = vpop.f32.mrb[0].mxu0
        %2277 = vmatprep.mubr.f32.mxu0 0.0
        %2278 = vmatmul.mubr.f32.gmra.mrb[0].mxu0 %v2103
        %v2279 = vpop.f32.mrb[0].mxu0
        %v2280 = vadd.f32 0.0, %v2279
        %v2281 = vpop.f32.mrb[0].mxu0
        %2282 = vmatprep.mubr.f32.mxu0 0.0
        %2283 = vmatmul.mubr.f32.gmra.mrb[0].mxu0 %v2106
        %v2284 = vpop.f32.mrb[0].mxu0
        %v2285 = vadd.f32 0.0, %v2284
        %v2286 = vpop.f32.mrb[0].mxu0
        %2287 = vmatprep.mubr.f32.mxu0 0.0
        %2288 = vmatmul.mubr.f32.gmra.mrb[0].mxu0 %v2109
        %v2289 = vpop.f32.mrb[0].mxu0
        %v2290 = vadd.f32 0.0, %v2289
        %v2291 = vpop.f32.mrb[0].mxu0
        %2292 = vmatprep.mubr.f32.mxu0 0.0
        %2293 = vmatmul.mubr.f32.gmra.mrb[0].mxu0 %v2112
        %v2294 = vpop.f32.mrb[0].mxu0
        %v2295 = vadd.f32 0.0, %v2294
        %v2296 = vpop.f32.mrb[0].mxu0
        %2297 = vmatprep.mubr.f32.mxu0 0.0
        %2298 = vmatmul.mubr.f32.gmra.mrb[0].mxu0 %v2115
        %v2299 = vpop.f32.mrb[0].mxu0
        %v2300 = vadd.f32 0.0, %v2299
        %v2301 = vpop.f32.mrb[0].mxu0
        %2302 = vmatprep.mubr.f32.mxu0 0.0
        %2303 = vmatmul.mubr.f32.gmra.mrb[0].mxu0 %v2118
        %v2304 = vpop.f32.mrb[0].mxu0
        %v2305 = vadd.f32 0.0, %v2304
        %v2306 = vpop.f32.mrb[0].mxu0
        %2307 = vmatprep.mubr.f32.mxu0 0.0
        %2308 = vmatmul.mubr.f32.gmra.mrb[0].mxu0 %v2121
        %v2309 = vpop.f32.mrb[0].mxu0
        %v2310 = vadd.f32 0.0, %v2309
        %v2311 = vpop.f32.mrb[0].mxu0
        %2312 = vmatprep.mubr.f32.mxu0 0.0
        %2313 = vmatmul.mubr.f32.gmra.mrb[0].mxu0 %v2124
        %v2314 = vpop.f32.mrb[0].mxu0
        %v2315 = vadd.f32 0.0, %v2314
        %v2316 = vpop.f32.mrb[0].mxu0
        %2317 = vmatprep.mubr.f32.mxu0 0.0
        %2318 = vmatmul.mubr.f32.gmra.mrb[0].mxu0 %v2127
        %v2319 = vpop.f32.mrb[0].mxu0
        %v2320 = vadd.f32 0.0, %v2319
        %v2321 = vpop.f32.mrb[0].mxu0
        %2322 = vmatprep.mubr.f32.mxu0 0.0
        %2323 = vmatmul.mubr.f32.gmra.mrb[0].mxu0 %v2130
        %v2324 = vpop.f32.mrb[0].mxu0
        %v2325 = vadd.f32 0.0, %v2324
        %v2326 = vpop.f32.mrb[0].mxu0
        %2327 = vmatprep.mubr.f32.mxu0 0.0
        %2328 = vmatmul.mubr.f32.gmra.mrb[0].mxu0 %v2133
        %v2329 = vpop.f32.mrb[0].mxu0
        %v2330 = vadd.f32 0.0, %v2329
        %v2331 = vpop.f32.mrb[0].mxu0
        %2332 = vmatprep.mubr.f32.mxu0 0.0
        %2333 = vmatmul.mubr.f32.gmra.mrb[0].mxu0 %v2136
        %v2334 = vpop.f32.mrb[0].mxu0
        %v2335 = vadd.f32 0.0, %v2334
        %v2336 = vpop.f32.mrb[0].mxu0
        %2337 = vmatprep.mubr.f32.mxu0 0.0
        %2338 = vmatmul.mubr.f32.gmra.mrb[0].mxu0 %v2139
        %v2339 = vpop.f32.mrb[0].mxu0
        %v2340 = vadd.f32 0.0, %v2339
        %v2341 = vpop.f32.mrb[0].mxu0
        %2342 = vmatprep.mubr.f32.mxu0 0.0
        %2343 = vmatmul.mubr.f32.gmra.mrb[0].mxu0 %v2142
        %v2344 = vpop.f32.mrb[0].mxu0
        %v2345 = vadd.f32 0.0, %v2344
        %v2346 = vpop.f32.mrb[0].mxu0
        %2347 = vmatprep.mubr.f32.mxu0 0.0
        %2348 = vmatmul.mubr.f32.gmra.mrb[0].mxu0 %v2145
        %v2349 = vpop.f32.mrb[0].mxu0
        %v2350 = vadd.f32 0.0, %v2349
        %v2351 = vpop.f32.mrb[0].mxu0
        %2352 = vmatprep.mubr.f32.mxu0 0.0
        %2353 = vmatmul.mubr.f32.gmra.mrb[0].mxu0 %v2148
        %v2354 = vpop.f32.mrb[0].mxu0
        %v2355 = vadd.f32 0.0, %v2354
        %v2356 = vpop.f32.mrb[0].mxu0
        %2357 = vmatprep.mubr.f32.mxu0 0.0
        %2358 = vmatmul.mubr.f32.gmra.mrb[0].mxu0 %v2151
        %v2359 = vpop.f32.mrb[0].mxu0
        %v2360 = vadd.f32 0.0, %v2359
        %v2361 = vpop.f32.mrb[0].mxu0
        %2362 = vmatprep.mubr.f32.mxu0 0.0
        %2363 = vmatmul.mubr.f32.gmra.mrb[0].mxu0 %v2154
        %v2364 = vpop.f32.mrb[0].mxu0
        %v2365 = vadd.f32 0.0, %v2364
        %v2366 = vpop.f32.mrb[0].mxu0
        %2367 = vmatprep.mubr.f32.mxu0 0.0
        %2368 = vmatmul.mubr.f32.gmra.mrb[0].mxu0 %v2157
        %v2369 = vpop.f32.mrb[0].mxu0
        %v2370 = vadd.f32 0.0, %v2369
        %v2371 = vpop.f32.mrb[0].mxu0
        %2372 = vmatprep.mubr.f32.mxu0 0.0
        %2373 = vmatmul.mubr.f32.gmra.mrb[0].mxu0 %v2160
        %v2374 = vpop.f32.mrb[0].mxu0
        %v2375 = vadd.f32 0.0, %v2374
        %v2376 = vpop.f32.mrb[0].mxu0
        %2377 = vmatprep.mubr.f32.mxu0 0.0
        %2378 = vmatmul.mubr.f32.gmra.mrb[0].mxu0 %v2163
        %v2379 = vpop.f32.mrb[0].mxu0
        %v2380 = vadd.f32 0.0, %v2379
        %v2381 = vpop.f32.mrb[0].mxu0
        %2382 = vmatprep.mubr.f32.mxu0 0.0
        %2383 = vmatmul.mubr.f32.gmra.mrb[0].mxu0 %v2166
        %v2384 = vpop.f32.mrb[0].mxu0
        %v2385 = vadd.f32 0.0, %v2384
        %v2386 = vpop.f32.mrb[0].mxu0
        %2387 = vmatprep.mubr.f32.mxu0 0.0
        %2388 = vmatmul.mubr.f32.gmra.mrb[0].mxu0 %v2169
        %v2389 = vpop.f32.mrb[0].mxu0
        %v2390 = vadd.f32 0.0, %v2389
        %v2391 = vpop.f32.mrb[0].mxu0
        %2392 = vmatprep.mubr.f32.mxu0 0.0
        %2393 = vmatmul.mubr.f32.gmra.mrb[0].mxu0 %v2172
        %v2394 = vpop.f32.mrb[0].mxu0
        %v2395 = vadd.f32 0.0, %v2394
        %v2396 = vpop.f32.mrb[0].mxu0
        %2397 = vmatprep.mubr.f32.mxu0 0.0
        %2398 = vmatmul.mubr.f32.gmra.mrb[0].mxu0 %v2175
        %v2399 = vpop.f32.mrb[0].mxu0
        %v2400 = vadd.f32 0.0, %v2399
        %v2401 = vpop.f32.mrb[0].mxu0
        %2402 = vmatprep.mubr.f32.mxu0 0.0
        %2403 = vmatmul.mubr.f32.gmra.mrb[0].mxu0 %v2178
        %v2404 = vpop.f32.mrb[0].mxu0
        %v2405 = vadd.f32 0.0, %v2404
        %v2406 = vpop.f32.mrb[0].mxu0
        %2407 = vdwg.mxu0
        %v2408 = vadd.f32 %v2018, %v2250
        %v2409 = vadd.f32 %v2019, %v2255
        %v2410 = vadd.f32 %v2020, %v2260
        %v2411 = vadd.f32 %v2021, %v2265
        %v2412 = vadd.f32 %v2022, %v2270
        %v2413 = vadd.f32 %v2023, %v2275
        %v2414 = vadd.f32 %v2024, %v2280
        %v2415 = vadd.f32 %v2025, %v2285
        %v2416 = vadd.f32 %v2026, %v2290
        %v2417 = vadd.f32 %v2027, %v2295
        %v2418 = vadd.f32 %v2028, %v2300
        %v2419 = vadd.f32 %v2029, %v2305
        %v2420 = vadd.f32 %v2030, %v2310
        %v2421 = vadd.f32 %v2031, %v2315
        %v2422 = vadd.f32 %v2032, %v2320
        %v2423 = vadd.f32 %v2033, %v2325
        %v2424 = vadd.f32 %v2034, %v2330
        %v2425 = vadd.f32 %v2035, %v2335
        %v2426 = vadd.f32 %v2036, %v2340
        %v2427 = vadd.f32 %v2037, %v2345
        %v2428 = vadd.f32 %v2038, %v2350
        %v2429 = vadd.f32 %v2039, %v2355
        %v2430 = vadd.f32 %v2040, %v2360
        %v2431 = vadd.f32 %v2041, %v2365
        %v2432 = vadd.f32 %v2042, %v2370
        %v2433 = vadd.f32 %v2043, %v2375
        %v2434 = vadd.f32 %v2044, %v2380
        %v2435 = vadd.f32 %v2045, %v2385
        %v2436 = vadd.f32 %v2046, %v2390
        %v2437 = vadd.f32 %v2047, %v2395
        %v2438 = vadd.f32 %v2048, %v2400
        %v2439 = vadd.f32 %v2049, %v2405
        %s2440 = sadd.s32 %s157, 2
        %s2441 = smul.u32 %s2440, 24
        %s2442 = scalar_lea.vmem %s155, %s2441
        %v2443 = vld [vmem:[%s2442] sm:$0xff]
        %v2444 = vld [vmem:[%s2442 + $0x8] sm:$0xff]
        %v2445 = vld [vmem:[%s2442 + $0x18] sm:$0xff]
        %v2446 = vld [vmem:[%s2442 + $0x20] sm:$0xff]
        %v2447 = vld [vmem:[%s2442 + $0x30] sm:$0xff]
        %v2448 = vld [vmem:[%s2442 + $0x38] sm:$0xff]
        %v2449 = vld [vmem:[%s2442 + $0x48] sm:$0xff]
        %v2450 = vld [vmem:[%s2442 + $0x50] sm:$0xff]
        %v2451 = vld [vmem:[%s2442 + $0x60] sm:$0xff]
        %v2452 = vld [vmem:[%s2442 + $0x68] sm:$0xff]
        %v2453 = vld [vmem:[%s2442 + $0x78] sm:$0xff]
        %v2454 = vld [vmem:[%s2442 + $0x80] sm:$0xff]
        %v2455 = vld [vmem:[%s2442 + $0x90] sm:$0xff]
        %v2456 = vld [vmem:[%s2442 + $0x98] sm:$0xff]
        %v2457 = vld [vmem:[%s2442 + $0xa8] sm:$0xff]
        %v2458 = vld [vmem:[%s2442 + $0xb0] sm:$0xff]
        %v2459 = vld [vmem:[%s2442 + $0xc0] sm:$0xff]
        %v2460 = vld [vmem:[%s2442 + $0xc8] sm:$0xff]
        %v2461 = vld [vmem:[%s2442 + $0xd8] sm:$0xff]
        %v2462 = vld [vmem:[%s2442 + $0xe0] sm:$0xff]
        %v2463 = vld [vmem:[%s2442 + $0xf0] sm:$0xff]
        %v2464 = vld [vmem:[%s2442 + $0xf8] sm:$0xff]
        %v2465 = vld [vmem:[%s2442 + $0x108] sm:$0xff]
        %v2466 = vld [vmem:[%s2442 + $0x110] sm:$0xff]
        %v2467 = vld [vmem:[%s2442 + $0x120] sm:$0xff]
        %v2468 = vld [vmem:[%s2442 + $0x128] sm:$0xff]
        %v2469 = vld [vmem:[%s2442 + $0x138] sm:$0xff]
        %v2470 = vld [vmem:[%s2442 + $0x140] sm:$0xff]
        %v2471 = vld [vmem:[%s2442 + $0x150] sm:$0xff]
        %v2472 = vld [vmem:[%s2442 + $0x158] sm:$0xff]
        %v2473 = vld [vmem:[%s2442 + $0x168] sm:$0xff]
        %v2474 = vld [vmem:[%s2442 + $0x170] sm:$0xff]
        %s2475 = scalar_lea.vmem %s1, 24
        %v2476 = vld [vmem:[%s2475] sm:$0xf]
        %v2478 = vsel %vm227, %v2443, 0
        %v2481 = vsel %vm227, %v2444, 0
        %v2484 = vsel %vm227, %v2445, 0
        %v2487 = vsel %vm227, %v2446, 0
        %v2490 = vsel %vm227, %v2447, 0
        %v2493 = vsel %vm227, %v2448, 0
        %v2496 = vsel %vm227, %v2449, 0
        %v2499 = vsel %vm227, %v2450, 0
        %v2502 = vsel %vm227, %v2451, 0
        %v2505 = vsel %vm227, %v2452, 0
        %v2508 = vsel %vm227, %v2453, 0
        %v2511 = vsel %vm227, %v2454, 0
        %v2514 = vsel %vm227, %v2455, 0
        %v2517 = vsel %vm227, %v2456, 0
        %v2520 = vsel %vm227, %v2457, 0
        %v2523 = vsel %vm227, %v2458, 0
        %v2526 = vsel %vm227, %v2459, 0
        %v2529 = vsel %vm227, %v2460, 0
        %v2532 = vsel %vm227, %v2461, 0
        %v2535 = vsel %vm227, %v2462, 0
        %v2538 = vsel %vm227, %v2463, 0
        %v2541 = vsel %vm227, %v2464, 0
        %v2544 = vsel %vm227, %v2465, 0
        %v2547 = vsel %vm227, %v2466, 0
        %v2550 = vsel %vm227, %v2467, 0
        %v2553 = vsel %vm227, %v2468, 0
        %v2556 = vsel %vm227, %v2469, 0
        %v2559 = vsel %vm227, %v2470, 0
        %v2562 = vsel %vm227, %v2471, 0
        %v2565 = vsel %vm227, %v2472, 0
        %v2568 = vsel %vm227, %v2473, 0
        %v2571 = vsel %vm227, %v2474, 0
        %v2574 = vsel %vm324, %v2476, 0
        %2576 = vmatprep.subr.mxu0 0.0
        %2577 = vmatpush1.msra.mxu0 %v2574
        %2578 = vmatprep.subr.mxu0 0.0
        %2579 = vmatpush1.msra.mxu0 0.0
        %2580 = vmatprep.subr.mxu0 0.0
        %2581 = vmatpush1.msra.mxu0 0.0
        %2582 = vmatprep.subr.mxu0 0.0
        %2583 = vmatpush1.msra.mxu0 0.0
        %2584 = vmatprep.subr.mxu0 0.0
        %2585 = vmatpush1.msra.mxu0 0.0
        %2586 = vmatprep.subr.mxu0 0.0
        %2587 = vmatpush1.msra.mxu0 0.0
        %2588 = vmatprep.subr.mxu0 0.0
        %2589 = vmatpush1.msra.mxu0 0.0
        %2590 = vmatprep.subr.mxu0 0.0
        %2591 = vmatpush1.msra.mxu0 0.0
        %2592 = vmatprep.subr.mxu0 0.0
        %2593 = vmatpush1.msra.mxu0 0.0
        %2594 = vmatprep.subr.mxu0 0.0
        %2595 = vmatpush1.msra.mxu0 0.0
        %2596 = vmatprep.subr.mxu0 0.0
        %2597 = vmatpush1.msra.mxu0 0.0
        %2598 = vmatprep.subr.mxu0 0.0
        %2599 = vmatpush1.msra.mxu0 0.0
        %2600 = vmatprep.subr.mxu0 0.0
        %2601 = vmatpush1.msra.mxu0 0.0
        %2602 = vmatprep.subr.mxu0 0.0
        %2603 = vmatpush1.msra.mxu0 0.0
        %2604 = vmatprep.subr.mxu0 0.0
        %2605 = vmatpush1.msra.mxu0 0.0
        %2606 = vmatprep.subr.mxu0 0.0
        %2607 = vmatpush1.msra.mxu0 0.0
        %2608 = vmatprep.subr.mxu0 0.0
        %2609 = vmatpush1.msra.mxu0 0.0
        %2610 = vmatprep.subr.mxu0 0.0
        %2611 = vmatpush1.msra.mxu0 0.0
        %2612 = vmatprep.subr.mxu0 0.0
        %2613 = vmatpush1.msra.mxu0 0.0
        %2614 = vmatprep.subr.mxu0 0.0
        %2615 = vmatpush1.msra.mxu0 0.0
        %2616 = vmatprep.subr.mxu0 0.0
        %2617 = vmatpush1.msra.mxu0 0.0
        %2618 = vmatprep.subr.mxu0 0.0
        %2619 = vmatpush1.msra.mxu0 0.0
        %2620 = vmatprep.subr.mxu0 0.0
        %2621 = vmatpush1.msra.mxu0 0.0
        %2622 = vmatprep.subr.mxu0 0.0
        %2623 = vmatpush1.msra.mxu0 0.0
        %2624 = vmatprep.subr.mxu0 0.0
        %2625 = vmatpush1.msra.mxu0 0.0
        %2626 = vmatprep.subr.mxu0 0.0
        %2627 = vmatpush1.msra.mxu0 0.0
        %2628 = vmatprep.subr.mxu0 0.0
        %2629 = vmatpush1.msra.mxu0 0.0
        %2630 = vmatprep.subr.mxu0 0.0
        %2631 = vmatpush1.msra.mxu0 0.0
        %2632 = vmatprep.subr.mxu0 0.0
        %2633 = vmatpush1.msra.mxu0 0.0
        %2634 = vmatprep.subr.mxu0 0.0
        %2635 = vmatpush1.msra.mxu0 0.0
        %2636 = vmatprep.subr.mxu0 0.0
        %2637 = vmatpush1.msra.mxu0 0.0
        %2638 = vmatprep.subr.mxu0 0.0
        %2639 = vmatpush1.msra.mxu0 0.0
        %2640 = vmatprep.mubr.f32.mxu0 0.0
        %2641 = vmatmul.mubr.f32.gmra.mrb[0].mxu0 %v2478
        %v2642 = vpop.f32.mrb[0].mxu0
        %v2643 = vadd.f32 0.0, %v2642
        %v2644 = vpop.f32.mrb[0].mxu0
        %2645 = vmatprep.mubr.f32.mxu0 0.0
        %2646 = vmatmul.mubr.f32.gmra.mrb[0].mxu0 %v2481
        %v2647 = vpop.f32.mrb[0].mxu0
        %v2648 = vadd.f32 0.0, %v2647
        %v2649 = vpop.f32.mrb[0].mxu0
        %2650 = vmatprep.mubr.f32.mxu0 0.0
        %2651 = vmatmul.mubr.f32.gmra.mrb[0].mxu0 %v2484
        %v2652 = vpop.f32.mrb[0].mxu0
        %v2653 = vadd.f32 0.0, %v2652
        %v2654 = vpop.f32.mrb[0].mxu0
        %2655 = vmatprep.mubr.f32.mxu0 0.0
        %2656 = vmatmul.mubr.f32.gmra.mrb[0].mxu0 %v2487
        %v2657 = vpop.f32.mrb[0].mxu0
        %v2658 = vadd.f32 0.0, %v2657
        %v2659 = vpop.f32.mrb[0].mxu0
        %2660 = vmatprep.mubr.f32.mxu0 0.0
        %2661 = vmatmul.mubr.f32.gmra.mrb[0].mxu0 %v2490
        %v2662 = vpop.f32.mrb[0].mxu0
        %v2663 = vadd.f32 0.0, %v2662
        %v2664 = vpop.f32.mrb[0].mxu0
        %2665 = vmatprep.mubr.f32.mxu0 0.0
        %2666 = vmatmul.mubr.f32.gmra.mrb[0].mxu0 %v2493
        %v2667 = vpop.f32.mrb[0].mxu0
        %v2668 = vadd.f32 0.0, %v2667
        %v2669 = vpop.f32.mrb[0].mxu0
        %2670 = vmatprep.mubr.f32.mxu0 0.0
        %2671 = vmatmul.mubr.f32.gmra.mrb[0].mxu0 %v2496
        %v2672 = vpop.f32.mrb[0].mxu0
        %v2673 = vadd.f32 0.0, %v2672
        %v2674 = vpop.f32.mrb[0].mxu0
        %2675 = vmatprep.mubr.f32.mxu0 0.0
        %2676 = vmatmul.mubr.f32.gmra.mrb[0].mxu0 %v2499
        %v2677 = vpop.f32.mrb[0].mxu0
        %v2678 = vadd.f32 0.0, %v2677
        %v2679 = vpop.f32.mrb[0].mxu0
        %2680 = vmatprep.mubr.f32.mxu0 0.0
        %2681 = vmatmul.mubr.f32.gmra.mrb[0].mxu0 %v2502
        %v2682 = vpop.f32.mrb[0].mxu0
        %v2683 = vadd.f32 0.0, %v2682
        %v2684 = vpop.f32.mrb[0].mxu0
        %2685 = vmatprep.mubr.f32.mxu0 0.0
        %2686 = vmatmul.mubr.f32.gmra.mrb[0].mxu0 %v2505
        %v2687 = vpop.f32.mrb[0].mxu0
        %v2688 = vadd.f32 0.0, %v2687
        %v2689 = vpop.f32.mrb[0].mxu0
        %2690 = vmatprep.mubr.f32.mxu0 0.0
        %2691 = vmatmul.mubr.f32.gmra.mrb[0].mxu0 %v2508
        %v2692 = vpop.f32.mrb[0].mxu0
        %v2693 = vadd.f32 0.0, %v2692
        %v2694 = vpop.f32.mrb[0].mxu0
        %2695 = vmatprep.mubr.f32.mxu0 0.0
        %2696 = vmatmul.mubr.f32.gmra.mrb[0].mxu0 %v2511
        %v2697 = vpop.f32.mrb[0].mxu0
        %v2698 = vadd.f32 0.0, %v2697
        %v2699 = vpop.f32.mrb[0].mxu0
        %2700 = vmatprep.mubr.f32.mxu0 0.0
        %2701 = vmatmul.mubr.f32.gmra.mrb[0].mxu0 %v2514
        %v2702 = vpop.f32.mrb[0].mxu0
        %v2703 = vadd.f32 0.0, %v2702
        %v2704 = vpop.f32.mrb[0].mxu0
        %2705 = vmatprep.mubr.f32.mxu0 0.0
        %2706 = vmatmul.mubr.f32.gmra.mrb[0].mxu0 %v2517
        %v2707 = vpop.f32.mrb[0].mxu0
        %v2708 = vadd.f32 0.0, %v2707
        %v2709 = vpop.f32.mrb[0].mxu0
        %2710 = vmatprep.mubr.f32.mxu0 0.0
        %2711 = vmatmul.mubr.f32.gmra.mrb[0].mxu0 %v2520
        %v2712 = vpop.f32.mrb[0].mxu0
        %v2713 = vadd.f32 0.0, %v2712
        %v2714 = vpop.f32.mrb[0].mxu0
        %2715 = vmatprep.mubr.f32.mxu0 0.0
        %2716 = vmatmul.mubr.f32.gmra.mrb[0].mxu0 %v2523
        %v2717 = vpop.f32.mrb[0].mxu0
        %v2718 = vadd.f32 0.0, %v2717
        %v2719 = vpop.f32.mrb[0].mxu0
        %2720 = vmatprep.mubr.f32.mxu0 0.0
        %2721 = vmatmul.mubr.f32.gmra.mrb[0].mxu0 %v2526
        %v2722 = vpop.f32.mrb[0].mxu0
        %v2723 = vadd.f32 0.0, %v2722
        %v2724 = vpop.f32.mrb[0].mxu0
        %2725 = vmatprep.mubr.f32.mxu0 0.0
        %2726 = vmatmul.mubr.f32.gmra.mrb[0].mxu0 %v2529
        %v2727 = vpop.f32.mrb[0].mxu0
        %v2728 = vadd.f32 0.0, %v2727
        %v2729 = vpop.f32.mrb[0].mxu0
        %2730 = vmatprep.mubr.f32.mxu0 0.0
        %2731 = vmatmul.mubr.f32.gmra.mrb[0].mxu0 %v2532
        %v2732 = vpop.f32.mrb[0].mxu0
        %v2733 = vadd.f32 0.0, %v2732
        %v2734 = vpop.f32.mrb[0].mxu0
        %2735 = vmatprep.mubr.f32.mxu0 0.0
        %2736 = vmatmul.mubr.f32.gmra.mrb[0].mxu0 %v2535
        %v2737 = vpop.f32.mrb[0].mxu0
        %v2738 = vadd.f32 0.0, %v2737
        %v2739 = vpop.f32.mrb[0].mxu0
        %2740 = vmatprep.mubr.f32.mxu0 0.0
        %2741 = vmatmul.mubr.f32.gmra.mrb[0].mxu0 %v2538
        %v2742 = vpop.f32.mrb[0].mxu0
        %v2743 = vadd.f32 0.0, %v2742
        %v2744 = vpop.f32.mrb[0].mxu0
        %2745 = vmatprep.mubr.f32.mxu0 0.0
        %2746 = vmatmul.mubr.f32.gmra.mrb[0].mxu0 %v2541
        %v2747 = vpop.f32.mrb[0].mxu0
        %v2748 = vadd.f32 0.0, %v2747
        %v2749 = vpop.f32.mrb[0].mxu0
        %2750 = vmatprep.mubr.f32.mxu0 0.0
        %2751 = vmatmul.mubr.f32.gmra.mrb[0].mxu0 %v2544
        %v2752 = vpop.f32.mrb[0].mxu0
        %v2753 = vadd.f32 0.0, %v2752
        %v2754 = vpop.f32.mrb[0].mxu0
        %2755 = vmatprep.mubr.f32.mxu0 0.0
        %2756 = vmatmul.mubr.f32.gmra.mrb[0].mxu0 %v2547
        %v2757 = vpop.f32.mrb[0].mxu0
        %v2758 = vadd.f32 0.0, %v2757
        %v2759 = vpop.f32.mrb[0].mxu0
        %2760 = vmatprep.mubr.f32.mxu0 0.0
        %2761 = vmatmul.mubr.f32.gmra.mrb[0].mxu0 %v2550
        %v2762 = vpop.f32.mrb[0].mxu0
        %v2763 = vadd.f32 0.0, %v2762
        %v2764 = vpop.f32.mrb[0].mxu0
        %2765 = vmatprep.mubr.f32.mxu0 0.0
        %2766 = vmatmul.mubr.f32.gmra.mrb[0].mxu0 %v2553
        %v2767 = vpop.f32.mrb[0].mxu0
        %v2768 = vadd.f32 0.0, %v2767
        %v2769 = vpop.f32.mrb[0].mxu0
        %2770 = vmatprep.mubr.f32.mxu0 0.0
        %2771 = vmatmul.mubr.f32.gmra.mrb[0].mxu0 %v2556
        %v2772 = vpop.f32.mrb[0].mxu0
        %v2773 = vadd.f32 0.0, %v2772
        %v2774 = vpop.f32.mrb[0].mxu0
        %2775 = vmatprep.mubr.f32.mxu0 0.0
        %2776 = vmatmul.mubr.f32.gmra.mrb[0].mxu0 %v2559
        %v2777 = vpop.f32.mrb[0].mxu0
        %v2778 = vadd.f32 0.0, %v2777
        %v2779 = vpop.f32.mrb[0].mxu0
        %2780 = vmatprep.mubr.f32.mxu0 0.0
        %2781 = vmatmul.mubr.f32.gmra.mrb[0].mxu0 %v2562
        %v2782 = vpop.f32.mrb[0].mxu0
        %v2783 = vadd.f32 0.0, %v2782
        %v2784 = vpop.f32.mrb[0].mxu0
        %2785 = vmatprep.mubr.f32.mxu0 0.0
        %2786 = vmatmul.mubr.f32.gmra.mrb[0].mxu0 %v2565
        %v2787 = vpop.f32.mrb[0].mxu0
        %v2788 = vadd.f32 0.0, %v2787
        %v2789 = vpop.f32.mrb[0].mxu0
        %2790 = vmatprep.mubr.f32.mxu0 0.0
        %2791 = vmatmul.mubr.f32.gmra.mrb[0].mxu0 %v2568
        %v2792 = vpop.f32.mrb[0].mxu0
        %v2793 = vadd.f32 0.0, %v2792
        %v2794 = vpop.f32.mrb[0].mxu0
        %2795 = vmatprep.mubr.f32.mxu0 0.0
        %2796 = vmatmul.mubr.f32.gmra.mrb[0].mxu0 %v2571
        %v2797 = vpop.f32.mrb[0].mxu0
        %v2798 = vadd.f32 0.0, %v2797
        %v2799 = vpop.f32.mrb[0].mxu0
        %2800 = vdwg.mxu0
        %v2801 = vadd.f32 %v2408, %v2643
        %v2802 = vadd.f32 %v2409, %v2648
        %v2803 = vadd.f32 %v2410, %v2653
        %v2804 = vadd.f32 %v2411, %v2658
        %v2805 = vadd.f32 %v2412, %v2663
        %v2806 = vadd.f32 %v2413, %v2668
        %v2807 = vadd.f32 %v2414, %v2673
        %v2808 = vadd.f32 %v2415, %v2678
        %v2809 = vadd.f32 %v2416, %v2683
        %v2810 = vadd.f32 %v2417, %v2688
        %v2811 = vadd.f32 %v2418, %v2693
        %v2812 = vadd.f32 %v2419, %v2698
        %v2813 = vadd.f32 %v2420, %v2703
        %v2814 = vadd.f32 %v2421, %v2708
        %v2815 = vadd.f32 %v2422, %v2713
        %v2816 = vadd.f32 %v2423, %v2718
        %v2817 = vadd.f32 %v2424, %v2723
        %v2818 = vadd.f32 %v2425, %v2728
        %v2819 = vadd.f32 %v2426, %v2733
        %v2820 = vadd.f32 %v2427, %v2738
        %v2821 = vadd.f32 %v2428, %v2743
        %v2822 = vadd.f32 %v2429, %v2748
        %v2823 = vadd.f32 %v2430, %v2753
        %v2824 = vadd.f32 %v2431, %v2758
        %v2825 = vadd.f32 %v2432, %v2763
        %v2826 = vadd.f32 %v2433, %v2768
        %v2827 = vadd.f32 %v2434, %v2773
        %v2828 = vadd.f32 %v2435, %v2778
        %v2829 = vadd.f32 %v2436, %v2783
        %v2830 = vadd.f32 %v2437, %v2788
        %v2831 = vadd.f32 %v2438, %v2793
        %v2832 = vadd.f32 %v2439, %v2798
        %v2833 = vld [vmem:[%s2442 + $0x1] sm:$0xff]
        %v2834 = vld [vmem:[%s2442 + $0x9] sm:$0xff]
        %v2835 = vld [vmem:[%s2442 + $0x19] sm:$0xff]
        %v2836 = vld [vmem:[%s2442 + $0x21] sm:$0xff]
        %v2837 = vld [vmem:[%s2442 + $0x31] sm:$0xff]
        %v2838 = vld [vmem:[%s2442 + $0x39] sm:$0xff]
        %v2839 = vld [vmem:[%s2442 + $0x49] sm:$0xff]
        %v2840 = vld [vmem:[%s2442 + $0x51] sm:$0xff]
        %v2841 = vld [vmem:[%s2442 + $0x61] sm:$0xff]
        %v2842 = vld [vmem:[%s2442 + $0x69] sm:$0xff]
        %v2843 = vld [vmem:[%s2442 + $0x79] sm:$0xff]
        %v2844 = vld [vmem:[%s2442 + $0x81] sm:$0xff]
        %v2845 = vld [vmem:[%s2442 + $0x91] sm:$0xff]
        %v2846 = vld [vmem:[%s2442 + $0x99] sm:$0xff]
        %v2847 = vld [vmem:[%s2442 + $0xa9] sm:$0xff]
        %v2848 = vld [vmem:[%s2442 + $0xb1] sm:$0xff]
        %v2849 = vld [vmem:[%s2442 + $0xc1] sm:$0xff]
        %v2850 = vld [vmem:[%s2442 + $0xc9] sm:$0xff]
        %v2851 = vld [vmem:[%s2442 + $0xd9] sm:$0xff]
        %v2852 = vld [vmem:[%s2442 + $0xe1] sm:$0xff]
        %v2853 = vld [vmem:[%s2442 + $0xf1] sm:$0xff]
        %v2854 = vld [vmem:[%s2442 + $0xf9] sm:$0xff]
        %v2855 = vld [vmem:[%s2442 + $0x109] sm:$0xff]
        %v2856 = vld [vmem:[%s2442 + $0x111] sm:$0xff]
        %v2857 = vld [vmem:[%s2442 + $0x121] sm:$0xff]
        %v2858 = vld [vmem:[%s2442 + $0x129] sm:$0xff]
        %v2859 = vld [vmem:[%s2442 + $0x139] sm:$0xff]
        %v2860 = vld [vmem:[%s2442 + $0x141] sm:$0xff]
        %v2861 = vld [vmem:[%s2442 + $0x151] sm:$0xff]
        %v2862 = vld [vmem:[%s2442 + $0x159] sm:$0xff]
        %v2863 = vld [vmem:[%s2442 + $0x169] sm:$0xff]
        %v2864 = vld [vmem:[%s2442 + $0x171] sm:$0xff]
        %s2865 = scalar_lea.vmem %s1, 28
        %v2866 = vld [vmem:[%s2865] sm:$0xf]
        %v2868 = vsel %vm227, %v2833, 0
        %v2871 = vsel %vm227, %v2834, 0
        %v2874 = vsel %vm227, %v2835, 0
        %v2877 = vsel %vm227, %v2836, 0
        %v2880 = vsel %vm227, %v2837, 0
        %v2883 = vsel %vm227, %v2838, 0
        %v2886 = vsel %vm227, %v2839, 0
        %v2889 = vsel %vm227, %v2840, 0
        %v2892 = vsel %vm227, %v2841, 0
        %v2895 = vsel %vm227, %v2842, 0
        %v2898 = vsel %vm227, %v2843, 0
        %v2901 = vsel %vm227, %v2844, 0
        %v2904 = vsel %vm227, %v2845, 0
        %v2907 = vsel %vm227, %v2846, 0
        %v2910 = vsel %vm227, %v2847, 0
        %v2913 = vsel %vm227, %v2848, 0
        %v2916 = vsel %vm227, %v2849, 0
        %v2919 = vsel %vm227, %v2850, 0
        %v2922 = vsel %vm227, %v2851, 0
        %v2925 = vsel %vm227, %v2852, 0
        %v2928 = vsel %vm227, %v2853, 0
        %v2931 = vsel %vm227, %v2854, 0
        %v2934 = vsel %vm227, %v2855, 0
        %v2937 = vsel %vm227, %v2856, 0
        %v2940 = vsel %vm227, %v2857, 0
        %v2943 = vsel %vm227, %v2858, 0
        %v2946 = vsel %vm227, %v2859, 0
        %v2949 = vsel %vm227, %v2860, 0
        %v2952 = vsel %vm227, %v2861, 0
        %v2955 = vsel %vm227, %v2862, 0
        %v2958 = vsel %vm227, %v2863, 0
        %v2961 = vsel %vm227, %v2864, 0
        %v2964 = vsel %vm324, %v2866, 0
        %2966 = vmatprep.subr.mxu0 0.0
        %2967 = vmatpush1.msra.mxu0 %v2964
        %2968 = vmatprep.subr.mxu0 0.0
        %2969 = vmatpush1.msra.mxu0 0.0
        %2970 = vmatprep.subr.mxu0 0.0
        %2971 = vmatpush1.msra.mxu0 0.0
        %2972 = vmatprep.subr.mxu0 0.0
        %2973 = vmatpush1.msra.mxu0 0.0
        %2974 = vmatprep.subr.mxu0 0.0
        %2975 = vmatpush1.msra.mxu0 0.0
        %2976 = vmatprep.subr.mxu0 0.0
        %2977 = vmatpush1.msra.mxu0 0.0
        %2978 = vmatprep.subr.mxu0 0.0
        %2979 = vmatpush1.msra.mxu0 0.0
        %2980 = vmatprep.subr.mxu0 0.0
        %2981 = vmatpush1.msra.mxu0 0.0
        %2982 = vmatprep.subr.mxu0 0.0
        %2983 = vmatpush1.msra.mxu0 0.0
        %2984 = vmatprep.subr.mxu0 0.0
        %2985 = vmatpush1.msra.mxu0 0.0
        %2986 = vmatprep.subr.mxu0 0.0
        %2987 = vmatpush1.msra.mxu0 0.0
        %2988 = vmatprep.subr.mxu0 0.0
        %2989 = vmatpush1.msra.mxu0 0.0
        %2990 = vmatprep.subr.mxu0 0.0
        %2991 = vmatpush1.msra.mxu0 0.0
        %2992 = vmatprep.subr.mxu0 0.0
        %2993 = vmatpush1.msra.mxu0 0.0
        %2994 = vmatprep.subr.mxu0 0.0
        %2995 = vmatpush1.msra.mxu0 0.0
        %2996 = vmatprep.subr.mxu0 0.0
        %2997 = vmatpush1.msra.mxu0 0.0
        %2998 = vmatprep.subr.mxu0 0.0
        %2999 = vmatpush1.msra.mxu0 0.0
        %3000 = vmatprep.subr.mxu0 0.0
        %3001 = vmatpush1.msra.mxu0 0.0
        %3002 = vmatprep.subr.mxu0 0.0
        %3003 = vmatpush1.msra.mxu0 0.0
        %3004 = vmatprep.subr.mxu0 0.0
        %3005 = vmatpush1.msra.mxu0 0.0
        %3006 = vmatprep.subr.mxu0 0.0
        %3007 = vmatpush1.msra.mxu0 0.0
        %3008 = vmatprep.subr.mxu0 0.0
        %3009 = vmatpush1.msra.mxu0 0.0
        %3010 = vmatprep.subr.mxu0 0.0
        %3011 = vmatpush1.msra.mxu0 0.0
        %3012 = vmatprep.subr.mxu0 0.0
        %3013 = vmatpush1.msra.mxu0 0.0
        %3014 = vmatprep.subr.mxu0 0.0
        %3015 = vmatpush1.msra.mxu0 0.0
        %3016 = vmatprep.subr.mxu0 0.0
        %3017 = vmatpush1.msra.mxu0 0.0
        %3018 = vmatprep.subr.mxu0 0.0
        %3019 = vmatpush1.msra.mxu0 0.0
        %3020 = vmatprep.subr.mxu0 0.0
        %3021 = vmatpush1.msra.mxu0 0.0
        %3022 = vmatprep.subr.mxu0 0.0
        %3023 = vmatpush1.msra.mxu0 0.0
        %3024 = vmatprep.subr.mxu0 0.0
        %3025 = vmatpush1.msra.mxu0 0.0
        %3026 = vmatprep.subr.mxu0 0.0
        %3027 = vmatpush1.msra.mxu0 0.0
        %3028 = vmatprep.subr.mxu0 0.0
        %3029 = vmatpush1.msra.mxu0 0.0
        %3030 = vmatprep.mubr.f32.mxu0 0.0
        %3031 = vmatmul.mubr.f32.gmra.mrb[0].mxu0 %v2868
        %v3032 = vpop.f32.mrb[0].mxu0
        %v3033 = vadd.f32 0.0, %v3032
        %v3034 = vpop.f32.mrb[0].mxu0
        %3035 = vmatprep.mubr.f32.mxu0 0.0
        %3036 = vmatmul.mubr.f32.gmra.mrb[0].mxu0 %v2871
        %v3037 = vpop.f32.mrb[0].mxu0
        %v3038 = vadd.f32 0.0, %v3037
        %v3039 = vpop.f32.mrb[0].mxu0
        %3040 = vmatprep.mubr.f32.mxu0 0.0
        %3041 = vmatmul.mubr.f32.gmra.mrb[0].mxu0 %v2874
        %v3042 = vpop.f32.mrb[0].mxu0
        %v3043 = vadd.f32 0.0, %v3042
        %v3044 = vpop.f32.mrb[0].mxu0
        %3045 = vmatprep.mubr.f32.mxu0 0.0
        %3046 = vmatmul.mubr.f32.gmra.mrb[0].mxu0 %v2877
        %v3047 = vpop.f32.mrb[0].mxu0
        %v3048 = vadd.f32 0.0, %v3047
        %v3049 = vpop.f32.mrb[0].mxu0
        %3050 = vmatprep.mubr.f32.mxu0 0.0
        %3051 = vmatmul.mubr.f32.gmra.mrb[0].mxu0 %v2880
        %v3052 = vpop.f32.mrb[0].mxu0
        %v3053 = vadd.f32 0.0, %v3052
        %v3054 = vpop.f32.mrb[0].mxu0
        %3055 = vmatprep.mubr.f32.mxu0 0.0
        %3056 = vmatmul.mubr.f32.gmra.mrb[0].mxu0 %v2883
        %v3057 = vpop.f32.mrb[0].mxu0
        %v3058 = vadd.f32 0.0, %v3057
        %v3059 = vpop.f32.mrb[0].mxu0
        %3060 = vmatprep.mubr.f32.mxu0 0.0
        %3061 = vmatmul.mubr.f32.gmra.mrb[0].mxu0 %v2886
        %v3062 = vpop.f32.mrb[0].mxu0
        %v3063 = vadd.f32 0.0, %v3062
        %v3064 = vpop.f32.mrb[0].mxu0
        %3065 = vmatprep.mubr.f32.mxu0 0.0
        %3066 = vmatmul.mubr.f32.gmra.mrb[0].mxu0 %v2889
        %v3067 = vpop.f32.mrb[0].mxu0
        %v3068 = vadd.f32 0.0, %v3067
        %v3069 = vpop.f32.mrb[0].mxu0
        %3070 = vmatprep.mubr.f32.mxu0 0.0
        %3071 = vmatmul.mubr.f32.gmra.mrb[0].mxu0 %v2892
        %v3072 = vpop.f32.mrb[0].mxu0
        %v3073 = vadd.f32 0.0, %v3072
        %v3074 = vpop.f32.mrb[0].mxu0
        %3075 = vmatprep.mubr.f32.mxu0 0.0
        %3076 = vmatmul.mubr.f32.gmra.mrb[0].mxu0 %v2895
        %v3077 = vpop.f32.mrb[0].mxu0
        %v3078 = vadd.f32 0.0, %v3077
        %v3079 = vpop.f32.mrb[0].mxu0
        %3080 = vmatprep.mubr.f32.mxu0 0.0
        %3081 = vmatmul.mubr.f32.gmra.mrb[0].mxu0 %v2898
        %v3082 = vpop.f32.mrb[0].mxu0
        %v3083 = vadd.f32 0.0, %v3082
        %v3084 = vpop.f32.mrb[0].mxu0
        %3085 = vmatprep.mubr.f32.mxu0 0.0
        %3086 = vmatmul.mubr.f32.gmra.mrb[0].mxu0 %v2901
        %v3087 = vpop.f32.mrb[0].mxu0
        %v3088 = vadd.f32 0.0, %v3087
        %v3089 = vpop.f32.mrb[0].mxu0
        %3090 = vmatprep.mubr.f32.mxu0 0.0
        %3091 = vmatmul.mubr.f32.gmra.mrb[0].mxu0 %v2904
        %v3092 = vpop.f32.mrb[0].mxu0
        %v3093 = vadd.f32 0.0, %v3092
        %v3094 = vpop.f32.mrb[0].mxu0
        %3095 = vmatprep.mubr.f32.mxu0 0.0
        %3096 = vmatmul.mubr.f32.gmra.mrb[0].mxu0 %v2907
        %v3097 = vpop.f32.mrb[0].mxu0
        %v3098 = vadd.f32 0.0, %v3097
        %v3099 = vpop.f32.mrb[0].mxu0
        %3100 = vmatprep.mubr.f32.mxu0 0.0
        %3101 = vmatmul.mubr.f32.gmra.mrb[0].mxu0 %v2910
        %v3102 = vpop.f32.mrb[0].mxu0
        %v3103 = vadd.f32 0.0, %v3102
        %v3104 = vpop.f32.mrb[0].mxu0
        %3105 = vmatprep.mubr.f32.mxu0 0.0
        %3106 = vmatmul.mubr.f32.gmra.mrb[0].mxu0 %v2913
        %v3107 = vpop.f32.mrb[0].mxu0
        %v3108 = vadd.f32 0.0, %v3107
        %v3109 = vpop.f32.mrb[0].mxu0
        %3110 = vmatprep.mubr.f32.mxu0 0.0
        %3111 = vmatmul.mubr.f32.gmra.mrb[0].mxu0 %v2916
        %v3112 = vpop.f32.mrb[0].mxu0
        %v3113 = vadd.f32 0.0, %v3112
        %v3114 = vpop.f32.mrb[0].mxu0
        %3115 = vmatprep.mubr.f32.mxu0 0.0
        %3116 = vmatmul.mubr.f32.gmra.mrb[0].mxu0 %v2919
        %v3117 = vpop.f32.mrb[0].mxu0
        %v3118 = vadd.f32 0.0, %v3117
        %v3119 = vpop.f32.mrb[0].mxu0
        %3120 = vmatprep.mubr.f32.mxu0 0.0
        %3121 = vmatmul.mubr.f32.gmra.mrb[0].mxu0 %v2922
        %v3122 = vpop.f32.mrb[0].mxu0
        %v3123 = vadd.f32 0.0, %v3122
        %v3124 = vpop.f32.mrb[0].mxu0
        %3125 = vmatprep.mubr.f32.mxu0 0.0
        %3126 = vmatmul.mubr.f32.gmra.mrb[0].mxu0 %v2925
        %v3127 = vpop.f32.mrb[0].mxu0
        %v3128 = vadd.f32 0.0, %v3127
        %v3129 = vpop.f32.mrb[0].mxu0
        %3130 = vmatprep.mubr.f32.mxu0 0.0
        %3131 = vmatmul.mubr.f32.gmra.mrb[0].mxu0 %v2928
        %v3132 = vpop.f32.mrb[0].mxu0
        %v3133 = vadd.f32 0.0, %v3132
        %v3134 = vpop.f32.mrb[0].mxu0
        %3135 = vmatprep.mubr.f32.mxu0 0.0
        %3136 = vmatmul.mubr.f32.gmra.mrb[0].mxu0 %v2931
        %v3137 = vpop.f32.mrb[0].mxu0
        %v3138 = vadd.f32 0.0, %v3137
        %v3139 = vpop.f32.mrb[0].mxu0
        %3140 = vmatprep.mubr.f32.mxu0 0.0
        %3141 = vmatmul.mubr.f32.gmra.mrb[0].mxu0 %v2934
        %v3142 = vpop.f32.mrb[0].mxu0
        %v3143 = vadd.f32 0.0, %v3142
        %v3144 = vpop.f32.mrb[0].mxu0
        %3145 = vmatprep.mubr.f32.mxu0 0.0
        %3146 = vmatmul.mubr.f32.gmra.mrb[0].mxu0 %v2937
        %v3147 = vpop.f32.mrb[0].mxu0
        %v3148 = vadd.f32 0.0, %v3147
        %v3149 = vpop.f32.mrb[0].mxu0
        %3150 = vmatprep.mubr.f32.mxu0 0.0
        %3151 = vmatmul.mubr.f32.gmra.mrb[0].mxu0 %v2940
        %v3152 = vpop.f32.mrb[0].mxu0
        %v3153 = vadd.f32 0.0, %v3152
        %v3154 = vpop.f32.mrb[0].mxu0
        %3155 = vmatprep.mubr.f32.mxu0 0.0
        %3156 = vmatmul.mubr.f32.gmra.mrb[0].mxu0 %v2943
        %v3157 = vpop.f32.mrb[0].mxu0
        %v3158 = vadd.f32 0.0, %v3157
        %v3159 = vpop.f32.mrb[0].mxu0
        %3160 = vmatprep.mubr.f32.mxu0 0.0
        %3161 = vmatmul.mubr.f32.gmra.mrb[0].mxu0 %v2946
        %v3162 = vpop.f32.mrb[0].mxu0
        %v3163 = vadd.f32 0.0, %v3162
        %v3164 = vpop.f32.mrb[0].mxu0
        %3165 = vmatprep.mubr.f32.mxu0 0.0
        %3166 = vmatmul.mubr.f32.gmra.mrb[0].mxu0 %v2949
        %v3167 = vpop.f32.mrb[0].mxu0
        %v3168 = vadd.f32 0.0, %v3167
        %v3169 = vpop.f32.mrb[0].mxu0
        %3170 = vmatprep.mubr.f32.mxu0 0.0
        %3171 = vmatmul.mubr.f32.gmra.mrb[0].mxu0 %v2952
        %v3172 = vpop.f32.mrb[0].mxu0
        %v3173 = vadd.f32 0.0, %v3172
        %v3174 = vpop.f32.mrb[0].mxu0
        %3175 = vmatprep.mubr.f32.mxu0 0.0
        %3176 = vmatmul.mubr.f32.gmra.mrb[0].mxu0 %v2955
        %v3177 = vpop.f32.mrb[0].mxu0
        %v3178 = vadd.f32 0.0, %v3177
        %v3179 = vpop.f32.mrb[0].mxu0
        %3180 = vmatprep.mubr.f32.mxu0 0.0
        %3181 = vmatmul.mubr.f32.gmra.mrb[0].mxu0 %v2958
        %v3182 = vpop.f32.mrb[0].mxu0
        %v3183 = vadd.f32 0.0, %v3182
        %v3184 = vpop.f32.mrb[0].mxu0
        %3185 = vmatprep.mubr.f32.mxu0 0.0
        %3186 = vmatmul.mubr.f32.gmra.mrb[0].mxu0 %v2961
        %v3187 = vpop.f32.mrb[0].mxu0
        %v3188 = vadd.f32 0.0, %v3187
        %v3189 = vpop.f32.mrb[0].mxu0
        %3190 = vdwg.mxu0
        %v3191 = vadd.f32 %v2801, %v3033
        %v3192 = vadd.f32 %v2802, %v3038
        %v3193 = vadd.f32 %v2803, %v3043
        %v3194 = vadd.f32 %v2804, %v3048
        %v3195 = vadd.f32 %v2805, %v3053
        %v3196 = vadd.f32 %v2806, %v3058
        %v3197 = vadd.f32 %v2807, %v3063
        %v3198 = vadd.f32 %v2808, %v3068
        %v3199 = vadd.f32 %v2809, %v3073
        %v3200 = vadd.f32 %v2810, %v3078
        %v3201 = vadd.f32 %v2811, %v3083
        %v3202 = vadd.f32 %v2812, %v3088
        %v3203 = vadd.f32 %v2813, %v3093
        %v3204 = vadd.f32 %v2814, %v3098
        %v3205 = vadd.f32 %v2815, %v3103
        %v3206 = vadd.f32 %v2816, %v3108
        %v3207 = vadd.f32 %v2817, %v3113
        %v3208 = vadd.f32 %v2818, %v3118
        %v3209 = vadd.f32 %v2819, %v3123
        %v3210 = vadd.f32 %v2820, %v3128
        %v3211 = vadd.f32 %v2821, %v3133
        %v3212 = vadd.f32 %v2822, %v3138
        %v3213 = vadd.f32 %v2823, %v3143
        %v3214 = vadd.f32 %v2824, %v3148
        %v3215 = vadd.f32 %v2825, %v3153
        %v3216 = vadd.f32 %v2826, %v3158
        %v3217 = vadd.f32 %v2827, %v3163
        %v3218 = vadd.f32 %v2828, %v3168
        %v3219 = vadd.f32 %v2829, %v3173
        %v3220 = vadd.f32 %v2830, %v3178
        %v3221 = vadd.f32 %v2831, %v3183
        %v3222 = vadd.f32 %v2832, %v3188
        %v3223 = vld [vmem:[%s2442 + $0x2] sm:$0xff]
        %v3224 = vld [vmem:[%s2442 + $0xa] sm:$0xff]
        %v3225 = vld [vmem:[%s2442 + $0x1a] sm:$0xff]
        %v3226 = vld [vmem:[%s2442 + $0x22] sm:$0xff]
        %v3227 = vld [vmem:[%s2442 + $0x32] sm:$0xff]
        %v3228 = vld [vmem:[%s2442 + $0x3a] sm:$0xff]
        %v3229 = vld [vmem:[%s2442 + $0x4a] sm:$0xff]
        %v3230 = vld [vmem:[%s2442 + $0x52] sm:$0xff]
        %v3231 = vld [vmem:[%s2442 + $0x62] sm:$0xff]
        %v3232 = vld [vmem:[%s2442 + $0x6a] sm:$0xff]
        %v3233 = vld [vmem:[%s2442 + $0x7a] sm:$0xff]
        %v3234 = vld [vmem:[%s2442 + $0x82] sm:$0xff]
        %v3235 = vld [vmem:[%s2442 + $0x92] sm:$0xff]
        %v3236 = vld [vmem:[%s2442 + $0x9a] sm:$0xff]
        %v3237 = vld [vmem:[%s2442 + $0xaa] sm:$0xff]
        %v3238 = vld [vmem:[%s2442 + $0xb2] sm:$0xff]
        %v3239 = vld [vmem:[%s2442 + $0xc2] sm:$0xff]
        %v3240 = vld [vmem:[%s2442 + $0xca] sm:$0xff]
        %v3241 = vld [vmem:[%s2442 + $0xda] sm:$0xff]
        %v3242 = vld [vmem:[%s2442 + $0xe2] sm:$0xff]
        %v3243 = vld [vmem:[%s2442 + $0xf2] sm:$0xff]
        %v3244 = vld [vmem:[%s2442 + $0xfa] sm:$0xff]
        %v3245 = vld [vmem:[%s2442 + $0x10a] sm:$0xff]
        %v3246 = vld [vmem:[%s2442 + $0x112] sm:$0xff]
        %v3247 = vld [vmem:[%s2442 + $0x122] sm:$0xff]
        %v3248 = vld [vmem:[%s2442 + $0x12a] sm:$0xff]
        %v3249 = vld [vmem:[%s2442 + $0x13a] sm:$0xff]
        %v3250 = vld [vmem:[%s2442 + $0x142] sm:$0xff]
        %v3251 = vld [vmem:[%s2442 + $0x152] sm:$0xff]
        %v3252 = vld [vmem:[%s2442 + $0x15a] sm:$0xff]
        %v3253 = vld [vmem:[%s2442 + $0x16a] sm:$0xff]
        %v3254 = vld [vmem:[%s2442 + $0x172] sm:$0xff]
        %s3255 = scalar_lea.vmem %s1, 32
        %v3256 = vld [vmem:[%s3255] sm:$0xf]
        %v3258 = vsel %vm227, %v3223, 0
        %v3261 = vsel %vm227, %v3224, 0
        %v3264 = vsel %vm227, %v3225, 0
        %v3267 = vsel %vm227, %v3226, 0
        %v3270 = vsel %vm227, %v3227, 0
        %v3273 = vsel %vm227, %v3228, 0
        %v3276 = vsel %vm227, %v3229, 0
        %v3279 = vsel %vm227, %v3230, 0
        %v3282 = vsel %vm227, %v3231, 0
        %v3285 = vsel %vm227, %v3232, 0
        %v3288 = vsel %vm227, %v3233, 0
        %v3291 = vsel %vm227, %v3234, 0
        %v3294 = vsel %vm227, %v3235, 0
        %v3297 = vsel %vm227, %v3236, 0
        %v3300 = vsel %vm227, %v3237, 0
        %v3303 = vsel %vm227, %v3238, 0
        %v3306 = vsel %vm227, %v3239, 0
        %v3309 = vsel %vm227, %v3240, 0
        %v3312 = vsel %vm227, %v3241, 0
        %v3315 = vsel %vm227, %v3242, 0
        %v3318 = vsel %vm227, %v3243, 0
        %v3321 = vsel %vm227, %v3244, 0
        %v3324 = vsel %vm227, %v3245, 0
        %v3327 = vsel %vm227, %v3246, 0
        %v3330 = vsel %vm227, %v3247, 0
        %v3333 = vsel %vm227, %v3248, 0
        %v3336 = vsel %vm227, %v3249, 0
        %v3339 = vsel %vm227, %v3250, 0
        %v3342 = vsel %vm227, %v3251, 0
        %v3345 = vsel %vm227, %v3252, 0
        %v3348 = vsel %vm227, %v3253, 0
        %v3351 = vsel %vm227, %v3254, 0
        %v3354 = vsel %vm324, %v3256, 0
        %3356 = vmatprep.subr.mxu0 0.0
        %3357 = vmatpush1.msra.mxu0 %v3354
        %3358 = vmatprep.subr.mxu0 0.0
        %3359 = vmatpush1.msra.mxu0 0.0
        %3360 = vmatprep.subr.mxu0 0.0
        %3361 = vmatpush1.msra.mxu0 0.0
        %3362 = vmatprep.subr.mxu0 0.0
        %3363 = vmatpush1.msra.mxu0 0.0
        %3364 = vmatprep.subr.mxu0 0.0
        %3365 = vmatpush1.msra.mxu0 0.0
        %3366 = vmatprep.subr.mxu0 0.0
        %3367 = vmatpush1.msra.mxu0 0.0
        %3368 = vmatprep.subr.mxu0 0.0
        %3369 = vmatpush1.msra.mxu0 0.0
        %3370 = vmatprep.subr.mxu0 0.0
        %3371 = vmatpush1.msra.mxu0 0.0
        %3372 = vmatprep.subr.mxu0 0.0
        %3373 = vmatpush1.msra.mxu0 0.0
        %3374 = vmatprep.subr.mxu0 0.0
        %3375 = vmatpush1.msra.mxu0 0.0
        %3376 = vmatprep.subr.mxu0 0.0
        %3377 = vmatpush1.msra.mxu0 0.0
        %3378 = vmatprep.subr.mxu0 0.0
        %3379 = vmatpush1.msra.mxu0 0.0
        %3380 = vmatprep.subr.mxu0 0.0
        %3381 = vmatpush1.msra.mxu0 0.0
        %3382 = vmatprep.subr.mxu0 0.0
        %3383 = vmatpush1.msra.mxu0 0.0
        %3384 = vmatprep.subr.mxu0 0.0
        %3385 = vmatpush1.msra.mxu0 0.0
        %3386 = vmatprep.subr.mxu0 0.0
        %3387 = vmatpush1.msra.mxu0 0.0
        %3388 = vmatprep.subr.mxu0 0.0
        %3389 = vmatpush1.msra.mxu0 0.0
        %3390 = vmatprep.subr.mxu0 0.0
        %3391 = vmatpush1.msra.mxu0 0.0
        %3392 = vmatprep.subr.mxu0 0.0
        %3393 = vmatpush1.msra.mxu0 0.0
        %3394 = vmatprep.subr.mxu0 0.0
        %3395 = vmatpush1.msra.mxu0 0.0
        %3396 = vmatprep.subr.mxu0 0.0
        %3397 = vmatpush1.msra.mxu0 0.0
        %3398 = vmatprep.subr.mxu0 0.0
        %3399 = vmatpush1.msra.mxu0 0.0
        %3400 = vmatprep.subr.mxu0 0.0
        %3401 = vmatpush1.msra.mxu0 0.0
        %3402 = vmatprep.subr.mxu0 0.0
        %3403 = vmatpush1.msra.mxu0 0.0
        %3404 = vmatprep.subr.mxu0 0.0
        %3405 = vmatpush1.msra.mxu0 0.0
        %3406 = vmatprep.subr.mxu0 0.0
        %3407 = vmatpush1.msra.mxu0 0.0
        %3408 = vmatprep.subr.mxu0 0.0
        %3409 = vmatpush1.msra.mxu0 0.0
        %3410 = vmatprep.subr.mxu0 0.0
        %3411 = vmatpush1.msra.mxu0 0.0
        %3412 = vmatprep.subr.mxu0 0.0
        %3413 = vmatpush1.msra.mxu0 0.0
        %3414 = vmatprep.subr.mxu0 0.0
        %3415 = vmatpush1.msra.mxu0 0.0
        %3416 = vmatprep.subr.mxu0 0.0
        %3417 = vmatpush1.msra.mxu0 0.0
        %3418 = vmatprep.subr.mxu0 0.0
        %3419 = vmatpush1.msra.mxu0 0.0
        %3420 = vmatprep.mubr.f32.mxu0 0.0
        %3421 = vmatmul.mubr.f32.gmra.mrb[0].mxu0 %v3258
        %v3422 = vpop.f32.mrb[0].mxu0
        %v3423 = vadd.f32 0.0, %v3422
        %v3424 = vpop.f32.mrb[0].mxu0
        %3425 = vmatprep.mubr.f32.mxu0 0.0
        %3426 = vmatmul.mubr.f32.gmra.mrb[0].mxu0 %v3261
        %v3427 = vpop.f32.mrb[0].mxu0
        %v3428 = vadd.f32 0.0, %v3427
        %v3429 = vpop.f32.mrb[0].mxu0
        %3430 = vmatprep.mubr.f32.mxu0 0.0
        %3431 = vmatmul.mubr.f32.gmra.mrb[0].mxu0 %v3264
        %v3432 = vpop.f32.mrb[0].mxu0
        %v3433 = vadd.f32 0.0, %v3432
        %v3434 = vpop.f32.mrb[0].mxu0
        %3435 = vmatprep.mubr.f32.mxu0 0.0
        %3436 = vmatmul.mubr.f32.gmra.mrb[0].mxu0 %v3267
        %v3437 = vpop.f32.mrb[0].mxu0
        %v3438 = vadd.f32 0.0, %v3437
        %v3439 = vpop.f32.mrb[0].mxu0
        %3440 = vmatprep.mubr.f32.mxu0 0.0
        %3441 = vmatmul.mubr.f32.gmra.mrb[0].mxu0 %v3270
        %v3442 = vpop.f32.mrb[0].mxu0
        %v3443 = vadd.f32 0.0, %v3442
        %v3444 = vpop.f32.mrb[0].mxu0
        %3445 = vmatprep.mubr.f32.mxu0 0.0
        %3446 = vmatmul.mubr.f32.gmra.mrb[0].mxu0 %v3273
        %v3447 = vpop.f32.mrb[0].mxu0
        %v3448 = vadd.f32 0.0, %v3447
        %v3449 = vpop.f32.mrb[0].mxu0
        %3450 = vmatprep.mubr.f32.mxu0 0.0
        %3451 = vmatmul.mubr.f32.gmra.mrb[0].mxu0 %v3276
        %v3452 = vpop.f32.mrb[0].mxu0
        %v3453 = vadd.f32 0.0, %v3452
        %v3454 = vpop.f32.mrb[0].mxu0
        %3455 = vmatprep.mubr.f32.mxu0 0.0
        %3456 = vmatmul.mubr.f32.gmra.mrb[0].mxu0 %v3279
        %v3457 = vpop.f32.mrb[0].mxu0
        %v3458 = vadd.f32 0.0, %v3457
        %v3459 = vpop.f32.mrb[0].mxu0
        %3460 = vmatprep.mubr.f32.mxu0 0.0
        %3461 = vmatmul.mubr.f32.gmra.mrb[0].mxu0 %v3282
        %v3462 = vpop.f32.mrb[0].mxu0
        %v3463 = vadd.f32 0.0, %v3462
        %v3464 = vpop.f32.mrb[0].mxu0
        %3465 = vmatprep.mubr.f32.mxu0 0.0
        %3466 = vmatmul.mubr.f32.gmra.mrb[0].mxu0 %v3285
        %v3467 = vpop.f32.mrb[0].mxu0
        %v3468 = vadd.f32 0.0, %v3467
        %v3469 = vpop.f32.mrb[0].mxu0
        %3470 = vmatprep.mubr.f32.mxu0 0.0
        %3471 = vmatmul.mubr.f32.gmra.mrb[0].mxu0 %v3288
        %v3472 = vpop.f32.mrb[0].mxu0
        %v3473 = vadd.f32 0.0, %v3472
        %v3474 = vpop.f32.mrb[0].mxu0
        %3475 = vmatprep.mubr.f32.mxu0 0.0
        %3476 = vmatmul.mubr.f32.gmra.mrb[0].mxu0 %v3291
        %v3477 = vpop.f32.mrb[0].mxu0
        %v3478 = vadd.f32 0.0, %v3477
        %v3479 = vpop.f32.mrb[0].mxu0
        %3480 = vmatprep.mubr.f32.mxu0 0.0
        %3481 = vmatmul.mubr.f32.gmra.mrb[0].mxu0 %v3294
        %v3482 = vpop.f32.mrb[0].mxu0
        %v3483 = vadd.f32 0.0, %v3482
        %v3484 = vpop.f32.mrb[0].mxu0
        %3485 = vmatprep.mubr.f32.mxu0 0.0
        %3486 = vmatmul.mubr.f32.gmra.mrb[0].mxu0 %v3297
        %v3487 = vpop.f32.mrb[0].mxu0
        %v3488 = vadd.f32 0.0, %v3487
        %v3489 = vpop.f32.mrb[0].mxu0
        %3490 = vmatprep.mubr.f32.mxu0 0.0
        %3491 = vmatmul.mubr.f32.gmra.mrb[0].mxu0 %v3300
        %v3492 = vpop.f32.mrb[0].mxu0
        %v3493 = vadd.f32 0.0, %v3492
        %v3494 = vpop.f32.mrb[0].mxu0
        %3495 = vmatprep.mubr.f32.mxu0 0.0
        %3496 = vmatmul.mubr.f32.gmra.mrb[0].mxu0 %v3303
        %v3497 = vpop.f32.mrb[0].mxu0
        %v3498 = vadd.f32 0.0, %v3497
        %v3499 = vpop.f32.mrb[0].mxu0
        %3500 = vmatprep.mubr.f32.mxu0 0.0
        %3501 = vmatmul.mubr.f32.gmra.mrb[0].mxu0 %v3306
        %v3502 = vpop.f32.mrb[0].mxu0
        %v3503 = vadd.f32 0.0, %v3502
        %v3504 = vpop.f32.mrb[0].mxu0
        %3505 = vmatprep.mubr.f32.mxu0 0.0
        %3506 = vmatmul.mubr.f32.gmra.mrb[0].mxu0 %v3309
        %v3507 = vpop.f32.mrb[0].mxu0
        %v3508 = vadd.f32 0.0, %v3507
        %v3509 = vpop.f32.mrb[0].mxu0
        %3510 = vmatprep.mubr.f32.mxu0 0.0
        %3511 = vmatmul.mubr.f32.gmra.mrb[0].mxu0 %v3312
        %v3512 = vpop.f32.mrb[0].mxu0
        %v3513 = vadd.f32 0.0, %v3512
        %v3514 = vpop.f32.mrb[0].mxu0
        %3515 = vmatprep.mubr.f32.mxu0 0.0
        %3516 = vmatmul.mubr.f32.gmra.mrb[0].mxu0 %v3315
        %v3517 = vpop.f32.mrb[0].mxu0
        %v3518 = vadd.f32 0.0, %v3517
        %v3519 = vpop.f32.mrb[0].mxu0
        %3520 = vmatprep.mubr.f32.mxu0 0.0
        %3521 = vmatmul.mubr.f32.gmra.mrb[0].mxu0 %v3318
        %v3522 = vpop.f32.mrb[0].mxu0
        %v3523 = vadd.f32 0.0, %v3522
        %v3524 = vpop.f32.mrb[0].mxu0
        %3525 = vmatprep.mubr.f32.mxu0 0.0
        %3526 = vmatmul.mubr.f32.gmra.mrb[0].mxu0 %v3321
        %v3527 = vpop.f32.mrb[0].mxu0
        %v3528 = vadd.f32 0.0, %v3527
        %v3529 = vpop.f32.mrb[0].mxu0
        %3530 = vmatprep.mubr.f32.mxu0 0.0
        %3531 = vmatmul.mubr.f32.gmra.mrb[0].mxu0 %v3324
        %v3532 = vpop.f32.mrb[0].mxu0
        %v3533 = vadd.f32 0.0, %v3532
        %v3534 = vpop.f32.mrb[0].mxu0
        %3535 = vmatprep.mubr.f32.mxu0 0.0
        %3536 = vmatmul.mubr.f32.gmra.mrb[0].mxu0 %v3327
        %v3537 = vpop.f32.mrb[0].mxu0
        %v3538 = vadd.f32 0.0, %v3537
        %v3539 = vpop.f32.mrb[0].mxu0
        %3540 = vmatprep.mubr.f32.mxu0 0.0
        %3541 = vmatmul.mubr.f32.gmra.mrb[0].mxu0 %v3330
        %v3542 = vpop.f32.mrb[0].mxu0
        %v3543 = vadd.f32 0.0, %v3542
        %v3544 = vpop.f32.mrb[0].mxu0
        %3545 = vmatprep.mubr.f32.mxu0 0.0
        %3546 = vmatmul.mubr.f32.gmra.mrb[0].mxu0 %v3333
        %v3547 = vpop.f32.mrb[0].mxu0
        %v3548 = vadd.f32 0.0, %v3547
        %v3549 = vpop.f32.mrb[0].mxu0
        %3550 = vmatprep.mubr.f32.mxu0 0.0
        %3551 = vmatmul.mubr.f32.gmra.mrb[0].mxu0 %v3336
        %v3552 = vpop.f32.mrb[0].mxu0
        %v3553 = vadd.f32 0.0, %v3552
        %v3554 = vpop.f32.mrb[0].mxu0
        %3555 = vmatprep.mubr.f32.mxu0 0.0
        %3556 = vmatmul.mubr.f32.gmra.mrb[0].mxu0 %v3339
        %v3557 = vpop.f32.mrb[0].mxu0
        %v3558 = vadd.f32 0.0, %v3557
        %v3559 = vpop.f32.mrb[0].mxu0
        %3560 = vmatprep.mubr.f32.mxu0 0.0
        %3561 = vmatmul.mubr.f32.gmra.mrb[0].mxu0 %v3342
        %v3562 = vpop.f32.mrb[0].mxu0
        %v3563 = vadd.f32 0.0, %v3562
        %v3564 = vpop.f32.mrb[0].mxu0
        %3565 = vmatprep.mubr.f32.mxu0 0.0
        %3566 = vmatmul.mubr.f32.gmra.mrb[0].mxu0 %v3345
        %v3567 = vpop.f32.mrb[0].mxu0
        %v3568 = vadd.f32 0.0, %v3567
        %v3569 = vpop.f32.mrb[0].mxu0
        %3570 = vmatprep.mubr.f32.mxu0 0.0
        %3571 = vmatmul.mubr.f32.gmra.mrb[0].mxu0 %v3348
        %v3572 = vpop.f32.mrb[0].mxu0
        %v3573 = vadd.f32 0.0, %v3572
        %v3574 = vpop.f32.mrb[0].mxu0
        %3575 = vmatprep.mubr.f32.mxu0 0.0
        %3576 = vmatmul.mubr.f32.gmra.mrb[0].mxu0 %v3351
        %v3577 = vpop.f32.mrb[0].mxu0
        %v3578 = vadd.f32 0.0, %v3577
        %v3579 = vpop.f32.mrb[0].mxu0
        %3580 = vdwg.mxu0
        %v3581 = vadd.f32 %v3191, %v3423
        %v3582 = vadd.f32 %v3192, %v3428
        %v3583 = vadd.f32 %v3193, %v3433
        %v3584 = vadd.f32 %v3194, %v3438
        %v3585 = vadd.f32 %v3195, %v3443
        %v3586 = vadd.f32 %v3196, %v3448
        %v3587 = vadd.f32 %v3197, %v3453
        %v3588 = vadd.f32 %v3198, %v3458
        %v3589 = vadd.f32 %v3199, %v3463
        %v3590 = vadd.f32 %v3200, %v3468
        %v3591 = vadd.f32 %v3201, %v3473
        %v3592 = vadd.f32 %v3202, %v3478
        %v3593 = vadd.f32 %v3203, %v3483
        %v3594 = vadd.f32 %v3204, %v3488
        %v3595 = vadd.f32 %v3205, %v3493
        %v3596 = vadd.f32 %v3206, %v3498
        %v3597 = vadd.f32 %v3207, %v3503
        %v3598 = vadd.f32 %v3208, %v3508
        %v3599 = vadd.f32 %v3209, %v3513
        %v3600 = vadd.f32 %v3210, %v3518
        %v3601 = vadd.f32 %v3211, %v3523
        %v3602 = vadd.f32 %v3212, %v3528
        %v3603 = vadd.f32 %v3213, %v3533
        %v3604 = vadd.f32 %v3214, %v3538
        %v3605 = vadd.f32 %v3215, %v3543
        %v3606 = vadd.f32 %v3216, %v3548
        %v3607 = vadd.f32 %v3217, %v3553
        %v3608 = vadd.f32 %v3218, %v3558
        %v3609 = vadd.f32 %v3219, %v3563
        %v3610 = vadd.f32 %v3220, %v3568
        %v3611 = vadd.f32 %v3221, %v3573
        %v3612 = vadd.f32 %v3222, %v3578
        %3613 = vxpose.xlu0.b32.start [1/16] %v3581, 128
        %3614 = vxpose.xlu0.b32.cont [2/16] %v3582, 128
        %3615 = vxpose.xlu0.b32.cont [3/16] %v3583, 128
        %3616 = vxpose.xlu0.b32.cont [4/16] %v3584, 128
        %3617 = vxpose.xlu0.b32.cont [5/16] %v3585, 128
        %3618 = vxpose.xlu0.b32.cont [6/16] %v3586, 128
        %3619 = vxpose.xlu0.b32.cont [7/16] %v3587, 128
        %3620 = vxpose.xlu0.b32.cont [8/16] %v3588, 128
        %3621 = vxpose.xlu0.b32.cont [9/16] %v3589, 128
        %3622 = vxpose.xlu0.b32.cont [10/16] %v3590, 128
        %3623 = vxpose.xlu0.b32.cont [11/16] %v3591, 128
        %3624 = vxpose.xlu0.b32.cont [12/16] %v3592, 128
        %3625 = vxpose.xlu0.b32.cont [13/16] %v3593, 128
        %3626 = vxpose.xlu0.b32.cont [14/16] %v3594, 128
        %3627 = vxpose.xlu0.b32.cont [15/16] %v3595, 128
        %3628 = vxpose.xlu0.b32.end [16/16] %v3596, 128
        %v3629 = vpop.trf.xlu0
        %v3630 = vpop.trf.xlu0
        %v3631 = vpop.trf.xlu0
        %v3632 = vpop.trf.xlu0
        %v3633 = vpop.trf.xlu0
        %v3634 = vpop.trf.xlu0
        %v3635 = vpop.trf.xlu0
        %v3636 = vpop.trf.xlu0
        %v3637 = vpop.trf.xlu0
        %v3638 = vpop.trf.xlu0
        %v3639 = vpop.trf.xlu0
        %v3640 = vpop.trf.xlu0
        %v3641 = vpop.trf.xlu0
        %v3642 = vpop.trf.xlu0
        %v3643 = vpop.trf.xlu0
        %v3644 = vpop.trf.xlu0
        %3645 = vxpose.xlu0.b32.start [1/16] %v3597, 128
        %3646 = vxpose.xlu0.b32.cont [2/16] %v3598, 128
        %3647 = vxpose.xlu0.b32.cont [3/16] %v3599, 128
        %3648 = vxpose.xlu0.b32.cont [4/16] %v3600, 128
        %3649 = vxpose.xlu0.b32.cont [5/16] %v3601, 128
        %3650 = vxpose.xlu0.b32.cont [6/16] %v3602, 128
        %3651 = vxpose.xlu0.b32.cont [7/16] %v3603, 128
        %3652 = vxpose.xlu0.b32.cont [8/16] %v3604, 128
        %3653 = vxpose.xlu0.b32.cont [9/16] %v3605, 128
        %3654 = vxpose.xlu0.b32.cont [10/16] %v3606, 128
        %3655 = vxpose.xlu0.b32.cont [11/16] %v3607, 128
        %3656 = vxpose.xlu0.b32.cont [12/16] %v3608, 128
        %3657 = vxpose.xlu0.b32.cont [13/16] %v3609, 128
        %3658 = vxpose.xlu0.b32.cont [14/16] %v3610, 128
        %3659 = vxpose.xlu0.b32.cont [15/16] %v3611, 128
        %3660 = vxpose.xlu0.b32.end [16/16] %v3612, 128
        %v3661 = vpop.trf.xlu0
        %v3662 = vpop.trf.xlu0
        %v3663 = vpop.trf.xlu0
        %v3664 = vpop.trf.xlu0
        %v3665 = vpop.trf.xlu0
        %v3666 = vpop.trf.xlu0
        %v3667 = vpop.trf.xlu0
        %v3668 = vpop.trf.xlu0
        %v3669 = vpop.trf.xlu0
        %v3670 = vpop.trf.xlu0
        %v3671 = vpop.trf.xlu0
        %v3672 = vpop.trf.xlu0
        %v3673 = vpop.trf.xlu0
        %v3674 = vpop.trf.xlu0
        %v3675 = vpop.trf.xlu0
        %v3676 = vpop.trf.xlu0
        %v3679 = vcombine.low %v3629, %v3661
        %3681 = vst [vmem:[%s150] sm:$0xff] %v3679
        %s3682 = sand.u32 %s85, 1
        %s3683 = scalar_lea.sflag [#allocation3], %s3682
        %s3684 = sand.u32 %s85, 1
        %s3685 = smul.addr %s3684, 8
        %s3686 = scalar_lea.vmem [#allocation2], %s3685
        // Predicated region
        $region29: #{tpu_custom_call.1} parent=27 // pred_check
          %p3687 = pneg %p95
        $region30: #{tpu_custom_call.1} parent=27 // pred_check_branch
          %3689 = sbr.rel (%p3687) target = $region32
        $region31: #{tpu_custom_call.1} parent=27 // pred_region
          %s3690 = smul.u32 2, %s21
          %s3692 = ssub.s32 128, 128
          %3693 = vsyncadd %s3683, %s3692
          %s3694 = smul.addr %s20, 2
          %s3695 = sadd.s32 %s3690, %s3694
          %s3696 = smul.addr %s3695, 64
          %s3697 = scalar_lea.hbm %s2, %s3696
          %s3699 = sshll.u32 %s3686, 4
          %s3700 = int_to_ptr.vmem [resolvable:$true] %s3699
          %3702 = dma.vmem_to_hbm [thread:$0]  %s3700, 128, %s3697, %s3683
        $region32: #{tpu_custom_call.1} parent=27 // pred_fallthru
          _
      $region28: #{tpu_custom_call.1} parent=5 // pred_fallthru
        _
      %p3703 = scmp.le.s32.totalorder 2, %s11
      // Predicated region
      $region33: #{tpu_custom_call.1} parent=5 // pred_check
        %p3704 = pneg %p3703
      $region34: #{tpu_custom_call.1} parent=5 // pred_check_branch
        %3706 = sbr.rel (%p3704) target = $region36
      $region35: #{tpu_custom_call.1} parent=5 // pred_region
        %s3707 = ssub.s32 %s11, 2
        // Predicated region
        $region37: #{tpu_custom_call.1} parent=35 // pred_check
          %p3708 = pneg %p101
        $region38: #{tpu_custom_call.1} parent=35 // pred_check_branch
          %3710 = sbr.rel (%p3708) target = $region40
        $region39: #{tpu_custom_call.1} parent=35 // pred_region
          %s3711 = sand.u32 %s86, 1
          %s3712 = scalar_lea.sflag [#allocation3], %s3711
          %s3713 = sand.u32 %s86, 1
          %s3714 = smul.addr %s3713, 8
          %s3715 = scalar_lea.vmem [#allocation2], %s3714
          %3716 = dma.done %s3712, 128
        $region40: #{tpu_custom_call.1} parent=35 // pred_fallthru
          _
      $region36: #{tpu_custom_call.1} parent=5 // pred_fallthru
        _
    $region6: #{tpu_custom_call.1} parent=1 // loop_footer
      %s15 = sadd.s32 1, %s11
    $region7: #{tpu_custom_call.1} parent=1 // loop_footer_branch
      %10 = sbr.rel target = $region3
    $region8: #{tpu_custom_call.1} parent=1 // loop_exit
      _
    %3717 = vsyncpa [#allocation3], 1
    %s3718 = scalar_lea.sflag [#allocation3], 1
    %3719 = vsyncpa %s3718, 1

</llo_original>
